<compile_context>
chip_gen: v5e
topology: v5e:2x2
jax: 0.10.0
libtpu: 0.0.40
codegen_flags: <defaults>
</compile_context>

<pallas_src>
import functools

import jax
import jax.numpy as jnp
from jax.experimental import pallas as pl
from jax.experimental.pallas import tpu as pltpu


def _round_up(n, m):
    return ((n + m - 1) // m) * m


_VMEM_CAP = None


def _vmem_cap_bytes():
    global _VMEM_CAP
    if _VMEM_CAP is None:
        try:
            _VMEM_CAP = int(pltpu.get_tpu_info().vmem_capacity_bytes)
        except Exception:
            _VMEM_CAP = 64 * 1024 * 1024     # conservative (v7x physical)
    return _VMEM_CAP


# ----------------------------------------------------------------------------
# Pallas kernel: fused conv(4x4, stride 2) + bias [+ InstanceNorm] [+ LeakyReLU]
# Input is W-overlapped space-to-depth (channels carry (dj, pi, pj, cin)), so
# the conv is ONE matmul with K = 16*Cin built from two H-shifted slices.
# ----------------------------------------------------------------------------
def _conv_s2d_kernel(x_ref, w_ref, b_ref, o_ref, *, th, wo, norm, act):
    # x_ref: (1, H2, Wo, C8)   full folded input for one batch element
    # w_ref: (16*Cin, TC)      flattened weights, K order (di, dj, pi, pj, cin)
    # b_ref: (1, TC)           f32 bias (zero in padded output channels)
    # o_ref: (1, th, Wo, TC)   output row x channel tile
    rt = pl.program_id(1)
    r0 = pl.multiple_of(rt * th, th)
    c8 = x_ref.shape[3]
    tc = w_ref.shape[1]
    P = th * wo

    # Two H taps (di = 0, 1). Shifting only the third-minor (H) axis keeps the
    # reads on the (8,128) tile grid (no sublane relayout).
    x0 = x_ref[0, pl.ds(r0, th), :, :].reshape(P, c8)
    x1 = x_ref[0, pl.ds(r0 + 1, th), :, :].reshape(P, c8)

    if c8 % 128 == 0:
        # Single matmul, K = 16*Cin (lane-aligned concat, exact MXU-depth fill).
        lhs = jnp.concatenate([x0, x1], axis=-1)
        y = jnp.dot(lhs, w_ref[...], preferred_element_type=jnp.float32)
    else:
        # Fallback for lane-misaligned channel counts: two matmuls, accumulator
        # initialised from the first dot (no extra zeros pass).
        y = jnp.dot(x0, w_ref[:c8, :], preferred_element_type=jnp.float32)
        y = y + jnp.dot(x1, w_ref[c8:, :], preferred_element_type=jnp.float32)

    y = y + b_ref[...]                                   # (P, TC) f32

    if norm:
        # InstanceNorm2d(affine=False, eps=1e-5): stats per (batch, channel)
        # over the full spatial extent (th == Ho on normalised layers).
        # Chunked single pass: no full-size y*y temp.
        nck = 1
        for cand in (8, 4, 2):
            if P % cand == 0 and (P // cand) % 8 == 0:
                nck = cand
                break
        csz = P // nck
        s = jnp.zeros((1, tc), jnp.float32)
        ss = jnp.zeros((1, tc), jnp.float32)
        for c in range(nck):
            yc = y[c * csz:(c + 1) * csz]
            s = s + jnp.sum(yc, axis=0, keepdims=True)
            ss = ss + jnp.sum(yc * yc, axis=0, keepdims=True)
        inv_p = 1.0 / float(P)
        mean = s * inv_p
        var = jnp.maximum(ss * inv_p - mean * mean, 0.0)
        y = (y - mean) * jax.lax.rsqrt(var + 1e-5)

    if act:
        y = jnp.maximum(y, 0.2 * y)                      # LeakyReLU(0.2)

    o_ref[0] = y.reshape(th, wo, tc).astype(o_ref.dtype)


def conv_layer_pallas(x_f, w_flat, bias, *, ho, wo, th, tc, norm, act, out_dtype):
    """x_f: (B, H2, Wo, C8); w_flat: (16*Cin, Coutp); bias: (1, Coutp)."""
    B, h2, wo_in, c8 = x_f.shape
    k16, coutp = w_flat.shape
    assert wo_in == wo and k16 == 2 * c8 and ho == h2 - 1
    assert ho % th == 0 and coutp % tc == 0
    n_rt = ho // th
    n_ct = coutp // tc

    # Per-layer VMEM budget derived from the actual block / temp sizes.
    it = jnp.dtype(x_f.dtype).itemsize
    ot = jnp.dtype(out_dtype).itemsize
    P = th * wo
    est = (2 * (h2 * wo * c8 * it)             # double-buffered per-batch input
           + 2 * (k16 * tc * it + tc * 4)      # weights / bias
           + 2 * (P * tc * ot)                 # double-buffered output tile
           + P * k16 * it                      # K = 16*Cin LHS
           + (4 if norm else 2) * P * tc * 4)  # f32 conv result (+ norm temps)
    cap = int(0.9 * _vmem_cap_bytes())
    vmem_limit = max(min(est + (8 << 20), cap), min(32 << 20, cap))

    kernel = functools.partial(_conv_s2d_kernel, th=th, wo=wo, norm=norm, act=act)
    return pl.pallas_call(
        kernel,
        out_shape=jax.ShapeDtypeStruct((B, ho, wo, coutp), out_dtype),
        grid=(B, n_rt, n_ct),
        in_specs=[
            # Full per-batch folded input stays resident in VMEM across the
            # (row, channel) tiles (its block index only changes with b).
            pl.BlockSpec((1, h2, wo, c8), lambda b, rt, ct: (b, 0, 0, 0)),
            pl.BlockSpec((k16, tc), lambda b, rt, ct: (0, ct)),
            pl.BlockSpec((1, tc), lambda b, rt, ct: (0, ct)),
        ],
        out_specs=pl.BlockSpec((1, th, wo, tc), lambda b, rt, ct: (b, rt, 0, ct)),
        compiler_params=pltpu.CompilerParams(
            dimension_semantics=("parallel", "parallel", "parallel"),
            vmem_limit_bytes=vmem_limit),
    )(x_f, w_flat, bias)


# ----------------------------------------------------------------------------
# Wrapper glue: fold, weight re-layout, tile selection.
# ----------------------------------------------------------------------------
def _fold_input(x, pad, cin_real):
    """NHWC activation -> W-overlapped space-to-depth form.

    (B, H, W, C_stored) -> (B, (H+2p)//2, (W+2p)//2 - 1, 8*cin_real) with
    channel order (dj, pi, pj, cin).  Only the first `cin_real` stored channels
    are used, so lane-padding of the previous layer's output never inflates the
    next contraction.
    """
    x = x[..., :cin_real]
    if pad:
        x = jnp.pad(x, ((0, 0), (pad, pad), (pad, pad), (0, 0)))
    B, Hp, Wp, C = x.shape
    assert Hp % 2 == 0 and Wp % 2 == 0 and Hp >= 4 and Wp >= 4
    x = x.reshape(B, Hp // 2, 2, Wp // 2, 2, C)
    x = jnp.transpose(x, (0, 1, 3, 2, 4, 5))             # (B, R, Cb, pi, pj, C)
    x = x.reshape(B, Hp // 2, Wp // 2, 4 * C)
    # W-overlap: channels become (dj, pi, pj, C); width -> Wp//2 - 1.
    return jnp.concatenate([x[:, :, :-1, :], x[:, :, 1:, :]], axis=-1)


def _prep_weights(w, b, cin_act, coutp, dtype):
    """(4,4,Cin,Cout) HWIO -> (16*cin_act, coutp) with K order (di,dj,pi,pj,cin)."""
    _, _, cin, cout = w.shape
    if cin_act > cin:                       # activation channels are zero-padded
        w = jnp.pad(w, ((0, 0), (0, 0), (0, cin_act - cin), (0, 0)))
    w = w.reshape(2, 2, 2, 2, cin_act, cout)              # (di, pi, dj, pj, ci, co)
    w = jnp.transpose(w, (0, 2, 1, 3, 4, 5))              # (di, dj, pi, pj, ci, co)
    w = w.reshape(16 * cin_act, cout)
    if coutp > cout:
        w = jnp.pad(w, ((0, 0), (0, coutp - cout)))
        b = jnp.pad(b, (0, coutp - cout))
    return w.astype(dtype), b.reshape(1, coutp).astype(jnp.float32)


def _row_tile(ho, wo, k16, tc, out_itemsize, budget=12 * 1024 * 1024):
    """Largest power-of-two row tile (dividing ho) within a ~12 MiB budget."""
    per_row = wo * (2 * k16 + 8 * tc + 2 * tc * out_itemsize)
    th = ho
    while th % 2 == 0 and th > 8 and th * per_row > budget:
        th //= 2
    return th


def _chan_tile(coutp):
    if coutp > 256 and coutp % 256 == 0:
        return 256
    return coutp


# ----------------------------------------------------------------------------
# Discriminator: parameter init + forward
# ----------------------------------------------------------------------------
def init_discriminator_params(key, img_chs, features=64):
    """DCGAN-style init: weights ~ N(0, 0.02), zero bias. HWIO layout (4,4,Cin,Cout)."""
    chs = [img_chs, features, features * 2, features * 4, features * 8, 1]
    params = []
    for li in range(5):
        key, wk = jax.random.split(key)
        cin, cout = chs[li], chs[li + 1]
        w = 0.02 * jax.random.normal(wk, (4, 4, cin, cout), dtype=jnp.float32)
        b = jnp.zeros((cout,), dtype=jnp.float32)
        params.append((w, b))
    return params


def discriminator_forward(params, x_nchw, img_h, img_w,
                          norm_layer_output=(False, True, True, True),
                          compute_dtype=jnp.bfloat16):
    if x_nchw.shape[-2:] != (img_h, img_w):
        raise Exception(f"X size must be (B,img_chs,{img_h},{img_w}).")

    # NCHW (PyTorch) -> NHWC; pad image channels to 16 with zeros so the folded
    # layer-1 contraction (K = 16*16 = 256) stays lane-aligned / MXU friendly.
    x = jnp.transpose(x_nchw, (0, 2, 3, 1)).astype(compute_dtype)
    cin0 = x.shape[-1]
    cin0_p = _round_up(cin0, 16)
    if cin0_p > cin0:
        x = jnp.pad(x, ((0, 0), (0, 0), (0, 0), (0, cin0_p - cin0)))
    real_c = cin0_p

    layer_cfg = [
        # (pad, norm, act)
        (1, norm_layer_output[0], True),
        (1, norm_layer_output[1], True),
        (1, norm_layer_output[2], True),
        (1, norm_layer_output[3], True),
        (0, False, False),                 # final Conv2d(features*8, 1, 4, 2, 0)
    ]
    n_layers = len(layer_cfg)

    for li, ((w, b), (pad, norm, act)) in enumerate(zip(params, layer_cfg)):
        last = li == n_layers - 1
        cout = w.shape[-1]
        coutp = _round_up(cout, 128)       # lane-dense stores (zero weight/bias cols)

        x_f = _fold_input(x, pad, real_c)                     # (B, H2, Wo, 8*real_c)
        w_flat, bias = _prep_weights(w, b, real_c, coutp, compute_dtype)
        h2, wo = x_f.shape[1], x_f.shape[2]
        ho = h2 - 1
        out_dtype = jnp.float32 if last else compute_dtype

        tc = _chan_tile(coutp)
        th = ho if norm else _row_tile(ho, wo, 16 * real_c, tc,
                                       jnp.dtype(out_dtype).itemsize)
        x = conv_layer_pallas(x_f, w_flat, bias, ho=ho, wo=wo, th=th, tc=tc,
                              norm=norm, act=act, out_dtype=out_dtype)
        real_c = cout      # next layer only contracts over the real channels

    # Slice the single real logit channel; return NCHW like PyTorch.
    return jnp.transpose(x[..., :1], (0, 3, 1, 2)).astype(jnp.float32)


# ----------------------------------------------------------------------------
# Pure-JAX reference (f32) for correctness checking.
# ----------------------------------------------------------------------------
def reference_forward(params, x_nchw, norm_layer_output=(False, True, True, True)):
    x = jnp.transpose(x_nchw, (0, 2, 3, 1)).astype(jnp.float32)
    cfg = [(1, norm_layer_output[0], True), (1, norm_layer_output[1], True),
           (1, norm_layer_output[2], True), (1, norm_layer_output[3], True),
           (0, False, False)]
    for (w, b), (pad, norm, act) in zip(params, cfg):
        y = jax.lax.conv_general_dilated(
            x, w, window_strides=(2, 2), padding=[(pad, pad), (pad, pad)],
            dimension_numbers=("NHWC", "HWIO", "NHWC"))
        y = y + b.reshape(1, 1, 1, -1)
        if norm:
            mean = jnp.mean(y, axis=(1, 2), keepdims=True)
            var = jnp.mean(jnp.square(y - mean), axis=(1, 2), keepdims=True)
            y = (y - mean) * jax.lax.rsqrt(var + 1e-5)
        if act:
            y = jnp.maximum(y, 0.2 * y)
        x = y
    return jnp.transpose(x, (0, 3, 1, 2))


if __name__ == "__main__":
    # Small config: batch=2, img_chs=3, 64x64 input, features=16.
    # Spatial: 64 -> 32 -> 16 -> 8 -> 4 -> 1 ; channels 3->16->32->64->128->1.
    B, IMG_CHS, IMG_H, IMG_W, FEATURES = 2, 3, 64, 64, 16

    key = jax.random.PRNGKey(0)
    pkey, xkey = jax.random.split(key)
    params = init_discriminator_params(pkey, IMG_CHS, features=FEATURES)
    x = jax.random.normal(xkey, (B, IMG_CHS, IMG_H, IMG_W), dtype=jnp.float32)

    fwd = jax.jit(discriminator_forward,
                  static_argnames=("img_h", "img_w", "norm_layer_output",
                                   "compute_dtype"))

    # Correctness: run the Pallas path with f32 compute and compare to the ref.
    out_f32 = jax.block_until_ready(
        fwd(params, x, img_h=IMG_H, img_w=IMG_W, compute_dtype=jnp.float32))
    ref = jax.block_until_ready(reference_forward(params, x))
    err = jnp.max(jnp.abs(out_f32 - ref)) / (jnp.max(jnp.abs(ref)) + 1e-6)
    assert out_f32.shape == (B, 1, 1, 1), out_f32.shape
    assert float(err) < 5e-3, f"mismatch vs reference: normalized err={float(err)}"

    # Fast path: bf16 operands on the MXU, f32 accumulation / norm statistics.
    out = jax.block_until_ready(
        fwd(params, x, img_h=IMG_H, img_w=IMG_W, compute_dtype=jnp.bfloat16))
    assert out.shape == (B, 1, 1, 1), out.shape
    assert bool(jnp.all(jnp.isfinite(out)))
    print("KERNEL_OK")
</pallas_src>

<mosaic_0001>
module attributes {stable_mosaic.version = 11 : i64} {
  func.func @_conv_s2d_kernel(%arg0: i32, %arg1: i32, %arg2: i32, %arg3: memref<1x33x32x128xf32, #tpu.memory_space<vmem>>, %arg4: memref<256x128xf32, #tpu.memory_space<vmem>>, %arg5: memref<1x128xf32, #tpu.memory_space<vmem>>, %arg6: memref<1x32x32x128xf32, #tpu.memory_space<vmem>>) attributes {dimension_semantics = [#tpu.dimension_semantics<parallel>, #tpu.dimension_semantics<parallel>, #tpu.dimension_semantics<parallel>], iteration_bounds = array<i64: 2, 1, 1>, scalar_prefetch = 0 : i64, scratch_operands = 0 : i64, tpu.core_type = #tpu.core_type<tc>, window_params = [{transform_indices = @transform_0, window_bounds = array<i64: 1, 33, 32, 128>}, {transform_indices = @transform_1, window_bounds = array<i64: 256, 128>}, {transform_indices = @transform_2, window_bounds = array<i64: 1, 128>}, {transform_indices = @transform_3, window_bounds = array<i64: 1, 32, 32, 128>}]} {
    %c32_i32 = arith.constant 32 : i32
    %0 = arith.muli %arg1, %c32_i32 : i32
    %1 = tpu.assume_multiple %0, 32 : i32
    %c0 = arith.constant 0 : index
    %2 = arith.index_cast %1 : i32 to index
    %c0_0 = arith.constant 0 : index
    %c0_1 = arith.constant 0 : index
    %3 = vector.load %arg3[%c0, %2, %c0_0, %c0_1] : memref<1x33x32x128xf32, #tpu.memory_space<vmem>>, vector<1x32x32x128xf32>
    %4 = vector.shape_cast %3 : vector<1x32x32x128xf32> to vector<32x32x128xf32>
    %5 = vector.shape_cast %4 : vector<32x32x128xf32> to vector<1024x128xf32>
    %c1_i32 = arith.constant 1 : i32
    %6 = arith.addi %1, %c1_i32 : i32
    %c0_2 = arith.constant 0 : index
    %7 = arith.index_cast %6 : i32 to index
    %c0_3 = arith.constant 0 : index
    %c0_4 = arith.constant 0 : index
    %8 = vector.load %arg3[%c0_2, %7, %c0_3, %c0_4] : memref<1x33x32x128xf32, #tpu.memory_space<vmem>>, vector<1x32x32x128xf32>
    %9 = vector.shape_cast %8 : vector<1x32x32x128xf32> to vector<32x32x128xf32>
    %10 = vector.shape_cast %9 : vector<32x32x128xf32> to vector<1024x128xf32>
    %11 = tpu.concatenate %5, %10 in 1 : vector<1024x128xf32>, vector<1024x128xf32> -> vector<1024x256xf32>
    %c0_5 = arith.constant 0 : index
    %c0_6 = arith.constant 0 : index
    %12 = vector.load %arg4[%c0_5, %c0_6] : memref<256x128xf32, #tpu.memory_space<vmem>>, vector<256x128xf32>
    %cst = arith.constant dense<0.000000e+00> : vector<1024x128xf32>
    %13 = tpu.matmul %11, %12, %cst {dimension_numbers = #tpu.dot_dimension_numbers<[1], [0], [0], [1], [0, 0, 1, 1], [], []>} : vector<1024x256xf32>, vector<256x128xf32>, vector<1024x128xf32> -> vector<1024x128xf32>
    %c0_7 = arith.constant 0 : index
    %c0_8 = arith.constant 0 : index
    %14 = vector.load %arg5[%c0_7, %c0_8] : memref<1x128xf32, #tpu.memory_space<vmem>>, vector<1x128xf32>
    %15 = vector.broadcast %14 : vector<1x128xf32> to vector<1024x128xf32>
    %16 = arith.addf %13, %15 : vector<1024x128xf32>
    %cst_9 = arith.constant 2.000000e-01 : f32
    %17 = vector.broadcast %cst_9 : f32 to vector<1024x128xf32>
    %18 = arith.mulf %17, %16 : vector<1024x128xf32>
    %19 = arith.maximumf %16, %18 : vector<1024x128xf32>
    %20 = vector.shape_cast %19 : vector<1024x128xf32> to vector<32x32x128xf32>
    %c0_10 = arith.constant 0 : index
    %c0_11 = arith.constant 0 : index
    %c0_12 = arith.constant 0 : index
    %c0_13 = arith.constant 0 : index
    %21 = vector.load %arg6[%c0_10, %c0_11, %c0_12, %c0_13] : memref<1x32x32x128xf32, #tpu.memory_space<vmem>>, vector<1x32x32x128xf32>
    %22 = vector.shape_cast %21 : vector<1x32x32x128xf32> to vector<32x32x128xf32>
    %23 = vector.shape_cast %20 : vector<32x32x128xf32> to vector<1x32x32x128xf32>
    tpu.vector_store %arg6[%c0_10, %c0_11, %c0_12, %c0_13], %23 {strides = array<i32>} : memref<1x32x32x128xf32, #tpu.memory_space<vmem>>, vector<1x32x32x128xf32>,
    return
  }
  func.func @transform_0(%arg0: i32, %arg1: i32, %arg2: i32) -> (i32, i32, i32, i32) {
    %c0_i32 = arith.constant 0 : i32
    %c0_i32_0 = arith.constant 0 : i32
    %c0_i32_1 = arith.constant 0 : i32
    %c0_i32_2 = arith.constant 0 : i32
    return %arg0, %c0_i32, %c0_i32_0, %c0_i32_1 : i32, i32, i32, i32
  }
  func.func @transform_1(%arg0: i32, %arg1: i32, %arg2: i32) -> (i32, i32) {
    %c0_i32 = arith.constant 0 : i32
    %c0_i32_0 = arith.constant 0 : i32
    return %c0_i32, %arg2 : i32, i32
  }
  func.func @transform_2(%arg0: i32, %arg1: i32, %arg2: i32) -> (i32, i32) {
    %c0_i32 = arith.constant 0 : i32
    %c0_i32_0 = arith.constant 0 : i32
    return %c0_i32, %arg2 : i32, i32
  }
  func.func @transform_3(%arg0: i32, %arg1: i32, %arg2: i32) -> (i32, i32, i32, i32) {
    %c0_i32 = arith.constant 0 : i32
    %c0_i32_0 = arith.constant 0 : i32
    return %arg0, %arg1, %c0_i32, %arg2 : i32, i32, i32, i32
  }
}

module attributes {stable_mosaic.version = 11 : i64} {
  func.func @_conv_s2d_kernel(%arg0: i32, %arg1: i32, %arg2: i32, %arg3: memref<1x17x16x128xf32, #tpu.memory_space<vmem>>, %arg4: memref<256x128xf32, #tpu.memory_space<vmem>>, %arg5: memref<1x128xf32, #tpu.memory_space<vmem>>, %arg6: memref<1x16x16x128xf32, #tpu.memory_space<vmem>>) attributes {dimension_semantics = [#tpu.dimension_semantics<parallel>, #tpu.dimension_semantics<parallel>, #tpu.dimension_semantics<parallel>], iteration_bounds = array<i64: 2, 1, 1>, scalar_prefetch = 0 : i64, scratch_operands = 0 : i64, tpu.core_type = #tpu.core_type<tc>, window_params = [{transform_indices = @transform_0, window_bounds = array<i64: 1, 17, 16, 128>}, {transform_indices = @transform_1, window_bounds = array<i64: 256, 128>}, {transform_indices = @transform_2, window_bounds = array<i64: 1, 128>}, {transform_indices = @transform_3, window_bounds = array<i64: 1, 16, 16, 128>}]} {
    %c16_i32 = arith.constant 16 : i32
    %0 = arith.muli %arg1, %c16_i32 : i32
    %1 = tpu.assume_multiple %0, 16 : i32
    %c0 = arith.constant 0 : index
    %2 = arith.index_cast %1 : i32 to index
    %c0_0 = arith.constant 0 : index
    %c0_1 = arith.constant 0 : index
    %3 = vector.load %arg3[%c0, %2, %c0_0, %c0_1] : memref<1x17x16x128xf32, #tpu.memory_space<vmem>>, vector<1x16x16x128xf32>
    %4 = vector.shape_cast %3 : vector<1x16x16x128xf32> to vector<16x16x128xf32>
    %5 = vector.shape_cast %4 : vector<16x16x128xf32> to vector<256x128xf32>
    %c1_i32 = arith.constant 1 : i32
    %6 = arith.addi %1, %c1_i32 : i32
    %c0_2 = arith.constant 0 : index
    %7 = arith.index_cast %6 : i32 to index
    %c0_3 = arith.constant 0 : index
    %c0_4 = arith.constant 0 : index
    %8 = vector.load %arg3[%c0_2, %7, %c0_3, %c0_4] : memref<1x17x16x128xf32, #tpu.memory_space<vmem>>, vector<1x16x16x128xf32>
    %9 = vector.shape_cast %8 : vector<1x16x16x128xf32> to vector<16x16x128xf32>
    %10 = vector.shape_cast %9 : vector<16x16x128xf32> to vector<256x128xf32>
    %11 = tpu.concatenate %5, %10 in 1 : vector<256x128xf32>, vector<256x128xf32> -> vector<256x256xf32>
    %c0_5 = arith.constant 0 : index
    %c0_6 = arith.constant 0 : index
    %12 = vector.load %arg4[%c0_5, %c0_6] : memref<256x128xf32, #tpu.memory_space<vmem>>, vector<256x128xf32>
    %cst = arith.constant dense<0.000000e+00> : vector<256x128xf32>
    %13 = tpu.matmul %11, %12, %cst {dimension_numbers = #tpu.dot_dimension_numbers<[1], [0], [0], [1], [0, 0, 1, 1], [], []>} : vector<256x256xf32>, vector<256x128xf32>, vector<256x128xf32> -> vector<256x128xf32>
    %c0_7 = arith.constant 0 : index
    %c0_8 = arith.constant 0 : index
    %14 = vector.load %arg5[%c0_7, %c0_8] : memref<1x128xf32, #tpu.memory_space<vmem>>, vector<1x128xf32>
    %15 = vector.broadcast %14 : vector<1x128xf32> to vector<256x128xf32>
    %16 = arith.addf %13, %15 : vector<256x128xf32>
    %cst_9 = arith.constant 0.000000e+00 : f32
    %17 = vector.broadcast %cst_9 : f32 to vector<1x128xf32>
    %cst_10 = arith.constant 0.000000e+00 : f32
    %18 = vector.broadcast %cst_10 : f32 to vector<1x128xf32>
    %19 = vector.extract_strided_slice %16 {offsets = [0, 0], sizes = [32, 128], strides = [1, 1]} : vector<256x128xf32> to vector<32x128xf32>
    %cst_11 = arith.constant dense<0.000000e+00> : vector<128xf32>
    %20 = vector.multi_reduction <add>, %19, %cst_11 [0] : vector<32x128xf32> to vector<128xf32>
    %21 = vector.shape_cast %20 : vector<128xf32> to vector<1x128xf32>
    %22 = arith.addf %17, %21 : vector<1x128xf32>
    %23 = arith.mulf %19, %19 : vector<32x128xf32>
    %cst_12 = arith.constant dense<0.000000e+00> : vector<128xf32>
    %24 = vector.multi_reduction <add>, %23, %cst_12 [0] : vector<32x128xf32> to vector<128xf32>
    %25 = vector.shape_cast %24 : vector<128xf32> to vector<1x128xf32>
    %26 = arith.addf %18, %25 : vector<1x128xf32>
    %27 = vector.extract_strided_slice %16 {offsets = [32, 0], sizes = [32, 128], strides = [1, 1]} : vector<256x128xf32> to vector<32x128xf32>
    %cst_13 = arith.constant dense<0.000000e+00> : vector<128xf32>
    %28 = vector.multi_reduction <add>, %27, %cst_13 [0] : vector<32x128xf32> to vector<128xf32>
    %29 = vector.shape_cast %28 : vector<128xf32> to vector<1x128xf32>
    %30 = arith.addf %22, %29 : vector<1x128xf32>
    %31 = arith.mulf %27, %27 : vector<32x128xf32>
    %cst_14 = arith.constant dense<0.000000e+00> : vector<128xf32>
    %32 = vector.multi_reduction <add>, %31, %cst_14 [0] : vector<32x128xf32> to vector<128xf32>
    %33 = vector.shape_cast %32 : vector<128xf32> to vector<1x128xf32>
    %34 = arith.addf %26, %33 : vector<1x128xf32>
    %35 = vector.extract_strided_slice %16 {offsets = [64, 0], sizes = [32, 128], strides = [1, 1]} : vector<256x128xf32> to vector<32x128xf32>
    %cst_15 = arith.constant dense<0.000000e+00> : vector<128xf32>
    %36 = vector.multi_reduction <add>, %35, %cst_15 [0] : vector<32x128xf32> to vector<128xf32>
    %37 = vector.shape_cast %36 : vector<128xf32> to vector<1x128xf32>
    %38 = arith.addf %30, %37 : vector<1x128xf32>
    %39 = arith.mulf %35, %35 : vector<32x128xf32>
    %cst_16 = arith.constant dense<0.000000e+00> : vector<128xf32>
    %40 = vector.multi_reduction <add>, %39, %cst_16 [0] : vector<32x128xf32> to vector<128xf32>
    %41 = vector.shape_cast %40 : vector<128xf32> to vector<1x128xf32>
    %42 = arith.addf %34, %41 : vector<1x128xf32>
    %43 = vector.extract_strided_slice %16 {offsets = [96, 0], sizes = [32, 128], strides = [1, 1]} : vector<256x128xf32> to vector<32x128xf32>
    %cst_17 = arith.constant dense<0.000000e+00> : vector<128xf32>
    %44 = vector.multi_reduction <add>, %43, %cst_17 [0] : vector<32x128xf32> to vector<128xf32>
    %45 = vector.shape_cast %44 : vector<128xf32> to vector<1x128xf32>
    %46 = arith.addf %38, %45 : vector<1x128xf32>
    %47 = arith.mulf %43, %43 : vector<32x128xf32>
    %cst_18 = arith.constant dense<0.000000e+00> : vector<128xf32>
    %48 = vector.multi_reduction <add>, %47, %cst_18 [0] : vector<32x128xf32> to vector<128xf32>
    %49 = vector.shape_cast %48 : vector<128xf32> to vector<1x128xf32>
    %50 = arith.addf %42, %49 : vector<1x128xf32>
    %51 = vector.extract_strided_slice %16 {offsets = [128, 0], sizes = [32, 128], strides = [1, 1]} : vector<256x128xf32> to vector<32x128xf32>
    %cst_19 = arith.constant dense<0.000000e+00> : vector<128xf32>
    %52 = vector.multi_reduction <add>, %51, %cst_19 [0] : vector<32x128xf32> to vector<128xf32>
    %53 = vector.shape_cast %52 : vector<128xf32> to vector<1x128xf32>
    %54 = arith.addf %46, %53 : vector<1x128xf32>
    %55 = arith.mulf %51, %51 : vector<32x128xf32>
    %cst_20 = arith.constant dense<0.000000e+00> : vector<128xf32>
    %56 = vector.multi_reduction <add>, %55, %cst_20 [0] : vector<32x128xf32> to vector<128xf32>
    %57 = vector.shape_cast %56 : vector<128xf32> to vector<1x128xf32>
    %58 = arith.addf %50, %57 : vector<1x128xf32>
    %59 = vector.extract_strided_slice %16 {offsets = [160, 0], sizes = [32, 128], strides = [1, 1]} : vector<256x128xf32> to vector<32x128xf32>
    %cst_21 = arith.constant dense<0.000000e+00> : vector<128xf32>
    %60 = vector.multi_reduction <add>, %59, %cst_21 [0] : vector<32x128xf32> to vector<128xf32>
    %61 = vector.shape_cast %60 : vector<128xf32> to vector<1x128xf32>
    %62 = arith.addf %54, %61 : vector<1x128xf32>
    %63 = arith.mulf %59, %59 : vector<32x128xf32>
    %cst_22 = arith.constant dense<0.000000e+00> : vector<128xf32>
    %64 = vector.multi_reduction <add>, %63, %cst_22 [0] : vector<32x128xf32> to vector<128xf32>
    %65 = vector.shape_cast %64 : vector<128xf32> to vector<1x128xf32>
    %66 = arith.addf %58, %65 : vector<1x128xf32>
    %67 = vector.extract_strided_slice %16 {offsets = [192, 0], sizes = [32, 128], strides = [1, 1]} : vector<256x128xf32> to vector<32x128xf32>
    %cst_23 = arith.constant dense<0.000000e+00> : vector<128xf32>
    %68 = vector.multi_reduction <add>, %67, %cst_23 [0] : vector<32x128xf32> to vector<128xf32>
    %69 = vector.shape_cast %68 : vector<128xf32> to vector<1x128xf32>
    %70 = arith.addf %62, %69 : vector<1x128xf32>
    %71 = arith.mulf %67, %67 : vector<32x128xf32>
    %cst_24 = arith.constant dense<0.000000e+00> : vector<128xf32>
    %72 = vector.multi_reduction <add>, %71, %cst_24 [0] : vector<32x128xf32> to vector<128xf32>
    %73 = vector.shape_cast %72 : vector<128xf32> to vector<1x128xf32>
    %74 = arith.addf %66, %73 : vector<1x128xf32>
    %75 = vector.extract_strided_slice %16 {offsets = [224, 0], sizes = [32, 128], strides = [1, 1]} : vector<256x128xf32> to vector<32x128xf32>
    %cst_25 = arith.constant dense<0.000000e+00> : vector<128xf32>
    %76 = vector.multi_reduction <add>, %75, %cst_25 [0] : vector<32x128xf32> to vector<128xf32>
    %77 = vector.shape_cast %76 : vector<128xf32> to vector<1x128xf32>
    %78 = arith.addf %70, %77 : vector<1x128xf32>
    %79 = arith.mulf %75, %75 : vector<32x128xf32>
    %cst_26 = arith.constant dense<0.000000e+00> : vector<128xf32>
    %80 = vector.multi_reduction <add>, %79, %cst_26 [0] : vector<32x128xf32> to vector<128xf32>
    %81 = vector.shape_cast %80 : vector<128xf32> to vector<1x128xf32>
    %82 = arith.addf %74, %81 : vector<1x128xf32>
    %cst_27 = arith.constant 3.906250e-03 : f32
    %83 = vector.broadcast %cst_27 : f32 to vector<1x128xf32>
    %84 = arith.mulf %78, %83 : vector<1x128xf32>
    %cst_28 = arith.constant 3.906250e-03 : f32
    %85 = vector.broadcast %cst_28 : f32 to vector<1x128xf32>
    %86 = arith.mulf %82, %85 : vector<1x128xf32>
    %87 = arith.mulf %84, %84 : vector<1x128xf32>
    %88 = arith.subf %86, %87 : vector<1x128xf32>
    %cst_29 = arith.constant 0.000000e+00 : f32
    %89 = vector.broadcast %cst_29 : f32 to vector<1x128xf32>
    %90 = arith.maximumf %88, %89 : vector<1x128xf32>
    %91 = vector.broadcast %84 : vector<1x128xf32> to vector<256x128xf32>
    %92 = arith.subf %16, %91 : vector<256x128xf32>
    %cst_30 = arith.constant 9.99999974E-6 : f32
    %93 = vector.broadcast %cst_30 : f32 to vector<1x128xf32>
    %94 = arith.addf %90, %93 : vector<1x128xf32>
    %95 = math.rsqrt %94 : vector<1x128xf32>
    %96 = vector.broadcast %95 : vector<1x128xf32> to vector<256x128xf32>
    %97 = arith.mulf %92, %96 : vector<256x128xf32>
    %cst_31 = arith.constant 2.000000e-01 : f32
    %98 = vector.broadcast %cst_31 : f32 to vector<256x128xf32>
    %99 = arith.mulf %98, %97 : vector<256x128xf32>
    %100 = arith.maximumf %97, %99 : vector<256x128xf32>
    %101 = vector.shape_cast %100 : vector<256x128xf32> to vector<16x16x128xf32>
    %c0_32 = arith.constant 0 : index
    %c0_33 = arith.constant 0 : index
    %c0_34 = arith.constant 0 : index
    %c0_35 = arith.constant 0 : index
    %102 = vector.load %arg6[%c0_32, %c0_33, %c0_34, %c0_35] : memref<1x16x16x128xf32, #tpu.memory_space<vmem>>, vector<1x16x16x128xf32>
    %103 = vector.shape_cast %102 : vector<1x16x16x128xf32> to vector<16x16x128xf32>
    %104 = vector.shape_cast %101 : vector<16x16x128xf32> to vector<1x16x16x128xf32>
    tpu.vector_store %arg6[%c0_32, %c0_33, %c0_34, %c0_35], %104 {strides = array<i32>} : memref<1x16x16x128xf32, #tpu.memory_space<vmem>>, vector<1x16x16x128xf32>,
    return
  }
  func.func @transform_0(%arg0: i32, %arg1: i32, %arg2: i32) -> (i32, i32, i32, i32) {
    %c0_i32 = arith.constant 0 : i32
    %c0_i32_0 = arith.constant 0 : i32
    %c0_i32_1 = arith.constant 0 : i32
    %c0_i32_2 = arith.constant 0 : i32
    return %arg0, %c0_i32, %c0_i32_0, %c0_i32_1 : i32, i32, i32, i32
  }
  func.func @transform_1(%arg0: i32, %arg1: i32, %arg2: i32) -> (i32, i32) {
    %c0_i32 = arith.constant 0 : i32
    %c0_i32_0 = arith.constant 0 : i32
    return %c0_i32, %arg2 : i32, i32
  }
  func.func @transform_2(%arg0: i32, %arg1: i32, %arg2: i32) -> (i32, i32) {
    %c0_i32 = arith.constant 0 : i32
    %c0_i32_0 = arith.constant 0 : i32
    return %c0_i32, %arg2 : i32, i32
  }
  func.func @transform_3(%arg0: i32, %arg1: i32, %arg2: i32) -> (i32, i32, i32, i32) {
    %c0_i32 = arith.constant 0 : i32
    %c0_i32_0 = arith.constant 0 : i32
    return %arg0, %arg1, %c0_i32, %arg2 : i32, i32, i32, i32
  }
}

module attributes {stable_mosaic.version = 11 : i64} {
  func.func @_conv_s2d_kernel(%arg0: i32, %arg1: i32, %arg2: i32, %arg3: memref<1x9x8x256xf32, #tpu.memory_space<vmem>>, %arg4: memref<512x128xf32, #tpu.memory_space<vmem>>, %arg5: memref<1x128xf32, #tpu.memory_space<vmem>>, %arg6: memref<1x8x8x128xf32, #tpu.memory_space<vmem>>) attributes {dimension_semantics = [#tpu.dimension_semantics<parallel>, #tpu.dimension_semantics<parallel>, #tpu.dimension_semantics<parallel>], iteration_bounds = array<i64: 2, 1, 1>, scalar_prefetch = 0 : i64, scratch_operands = 0 : i64, tpu.core_type = #tpu.core_type<tc>, window_params = [{transform_indices = @transform_0, window_bounds = array<i64: 1, 9, 8, 256>}, {transform_indices = @transform_1, window_bounds = array<i64: 512, 128>}, {transform_indices = @transform_2, window_bounds = array<i64: 1, 128>}, {transform_indices = @transform_3, window_bounds = array<i64: 1, 8, 8, 128>}]} {
    %c8_i32 = arith.constant 8 : i32
    %0 = arith.muli %arg1, %c8_i32 : i32
    %1 = tpu.assume_multiple %0, 8 : i32
    %c0 = arith.constant 0 : index
    %2 = arith.index_cast %1 : i32 to index
    %c0_0 = arith.constant 0 : index
    %c0_1 = arith.constant 0 : index
    %3 = vector.load %arg3[%c0, %2, %c0_0, %c0_1] : memref<1x9x8x256xf32, #tpu.memory_space<vmem>>, vector<1x8x8x256xf32>
    %4 = vector.shape_cast %3 : vector<1x8x8x256xf32> to vector<8x8x256xf32>
    %5 = vector.shape_cast %4 : vector<8x8x256xf32> to vector<64x256xf32>
    %c1_i32 = arith.constant 1 : i32
    %6 = arith.addi %1, %c1_i32 : i32
    %c0_2 = arith.constant 0 : index
    %7 = arith.index_cast %6 : i32 to index
    %c0_3 = arith.constant 0 : index
    %c0_4 = arith.constant 0 : index
    %8 = vector.load %arg3[%c0_2, %7, %c0_3, %c0_4] : memref<1x9x8x256xf32, #tpu.memory_space<vmem>>, vector<1x8x8x256xf32>
    %9 = vector.shape_cast %8 : vector<1x8x8x256xf32> to vector<8x8x256xf32>
    %10 = vector.shape_cast %9 : vector<8x8x256xf32> to vector<64x256xf32>
    %11 = tpu.concatenate %5, %10 in 1 : vector<64x256xf32>, vector<64x256xf32> -> vector<64x512xf32>
    %c0_5 = arith.constant 0 : index
    %c0_6 = arith.constant 0 : index
    %12 = vector.load %arg4[%c0_5, %c0_6] : memref<512x128xf32, #tpu.memory_space<vmem>>, vector<512x128xf32>
    %cst = arith.constant dense<0.000000e+00> : vector<64x128xf32>
    %13 = tpu.matmul %11, %12, %cst {dimension_numbers = #tpu.dot_dimension_numbers<[1], [0], [0], [1], [0, 0, 1, 1], [], []>} : vector<64x512xf32>, vector<512x128xf32>, vector<64x128xf32> -> vector<64x128xf32>
    %c0_7 = arith.constant 0 : index
    %c0_8 = arith.constant 0 : index
    %14 = vector.load %arg5[%c0_7, %c0_8] : memref<1x128xf32, #tpu.memory_space<vmem>>, vector<1x128xf32>
    %15 = vector.broadcast %14 : vector<1x128xf32> to vector<64x128xf32>
    %16 = arith.addf %13, %15 : vector<64x128xf32>
    %cst_9 = arith.constant 0.000000e+00 : f32
    %17 = vector.broadcast %cst_9 : f32 to vector<1x128xf32>
    %cst_10 = arith.constant 0.000000e+00 : f32
    %18 = vector.broadcast %cst_10 : f32 to vector<1x128xf32>
    %19 = vector.extract_strided_slice %16 {offsets = [0, 0], sizes = [8, 128], strides = [1, 1]} : vector<64x128xf32> to vector<8x128xf32>
    %cst_11 = arith.constant dense<0.000000e+00> : vector<128xf32>
    %20 = vector.multi_reduction <add>, %19, %cst_11 [0] : vector<8x128xf32> to vector<128xf32>
    %21 = vector.shape_cast %20 : vector<128xf32> to vector<1x128xf32>
    %22 = arith.addf %17, %21 : vector<1x128xf32>
    %23 = arith.mulf %19, %19 : vector<8x128xf32>
    %cst_12 = arith.constant dense<0.000000e+00> : vector<128xf32>
    %24 = vector.multi_reduction <add>, %23, %cst_12 [0] : vector<8x128xf32> to vector<128xf32>
    %25 = vector.shape_cast %24 : vector<128xf32> to vector<1x128xf32>
    %26 = arith.addf %18, %25 : vector<1x128xf32>
    %27 = vector.extract_strided_slice %16 {offsets = [8, 0], sizes = [8, 128], strides = [1, 1]} : vector<64x128xf32> to vector<8x128xf32>
    %cst_13 = arith.constant dense<0.000000e+00> : vector<128xf32>
    %28 = vector.multi_reduction <add>, %27, %cst_13 [0] : vector<8x128xf32> to vector<128xf32>
    %29 = vector.shape_cast %28 : vector<128xf32> to vector<1x128xf32>
    %30 = arith.addf %22, %29 : vector<1x128xf32>
    %31 = arith.mulf %27, %27 : vector<8x128xf32>
    %cst_14 = arith.constant dense<0.000000e+00> : vector<128xf32>
    %32 = vector.multi_reduction <add>, %31, %cst_14 [0] : vector<8x128xf32> to vector<128xf32>
    %33 = vector.shape_cast %32 : vector<128xf32> to vector<1x128xf32>
    %34 = arith.addf %26, %33 : vector<1x128xf32>
    %35 = vector.extract_strided_slice %16 {offsets = [16, 0], sizes = [8, 128], strides = [1, 1]} : vector<64x128xf32> to vector<8x128xf32>
    %cst_15 = arith.constant dense<0.000000e+00> : vector<128xf32>
    %36 = vector.multi_reduction <add>, %35, %cst_15 [0] : vector<8x128xf32> to vector<128xf32>
    %37 = vector.shape_cast %36 : vector<128xf32> to vector<1x128xf32>
    %38 = arith.addf %30, %37 : vector<1x128xf32>
    %39 = arith.mulf %35, %35 : vector<8x128xf32>
    %cst_16 = arith.constant dense<0.000000e+00> : vector<128xf32>
    %40 = vector.multi_reduction <add>, %39, %cst_16 [0] : vector<8x128xf32> to vector<128xf32>
    %41 = vector.shape_cast %40 : vector<128xf32> to vector<1x128xf32>
    %42 = arith.addf %34, %41 : vector<1x128xf32>
    %43 = vector.extract_strided_slice %16 {offsets = [24, 0], sizes = [8, 128], strides = [1, 1]} : vector<64x128xf32> to vector<8x128xf32>
    %cst_17 = arith.constant dense<0.000000e+00> : vector<128xf32>
    %44 = vector.multi_reduction <add>, %43, %cst_17 [0] : vector<8x128xf32> to vector<128xf32>
    %45 = vector.shape_cast %44 : vector<128xf32> to vector<1x128xf32>
    %46 = arith.addf %38, %45 : vector<1x128xf32>
    %47 = arith.mulf %43, %43 : vector<8x128xf32>
    %cst_18 = arith.constant dense<0.000000e+00> : vector<128xf32>
    %48 = vector.multi_reduction <add>, %47, %cst_18 [0] : vector<8x128xf32> to vector<128xf32>
    %49 = vector.shape_cast %48 : vector<128xf32> to vector<1x128xf32>
    %50 = arith.addf %42, %49 : vector<1x128xf32>
    %51 = vector.extract_strided_slice %16 {offsets = [32, 0], sizes = [8, 128], strides = [1, 1]} : vector<64x128xf32> to vector<8x128xf32>
    %cst_19 = arith.constant dense<0.000000e+00> : vector<128xf32>
    %52 = vector.multi_reduction <add>, %51, %cst_19 [0] : vector<8x128xf32> to vector<128xf32>
    %53 = vector.shape_cast %52 : vector<128xf32> to vector<1x128xf32>
    %54 = arith.addf %46, %53 : vector<1x128xf32>
    %55 = arith.mulf %51, %51 : vector<8x128xf32>
    %cst_20 = arith.constant dense<0.000000e+00> : vector<128xf32>
    %56 = vector.multi_reduction <add>, %55, %cst_20 [0] : vector<8x128xf32> to vector<128xf32>
    %57 = vector.shape_cast %56 : vector<128xf32> to vector<1x128xf32>
    %58 = arith.addf %50, %57 : vector<1x128xf32>
    %59 = vector.extract_strided_slice %16 {offsets = [40, 0], sizes = [8, 128], strides = [1, 1]} : vector<64x128xf32> to vector<8x128xf32>
    %cst_21 = arith.constant dense<0.000000e+00> : vector<128xf32>
    %60 = vector.multi_reduction <add>, %59, %cst_21 [0] : vector<8x128xf32> to vector<128xf32>
    %61 = vector.shape_cast %60 : vector<128xf32> to vector<1x128xf32>
    %62 = arith.addf %54, %61 : vector<1x128xf32>
    %63 = arith.mulf %59, %59 : vector<8x128xf32>
    %cst_22 = arith.constant dense<0.000000e+00> : vector<128xf32>
    %64 = vector.multi_reduction <add>, %63, %cst_22 [0] : vector<8x128xf32> to vector<128xf32>
    %65 = vector.shape_cast %64 : vector<128xf32> to vector<1x128xf32>
    %66 = arith.addf %58, %65 : vector<1x128xf32>
    %67 = vector.extract_strided_slice %16 {offsets = [48, 0], sizes = [8, 128], strides = [1, 1]} : vector<64x128xf32> to vector<8x128xf32>
    %cst_23 = arith.constant dense<0.000000e+00> : vector<128xf32>
    %68 = vector.multi_reduction <add>, %67, %cst_23 [0] : vector<8x128xf32> to vector<128xf32>
    %69 = vector.shape_cast %68 : vector<128xf32> to vector<1x128xf32>
    %70 = arith.addf %62, %69 : vector<1x128xf32>
    %71 = arith.mulf %67, %67 : vector<8x128xf32>
    %cst_24 = arith.constant dense<0.000000e+00> : vector<128xf32>
    %72 = vector.multi_reduction <add>, %71, %cst_24 [0] : vector<8x128xf32> to vector<128xf32>
    %73 = vector.shape_cast %72 : vector<128xf32> to vector<1x128xf32>
    %74 = arith.addf %66, %73 : vector<1x128xf32>
    %75 = vector.extract_strided_slice %16 {offsets = [56, 0], sizes = [8, 128], strides = [1, 1]} : vector<64x128xf32> to vector<8x128xf32>
    %cst_25 = arith.constant dense<0.000000e+00> : vector<128xf32>
    %76 = vector.multi_reduction <add>, %75, %cst_25 [0] : vector<8x128xf32> to vector<128xf32>
    %77 = vector.shape_cast %76 : vector<128xf32> to vector<1x128xf32>
    %78 = arith.addf %70, %77 : vector<1x128xf32>
    %79 = arith.mulf %75, %75 : vector<8x128xf32>
    %cst_26 = arith.constant dense<0.000000e+00> : vector<128xf32>
    %80 = vector.multi_reduction <add>, %79, %cst_26 [0] : vector<8x128xf32> to vector<128xf32>
    %81 = vector.shape_cast %80 : vector<128xf32> to vector<1x128xf32>
    %82 = arith.addf %74, %81 : vector<1x128xf32>
    %cst_27 = arith.constant 1.562500e-02 : f32
    %83 = vector.broadcast %cst_27 : f32 to vector<1x128xf32>
    %84 = arith.mulf %78, %83 : vector<1x128xf32>
    %cst_28 = arith.constant 1.562500e-02 : f32
    %85 = vector.broadcast %cst_28 : f32 to vector<1x128xf32>
    %86 = arith.mulf %82, %85 : vector<1x128xf32>
    %87 = arith.mulf %84, %84 : vector<1x128xf32>
    %88 = arith.subf %86, %87 : vector<1x128xf32>
    %cst_29 = arith.constant 0.000000e+00 : f32
    %89 = vector.broadcast %cst_29 : f32 to vector<1x128xf32>
    %90 = arith.maximumf %88, %89 : vector<1x128xf32>
    %91 = vector.broadcast %84 : vector<1x128xf32> to vector<64x128xf32>
    %92 = arith.subf %16, %91 : vector<64x128xf32>
    %cst_30 = arith.constant 9.99999974E-6 : f32
    %93 = vector.broadcast %cst_30 : f32 to vector<1x128xf32>
    %94 = arith.addf %90, %93 : vector<1x128xf32>
    %95 = math.rsqrt %94 : vector<1x128xf32>
    %96 = vector.broadcast %95 : vector<1x128xf32> to vector<64x128xf32>
    %97 = arith.mulf %92, %96 : vector<64x128xf32>
    %cst_31 = arith.constant 2.000000e-01 : f32
    %98 = vector.broadcast %cst_31 : f32 to vector<64x128xf32>
    %99 = arith.mulf %98, %97 : vector<64x128xf32>
    %100 = arith.maximumf %97, %99 : vector<64x128xf32>
    %101 = vector.shape_cast %100 : vector<64x128xf32> to vector<8x8x128xf32>
    %c0_32 = arith.constant 0 : index
    %c0_33 = arith.constant 0 : index
    %c0_34 = arith.constant 0 : index
    %c0_35 = arith.constant 0 : index
    %102 = vector.load %arg6[%c0_32, %c0_33, %c0_34, %c0_35] : memref<1x8x8x128xf32, #tpu.memory_space<vmem>>, vector<1x8x8x128xf32>
    %103 = vector.shape_cast %102 : vector<1x8x8x128xf32> to vector<8x8x128xf32>
    %104 = vector.shape_cast %101 : vector<8x8x128xf32> to vector<1x8x8x128xf32>
    tpu.vector_store %arg6[%c0_32, %c0_33, %c0_34, %c0_35], %104 {strides = array<i32>} : memref<1x8x8x128xf32, #tpu.memory_space<vmem>>, vector<1x8x8x128xf32>,
    return
  }
  func.func @transform_0(%arg0: i32, %arg1: i32, %arg2: i32) -> (i32, i32, i32, i32) {
    %c0_i32 = arith.constant 0 : i32
    %c0_i32_0 = arith.constant 0 : i32
    %c0_i32_1 = arith.constant 0 : i32
    %c0_i32_2 = arith.constant 0 : i32
    return %arg0, %c0_i32, %c0_i32_0, %c0_i32_1 : i32, i32, i32, i32
  }
  func.func @transform_1(%arg0: i32, %arg1: i32, %arg2: i32) -> (i32, i32) {
    %c0_i32 = arith.constant 0 : i32
    %c0_i32_0 = arith.constant 0 : i32
    return %c0_i32, %arg2 : i32, i32
  }
  func.func @transform_2(%arg0: i32, %arg1: i32, %arg2: i32) -> (i32, i32) {
    %c0_i32 = arith.constant 0 : i32
    %c0_i32_0 = arith.constant 0 : i32
    return %c0_i32, %arg2 : i32, i32
  }
  func.func @transform_3(%arg0: i32, %arg1: i32, %arg2: i32) -> (i32, i32, i32, i32) {
    %c0_i32 = arith.constant 0 : i32
    %c0_i32_0 = arith.constant 0 : i32
    return %arg0, %arg1, %c0_i32, %arg2 : i32, i32, i32, i32
  }
}

module attributes {stable_mosaic.version = 11 : i64} {
  func.func @_conv_s2d_kernel(%arg0: i32, %arg1: i32, %arg2: i32, %arg3: memref<1x5x4x512xf32, #tpu.memory_space<vmem>>, %arg4: memref<1024x128xf32, #tpu.memory_space<vmem>>, %arg5: memref<1x128xf32, #tpu.memory_space<vmem>>, %arg6: memref<1x4x4x128xf32, #tpu.memory_space<vmem>>) attributes {dimension_semantics = [#tpu.dimension_semantics<parallel>, #tpu.dimension_semantics<parallel>, #tpu.dimension_semantics<parallel>], iteration_bounds = array<i64: 2, 1, 1>, scalar_prefetch = 0 : i64, scratch_operands = 0 : i64, tpu.core_type = #tpu.core_type<tc>, window_params = [{transform_indices = @transform_0, window_bounds = array<i64: 1, 5, 4, 512>}, {transform_indices = @transform_1, window_bounds = array<i64: 1024, 128>}, {transform_indices = @transform_2, window_bounds = array<i64: 1, 128>}, {transform_indices = @transform_3, window_bounds = array<i64: 1, 4, 4, 128>}]} {
    %c4_i32 = arith.constant 4 : i32
    %0 = arith.muli %arg1, %c4_i32 : i32
    %1 = tpu.assume_multiple %0, 4 : i32
    %c0 = arith.constant 0 : index
    %2 = arith.index_cast %1 : i32 to index
    %c0_0 = arith.constant 0 : index
    %c0_1 = arith.constant 0 : index
    %3 = vector.load %arg3[%c0, %2, %c0_0, %c0_1] : memref<1x5x4x512xf32, #tpu.memory_space<vmem>>, vector<1x4x4x512xf32>
    %4 = vector.shape_cast %3 : vector<1x4x4x512xf32> to vector<4x4x512xf32>
    %5 = vector.shape_cast %4 : vector<4x4x512xf32> to vector<16x512xf32>
    %c1_i32 = arith.constant 1 : i32
    %6 = arith.addi %1, %c1_i32 : i32
    %c0_2 = arith.constant 0 : index
    %7 = arith.index_cast %6 : i32 to index
    %c0_3 = arith.constant 0 : index
    %c0_4 = arith.constant 0 : index
    %8 = vector.load %arg3[%c0_2, %7, %c0_3, %c0_4] : memref<1x5x4x512xf32, #tpu.memory_space<vmem>>, vector<1x4x4x512xf32>
    %9 = vector.shape_cast %8 : vector<1x4x4x512xf32> to vector<4x4x512xf32>
    %10 = vector.shape_cast %9 : vector<4x4x512xf32> to vector<16x512xf32>
    %11 = tpu.concatenate %5, %10 in 1 : vector<16x512xf32>, vector<16x512xf32> -> vector<16x1024xf32>
    %c0_5 = arith.constant 0 : index
    %c0_6 = arith.constant 0 : index
    %12 = vector.load %arg4[%c0_5, %c0_6] : memref<1024x128xf32, #tpu.memory_space<vmem>>, vector<1024x128xf32>
    %cst = arith.constant dense<0.000000e+00> : vector<16x128xf32>
    %13 = tpu.matmul %11, %12, %cst {dimension_numbers = #tpu.dot_dimension_numbers<[1], [0], [0], [1], [0, 0, 1, 1], [], []>} : vector<16x1024xf32>, vector<1024x128xf32>, vector<16x128xf32> -> vector<16x128xf32>
    %c0_7 = arith.constant 0 : index
    %c0_8 = arith.constant 0 : index
    %14 = vector.load %arg5[%c0_7, %c0_8] : memref<1x128xf32, #tpu.memory_space<vmem>>, vector<1x128xf32>
    %15 = vector.broadcast %14 : vector<1x128xf32> to vector<16x128xf32>
    %16 = arith.addf %13, %15 : vector<16x128xf32>
    %cst_9 = arith.constant 0.000000e+00 : f32
    %17 = vector.broadcast %cst_9 : f32 to vector<1x128xf32>
    %cst_10 = arith.constant 0.000000e+00 : f32
    %18 = vector.broadcast %cst_10 : f32 to vector<1x128xf32>
    %19 = vector.extract_strided_slice %16 {offsets = [0, 0], sizes = [8, 128], strides = [1, 1]} : vector<16x128xf32> to vector<8x128xf32>
    %cst_11 = arith.constant dense<0.000000e+00> : vector<128xf32>
    %20 = vector.multi_reduction <add>, %19, %cst_11 [0] : vector<8x128xf32> to vector<128xf32>
    %21 = vector.shape_cast %20 : vector<128xf32> to vector<1x128xf32>
    %22 = arith.addf %17, %21 : vector<1x128xf32>
    %23 = arith.mulf %19, %19 : vector<8x128xf32>
    %cst_12 = arith.constant dense<0.000000e+00> : vector<128xf32>
    %24 = vector.multi_reduction <add>, %23, %cst_12 [0] : vector<8x128xf32> to vector<128xf32>
    %25 = vector.shape_cast %24 : vector<128xf32> to vector<1x128xf32>
    %26 = arith.addf %18, %25 : vector<1x128xf32>
    %27 = vector.extract_strided_slice %16 {offsets = [8, 0], sizes = [8, 128], strides = [1, 1]} : vector<16x128xf32> to vector<8x128xf32>
    %cst_13 = arith.constant dense<0.000000e+00> : vector<128xf32>
    %28 = vector.multi_reduction <add>, %27, %cst_13 [0] : vector<8x128xf32> to vector<128xf32>
    %29 = vector.shape_cast %28 : vector<128xf32> to vector<1x128xf32>
    %30 = arith.addf %22, %29 : vector<1x128xf32>
    %31 = arith.mulf %27, %27 : vector<8x128xf32>
    %cst_14 = arith.constant dense<0.000000e+00> : vector<128xf32>
    %32 = vector.multi_reduction <add>, %31, %cst_14 [0] : vector<8x128xf32> to vector<128xf32>
    %33 = vector.shape_cast %32 : vector<128xf32> to vector<1x128xf32>
    %34 = arith.addf %26, %33 : vector<1x128xf32>
    %cst_15 = arith.constant 6.250000e-02 : f32
    %35 = vector.broadcast %cst_15 : f32 to vector<1x128xf32>
    %36 = arith.mulf %30, %35 : vector<1x128xf32>
    %cst_16 = arith.constant 6.250000e-02 : f32
    %37 = vector.broadcast %cst_16 : f32 to vector<1x128xf32>
    %38 = arith.mulf %34, %37 : vector<1x128xf32>
    %39 = arith.mulf %36, %36 : vector<1x128xf32>
    %40 = arith.subf %38, %39 : vector<1x128xf32>
    %cst_17 = arith.constant 0.000000e+00 : f32
    %41 = vector.broadcast %cst_17 : f32 to vector<1x128xf32>
    %42 = arith.maximumf %40, %41 : vector<1x128xf32>
    %43 = vector.broadcast %36 : vector<1x128xf32> to vector<16x128xf32>
    %44 = arith.subf %16, %43 : vector<16x128xf32>
    %cst_18 = arith.constant 9.99999974E-6 : f32
    %45 = vector.broadcast %cst_18 : f32 to vector<1x128xf32>
    %46 = arith.addf %42, %45 : vector<1x128xf32>
    %47 = math.rsqrt %46 : vector<1x128xf32>
    %48 = vector.broadcast %47 : vector<1x128xf32> to vector<16x128xf32>
    %49 = arith.mulf %44, %48 : vector<16x128xf32>
    %cst_19 = arith.constant 2.000000e-01 : f32
    %50 = vector.broadcast %cst_19 : f32 to vector<16x128xf32>
    %51 = arith.mulf %50, %49 : vector<16x128xf32>
    %52 = arith.maximumf %49, %51 : vector<16x128xf32>
    %53 = vector.shape_cast %52 : vector<16x128xf32> to vector<4x4x128xf32>
    %c0_20 = arith.constant 0 : index
    %c0_21 = arith.constant 0 : index
    %c0_22 = arith.constant 0 : index
    %c0_23 = arith.constant 0 : index
    %54 = vector.load %arg6[%c0_20, %c0_21, %c0_22, %c0_23] : memref<1x4x4x128xf32, #tpu.memory_space<vmem>>, vector<1x4x4x128xf32>
    %55 = vector.shape_cast %54 : vector<1x4x4x128xf32> to vector<4x4x128xf32>
    %56 = vector.shape_cast %53 : vector<4x4x128xf32> to vector<1x4x4x128xf32>
    tpu.vector_store %arg6[%c0_20, %c0_21, %c0_22, %c0_23], %56 {strides = array<i32>} : memref<1x4x4x128xf32, #tpu.memory_space<vmem>>, vector<1x4x4x128xf32>,
    return
  }
  func.func @transform_0(%arg0: i32, %arg1: i32, %arg2: i32) -> (i32, i32, i32, i32) {
    %c0_i32 = arith.constant 0 : i32
    %c0_i32_0 = arith.constant 0 : i32
    %c0_i32_1 = arith.constant 0 : i32
    %c0_i32_2 = arith.constant 0 : i32
    return %arg0, %c0_i32, %c0_i32_0, %c0_i32_1 : i32, i32, i32, i32
  }
  func.func @transform_1(%arg0: i32, %arg1: i32, %arg2: i32) -> (i32, i32) {
    %c0_i32 = arith.constant 0 : i32
    %c0_i32_0 = arith.constant 0 : i32
    return %c0_i32, %arg2 : i32, i32
  }
  func.func @transform_2(%arg0: i32, %arg1: i32, %arg2: i32) -> (i32, i32) {
    %c0_i32 = arith.constant 0 : i32
    %c0_i32_0 = arith.constant 0 : i32
    return %c0_i32, %arg2 : i32, i32
  }
  func.func @transform_3(%arg0: i32, %arg1: i32, %arg2: i32) -> (i32, i32, i32, i32) {
    %c0_i32 = arith.constant 0 : i32
    %c0_i32_0 = arith.constant 0 : i32
    return %arg0, %arg1, %c0_i32, %arg2 : i32, i32, i32, i32
  }
}

module attributes {stable_mosaic.version = 11 : i64} {
  func.func @_conv_s2d_kernel(%arg0: i32, %arg1: i32, %arg2: i32, %arg3: memref<1x2x1x1024xf32, #tpu.memory_space<vmem>>, %arg4: memref<2048x128xf32, #tpu.memory_space<vmem>>, %arg5: memref<1x128xf32, #tpu.memory_space<vmem>>, %arg6: memref<1x1x1x128xf32, #tpu.memory_space<vmem>>) attributes {dimension_semantics = [#tpu.dimension_semantics<parallel>, #tpu.dimension_semantics<parallel>, #tpu.dimension_semantics<parallel>], iteration_bounds = array<i64: 2, 1, 1>, scalar_prefetch = 0 : i64, scratch_operands = 0 : i64, tpu.core_type = #tpu.core_type<tc>, window_params = [{transform_indices = @transform_0, window_bounds = array<i64: 1, 2, 1, 1024>}, {transform_indices = @transform_1, window_bounds = array<i64: 2048, 128>}, {transform_indices = @transform_2, window_bounds = array<i64: 1, 128>}, {transform_indices = @transform_3, window_bounds = array<i64: 1, 1, 1, 128>}]} {
    %c1_i32 = arith.constant 1 : i32
    %0 = arith.muli %arg1, %c1_i32 : i32
    %1 = tpu.assume_multiple %0, 1 : i32
    %c0 = arith.constant 0 : index
    %2 = arith.index_cast %1 : i32 to index
    %c0_0 = arith.constant 0 : index
    %c0_1 = arith.constant 0 : index
    %3 = vector.load %arg3[%c0, %2, %c0_0, %c0_1] : memref<1x2x1x1024xf32, #tpu.memory_space<vmem>>, vector<1x1x1x1024xf32>
    %4 = vector.shape_cast %3 : vector<1x1x1x1024xf32> to vector<1x1x1024xf32>
    %5 = vector.shape_cast %4 : vector<1x1x1024xf32> to vector<1x1024xf32>
    %c1_i32_2 = arith.constant 1 : i32
    %6 = arith.addi %1, %c1_i32_2 : i32
    %c0_3 = arith.constant 0 : index
    %7 = arith.index_cast %6 : i32 to index
    %c0_4 = arith.constant 0 : index
    %c0_5 = arith.constant 0 : index
    %8 = vector.load %arg3[%c0_3, %7, %c0_4, %c0_5] : memref<1x2x1x1024xf32, #tpu.memory_space<vmem>>, vector<1x1x1x1024xf32>
    %9 = vector.shape_cast %8 : vector<1x1x1x1024xf32> to vector<1x1x1024xf32>
    %10 = vector.shape_cast %9 : vector<1x1x1024xf32> to vector<1x1024xf32>
    %11 = tpu.concatenate %5, %10 in 1 : vector<1x1024xf32>, vector<1x1024xf32> -> vector<1x2048xf32>
    %c0_6 = arith.constant 0 : index
    %c0_7 = arith.constant 0 : index
    %12 = vector.load %arg4[%c0_6, %c0_7] : memref<2048x128xf32, #tpu.memory_space<vmem>>, vector<2048x128xf32>
    %cst = arith.constant dense<0.000000e+00> : vector<1x128xf32>
    %13 = tpu.matmul %11, %12, %cst {dimension_numbers = #tpu.dot_dimension_numbers<[1], [0], [0], [1], [0, 0, 1, 1], [], []>} : vector<1x2048xf32>, vector<2048x128xf32>, vector<1x128xf32> -> vector<1x128xf32>
    %c0_8 = arith.constant 0 : index
    %c0_9 = arith.constant 0 : index
    %14 = vector.load %arg5[%c0_8, %c0_9] : memref<1x128xf32, #tpu.memory_space<vmem>>, vector<1x128xf32>
    %15 = arith.addf %13, %14 : vector<1x128xf32>
    %16 = vector.shape_cast %15 : vector<1x128xf32> to vector<1x1x128xf32>
    %c0_10 = arith.constant 0 : index
    %c0_11 = arith.constant 0 : index
    %c0_12 = arith.constant 0 : index
    %c0_13 = arith.constant 0 : index
    %17 = vector.load %arg6[%c0_10, %c0_11, %c0_12, %c0_13] : memref<1x1x1x128xf32, #tpu.memory_space<vmem>>, vector<1x1x1x128xf32>
    %18 = vector.shape_cast %17 : vector<1x1x1x128xf32> to vector<1x1x128xf32>
    %19 = vector.shape_cast %16 : vector<1x1x128xf32> to vector<1x1x1x128xf32>
    tpu.vector_store %arg6[%c0_10, %c0_11, %c0_12, %c0_13], %19 {strides = array<i32>} : memref<1x1x1x128xf32, #tpu.memory_space<vmem>>, vector<1x1x1x128xf32>,
    return
  }
  func.func @transform_0(%arg0: i32, %arg1: i32, %arg2: i32) -> (i32, i32, i32, i32) {
    %c0_i32 = arith.constant 0 : i32
    %c0_i32_0 = arith.constant 0 : i32
    %c0_i32_1 = arith.constant 0 : i32
    %c0_i32_2 = arith.constant 0 : i32
    return %arg0, %c0_i32, %c0_i32_0, %c0_i32_1 : i32, i32, i32, i32
  }
  func.func @transform_1(%arg0: i32, %arg1: i32, %arg2: i32) -> (i32, i32) {
    %c0_i32 = arith.constant 0 : i32
    %c0_i32_0 = arith.constant 0 : i32
    return %c0_i32, %arg2 : i32, i32
  }
  func.func @transform_2(%arg0: i32, %arg1: i32, %arg2: i32) -> (i32, i32) {
    %c0_i32 = arith.constant 0 : i32
    %c0_i32_0 = arith.constant 0 : i32
    return %c0_i32, %arg2 : i32, i32
  }
  func.func @transform_3(%arg0: i32, %arg1: i32, %arg2: i32) -> (i32, i32, i32, i32) {
    %c0_i32 = arith.constant 0 : i32
    %c0_i32_0 = arith.constant 0 : i32
    return %arg0, %arg1, %c0_i32, %arg2 : i32, i32, i32, i32
  }
}

</mosaic_0001>

<llo_original>
// kernel: discriminator_forward.5
$region0: #{discriminator_forward.5}
  #allocation0 [shape = 'u32[]', space=smem, size = 0x4, offset = 0x4, fixed_abs, tag = 'smem constant byte address 0x4 - core index']
  #allocation1 [shape = 'u32[72,128]{1,0:T(1,128)}', space=vmem, size = 0x9000, scoped, tag = 'internal scratch']
  %s0 = inlined_call_operand.vmem [shape: f32[2,33,32,128], index: 0, kind: input, shape index: {}]
  %s1 = inlined_call_operand.vmem [shape: f32[256,128], index: 1, kind: input, shape index: {}]
  %s2 = inlined_call_operand.vmem [shape: f32[1,128], index: 2, kind: input, shape index: {}]
  %s3 = inlined_call_operand.vmem [shape: f32[2,32,32,128], index: 3, kind: output, shape index: {}]
  %s4 = sld [smem:[#allocation0]]
  $region45: #{discriminator_forward.5} parent=0
    _
  %s6 = ssub.s32 1, %s4
  %s7 = scalar_select 0, %s6, %s4
  loop: start=0, step=1, limit=4
  $region2: #{discriminator_forward.5} parent=0 // loop_pre_header
    _
  $region3: #{discriminator_forward.5} parent=0 // loop_header
    %s9 = sphi 0, %s13
    %p10 = scmp.ge.s32.totalorder %s9, 4
    %s16 = sphi 0, %s35
    %s17 = sphi 0, %s31
    %s18 = sphi 0, %s27
    %s19 = sphi 0, %s16
    %s20 = sphi 0, %s17
    %s21 = sphi 0, %s18
    %s22 = sphi 0, %s19
    %s23 = sphi 0, %s20
    %s24 = sphi 0, %s21
    %s38 = sphi 0, %s40
    %s41 = sphi 0, %s38
    %s42 = sphi 0, %s41
    %s58 = sphi 0, %s42
    %s64 = sphi 0, %s66
    %s67 = sphi 0, %s64
    %s68 = sphi 0, %s67
    %s84 = sphi 0, %s68
    %s90 = sphi 0, %s92
    %s93 = sphi 0, %s90
    %s94 = sphi 0, %s93
    %s110 = sphi 0, %s94
    %s120 = sphi 0, %s122
    %s123 = sphi 0, %s120
    %s124 = sphi 0, %s123
    %s140 = sphi 0, %s124
  $region4: #{discriminator_forward.5} parent=0 // loop_header_branch
    %12 = sbr.rel (%p10) target = $region8
  $region5: #{discriminator_forward.5} parent=0 // loop_body
    %s14 = ssub.s32 %s9, 1
    %s15 = ssub.s32 %s9, 2
    %s25 = sadd.s32 1, %s18
    %p26 = scmp.ge.s32.totalorder %s25, 1
    %s27 = scalar_select %p26, 0, %s25
    %s28 = sadd.s32 1, %s17
    %s29 = scalar_select %p26, %s28, %s17
    %p30 = scmp.ge.s32.totalorder %s29, 1
    %s31 = scalar_select %p30, 0, %s29
    %s32 = sadd.s32 1, %s16
    %s33 = scalar_select %p30, %s32, %s16
    %p34 = scmp.ge.s32.totalorder %s33, 2
    %s35 = scalar_select %p34, 0, %s33
    %s36 = ssub.s32 %s16, %s35
    %p37 = scmp.eq.s32.totalorder %s36, 0
    %s39 = sadd.s32 %s38, 1
    %s40 = scalar_select %p37, %s38, %s39
    %p43 = pneg %p37
    %p44 = scmp.eq.s32.totalorder %s9, 1
    %p45 = por %p43, %p44
    %p46 = scmp.ne.s32.totalorder %s38, %s41
    %p47 = scmp.eq.s32.totalorder %s9, 0
    %p48 = por %p46, %p47
    %p49 = scmp.ne.s32.totalorder %s38, %s41
    %p50 = scmp.eq.s32.totalorder %s14, 1
    %p51 = por %p49, %p50
    %p52 = scmp.ne.s32.totalorder %s41, %s42
    %p53 = scmp.eq.s32.totalorder %s14, 0
    %p54 = por %p52, %p53
    %p55 = scmp.ne.s32.totalorder %s41, %s42
    %p56 = scmp.eq.s32.totalorder %s15, 1
    %p57 = por %p55, %p56
    %p59 = scmp.ne.s32.totalorder %s42, %s58
    %p60 = scmp.eq.s32.totalorder %s15, 0
    %p61 = por %p59, %p60
    %s62 = ssub.s32 %s18, %s27
    %p63 = scmp.eq.s32.totalorder %s62, 0
    %s65 = sadd.s32 %s64, 1
    %s66 = scalar_select %p63, %s64, %s65
    %p69 = pneg %p63
    %p70 = scmp.eq.s32.totalorder %s9, 1
    %p71 = por %p69, %p70
    %p72 = scmp.ne.s32.totalorder %s64, %s67
    %p73 = scmp.eq.s32.totalorder %s9, 0
    %p74 = por %p72, %p73
    %p75 = scmp.ne.s32.totalorder %s64, %s67
    %p76 = scmp.eq.s32.totalorder %s14, 1
    %p77 = por %p75, %p76
    %p78 = scmp.ne.s32.totalorder %s67, %s68
    %p79 = scmp.eq.s32.totalorder %s14, 0
    %p80 = por %p78, %p79
    %p81 = scmp.ne.s32.totalorder %s67, %s68
    %p82 = scmp.eq.s32.totalorder %s15, 1
    %p83 = por %p81, %p82
    %p85 = scmp.ne.s32.totalorder %s68, %s84
    %p86 = scmp.eq.s32.totalorder %s15, 0
    %p87 = por %p85, %p86
    %s88 = ssub.s32 %s18, %s27
    %p89 = scmp.eq.s32.totalorder %s88, 0
    %s91 = sadd.s32 %s90, 1
    %s92 = scalar_select %p89, %s90, %s91
    %p95 = pneg %p89
    %p96 = scmp.eq.s32.totalorder %s9, 1
    %p97 = por %p95, %p96
    %p98 = scmp.ne.s32.totalorder %s90, %s93
    %p99 = scmp.eq.s32.totalorder %s9, 0
    %p100 = por %p98, %p99
    %p101 = scmp.ne.s32.totalorder %s90, %s93
    %p102 = scmp.eq.s32.totalorder %s14, 1
    %p103 = por %p101, %p102
    %p104 = scmp.ne.s32.totalorder %s93, %s94
    %p105 = scmp.eq.s32.totalorder %s14, 0
    %p106 = por %p104, %p105
    %p107 = scmp.ne.s32.totalorder %s93, %s94
    %p108 = scmp.eq.s32.totalorder %s15, 1
    %p109 = por %p107, %p108
    %p111 = scmp.ne.s32.totalorder %s94, %s110
    %p112 = scmp.eq.s32.totalorder %s15, 0
    %p113 = por %p111, %p112
    %s114 = ssub.s32 %s16, %s35
    %s115 = ssub.s32 %s17, %s31
    %s116 = sor.u32 %s114, %s115
    %s117 = ssub.s32 %s18, %s27
    %s118 = sor.u32 %s116, %s117
    %p119 = scmp.eq.s32.totalorder %s118, 0
    %s121 = sadd.s32 %s120, 1
    %s122 = scalar_select %p119, %s120, %s121
    %p125 = pneg %p119
    %p126 = scmp.eq.s32.totalorder %s9, 1
    %p127 = por %p125, %p126
    %p128 = scmp.ne.s32.totalorder %s120, %s123
    %p129 = scmp.eq.s32.totalorder %s9, 0
    %p130 = por %p128, %p129
    %p131 = scmp.ne.s32.totalorder %s120, %s123
    %p132 = scmp.eq.s32.totalorder %s14, 1
    %p133 = por %p131, %p132
    %p134 = scmp.ne.s32.totalorder %s123, %s124
    %p135 = scmp.eq.s32.totalorder %s14, 0
    %p136 = por %p134, %p135
    %p137 = scmp.ne.s32.totalorder %s123, %s124
    %p138 = scmp.eq.s32.totalorder %s15, 1
    %p139 = por %p137, %p138
    %p141 = scmp.ne.s32.totalorder %s124, %s140
    %p142 = scmp.eq.s32.totalorder %s15, 0
    %p143 = por %p141, %p142
    %p144 = scmp.le.s32.totalorder 1, %s9
    %p145 = scmp.lt.s32.totalorder %s9, 3
    %p146 = pnand %p144, %p145
    %p147 = pneg %p146
    // Predicated region
    $region9: #{discriminator_forward.5} parent=5 // pred_check
      _
    $region10: #{discriminator_forward.5} parent=5 // pred_check_branch
      %149 = sbr.rel (%p146) target = $region12
    $region11: #{discriminator_forward.5} parent=5 // pred_region
      %s150 = ssub.s32 %s9, 1
      // Predicated region
      $region13: #{discriminator_forward.5} parent=11 // pred_check
        %p151 = pneg %p80
      $region14: #{discriminator_forward.5} parent=11 // pred_check_branch
        %153 = sbr.rel (%p151) target = $region16
      $region15: #{discriminator_forward.5} parent=11 // pred_region
        %p154 = scmp.lt.s32.totalorder %s21, 0
        %s155 = scalar_select %p154, %s21, 0
        %s156 = smul.addr %s155, 8
        %s157 = scalar_lea.vmem %s1, %s156
      $region16: #{discriminator_forward.5} parent=11 // pred_fallthru
        _
      // Predicated region
      $region17: #{discriminator_forward.5} parent=11 // pred_check
        %p158 = pneg %p106
      $region18: #{discriminator_forward.5} parent=11 // pred_check_branch
        %160 = sbr.rel (%p158) target = $region20
      $region19: #{discriminator_forward.5} parent=11 // pred_region
        %p161 = scmp.lt.s32.totalorder %s21, 0
        %s162 = scalar_select %p161, %s21, 0
        %s163 = scalar_lea.vmem %s2, %s162
      $region20: #{discriminator_forward.5} parent=11 // pred_fallthru
        _
    $region12: #{discriminator_forward.5} parent=5 // pred_fallthru
      _
    %p164 = scmp.lt.s32.totalorder %s9, 2
    // Predicated region
    $region21: #{discriminator_forward.5} parent=5 // pred_check
      %p165 = pneg %p164
    $region22: #{discriminator_forward.5} parent=5 // pred_check_branch
      %167 = sbr.rel (%p165) target = $region24
    $region23: #{discriminator_forward.5} parent=5 // pred_region
      // Predicated region
      $region25: #{discriminator_forward.5} parent=23 // pred_check
        %p168 = pneg %p48
      $region26: #{discriminator_forward.5} parent=23 // pred_check_branch
        %170 = sbr.rel (%p168) target = $region28
      $region27: #{discriminator_forward.5} parent=23 // pred_region
        %p171 = scmp.lt.s32.totalorder %s16, 1
        %s172 = scalar_select %p171, %s16, 1
        %s173 = smul.addr %s172, 132
        %s174 = smul.addr %s173, 8
        %s175 = scalar_lea.vmem %s0, %s174
      $region28: #{discriminator_forward.5} parent=23 // pred_fallthru
        _
    $region24: #{discriminator_forward.5} parent=5 // pred_fallthru
      _
    %p176 = scmp.le.s32.totalorder 1, %s9
    %p177 = scmp.lt.s32.totalorder %s9, 3
    %p178 = pnand %p176, %p177
    %p179 = pneg %p178
    // Predicated region
    $region29: #{discriminator_forward.5} parent=5 // pred_check
      _
    $region30: #{discriminator_forward.5} parent=5 // pred_check_branch
      %181 = sbr.rel (%p178) target = $region32
    $region31: #{discriminator_forward.5} parent=5 // pred_region
      %s182 = ssub.s32 %s9, 1
      %p183 = scmp.lt.s32.totalorder %s19, 1
      %s184 = scalar_select %p183, %s19, 1
      %s185 = smul.addr %s184, 132
      %s186 = smul.addr %s185, 8
      %s187 = scalar_lea.vmem %s0, %s186
      %p188 = pneg %p54
      %p189 = pneg %p51
      %p190 = scmp.lt.s32.totalorder %s21, 0
      %s191 = scalar_select %p190, %s21, 0
      %s192 = smul.addr %s191, 8
      %s193 = scalar_lea.vmem %s1, %s192
      %p194 = pneg %p80
      %p195 = pneg %p77
      %p196 = scmp.lt.s32.totalorder %s21, 0
      %s197 = scalar_select %p196, %s21, 0
      %s198 = scalar_lea.vmem %s2, %s197
      %p199 = pneg %p106
      %p200 = pneg %p103
      %p201 = pneg %p136
      %p202 = pneg %p133
      %s203 = smul.u32 32, %s20
      %p204 = scmp.lt.s32.totalorder %s19, 1
      %s205 = scalar_select %p204, %s19, 1
      %p206 = scmp.lt.s32.totalorder %s203, 31
      %s207 = scalar_select %p206, %s203, 31
      %p208 = scmp.lt.s32.totalorder %s21, 0
      %s209 = scalar_select %p208, %s21, 0
      %s210 = smul.addr %s207, 4
      %s211 = sadd.s32 %s209, %s210
      %s212 = smul.addr %s205, 128
      %s213 = sadd.s32 %s211, %s212
      %s214 = smul.addr %s213, 8
      %s215 = scalar_lea.vmem %s3, %s214
      %p216 = scmp.lt.s32.totalorder %s19, 1
      %s217 = scalar_select %p216, %s19, 1
      %s218 = smul.addr %s217, 132
      %s219 = smul.addr %s218, 8
      %s220 = scalar_lea.vmem %s0, %s219
      %p221 = scmp.lt.s32.totalorder %s21, 0
      %s222 = scalar_select %p221, %s21, 0
      %s223 = smul.addr %s222, 8
      %s224 = scalar_lea.vmem %s1, %s223
      %p225 = scmp.lt.s32.totalorder %s21, 0
      %s226 = scalar_select %p225, %s21, 0
      %s227 = scalar_lea.vmem %s2, %s226
      %s228 = smul.u32 32, %s20
      %p229 = scmp.lt.s32.totalorder %s19, 1
      %s230 = scalar_select %p229, %s19, 1
      %p231 = scmp.lt.s32.totalorder %s228, 31
      %s232 = scalar_select %p231, %s228, 31
      %p233 = scmp.lt.s32.totalorder %s21, 0
      %s234 = scalar_select %p233, %s21, 0
      %s235 = smul.addr %s232, 4
      %s236 = sadd.s32 %s234, %s235
      %s237 = smul.addr %s230, 128
      %s238 = sadd.s32 %s236, %s237
      %s239 = smul.addr %s238, 8
      %s240 = scalar_lea.vmem %s3, %s239
      %s241 = smul.u32 32, %s20
      %s242 = smul.u32 %s20, 32
      %s243 = smul.u32 %s242, 32
      %s244 = scalar_lea.vmem %s220, %s243
      %v245 = vld [vmem:[%s244] sm:$0xff]
      %v246 = vld [vmem:[%s244 + $0x8] sm:$0xff]
      %v247 = vld [vmem:[%s244 + $0x10] sm:$0xff]
      %v248 = vld [vmem:[%s244 + $0x18] sm:$0xff]
      %v249 = vld [vmem:[%s244 + $0x20] sm:$0xff]
      %v250 = vld [vmem:[%s244 + $0x28] sm:$0xff]
      %v251 = vld [vmem:[%s244 + $0x30] sm:$0xff]
      %v252 = vld [vmem:[%s244 + $0x38] sm:$0xff]
      %v253 = vld [vmem:[%s244 + $0x40] sm:$0xff]
      %v254 = vld [vmem:[%s244 + $0x48] sm:$0xff]
      %v255 = vld [vmem:[%s244 + $0x50] sm:$0xff]
      %v256 = vld [vmem:[%s244 + $0x58] sm:$0xff]
      %v257 = vld [vmem:[%s244 + $0x60] sm:$0xff]
      %v258 = vld [vmem:[%s244 + $0x68] sm:$0xff]
      %v259 = vld [vmem:[%s244 + $0x70] sm:$0xff]
      %v260 = vld [vmem:[%s244 + $0x78] sm:$0xff]
      %v261 = vld [vmem:[%s244 + $0x80] sm:$0xff]
      %v262 = vld [vmem:[%s244 + $0x88] sm:$0xff]
      %v263 = vld [vmem:[%s244 + $0x90] sm:$0xff]
      %v264 = vld [vmem:[%s244 + $0x98] sm:$0xff]
      %v265 = vld [vmem:[%s244 + $0xa0] sm:$0xff]
      %v266 = vld [vmem:[%s244 + $0xa8] sm:$0xff]
      %v267 = vld [vmem:[%s244 + $0xb0] sm:$0xff]
      %v268 = vld [vmem:[%s244 + $0xb8] sm:$0xff]
      %v269 = vld [vmem:[%s244 + $0xc0] sm:$0xff]
      %v270 = vld [vmem:[%s244 + $0xc8] sm:$0xff]
      %v271 = vld [vmem:[%s244 + $0xd0] sm:$0xff]
      %v272 = vld [vmem:[%s244 + $0xd8] sm:$0xff]
      %v273 = vld [vmem:[%s244 + $0xe0] sm:$0xff]
      %v274 = vld [vmem:[%s244 + $0xe8] sm:$0xff]
      %v275 = vld [vmem:[%s244 + $0xf0] sm:$0xff]
      %v276 = vld [vmem:[%s244 + $0xf8] sm:$0xff]
      %v277 = vld [vmem:[%s244 + $0x100] sm:$0xff]
      %v278 = vld [vmem:[%s244 + $0x108] sm:$0xff]
      %v279 = vld [vmem:[%s244 + $0x110] sm:$0xff]
      %v280 = vld [vmem:[%s244 + $0x118] sm:$0xff]
      %v281 = vld [vmem:[%s244 + $0x120] sm:$0xff]
      %v282 = vld [vmem:[%s244 + $0x128] sm:$0xff]
      %v283 = vld [vmem:[%s244 + $0x130] sm:$0xff]
      %v284 = vld [vmem:[%s244 + $0x138] sm:$0xff]
      %v285 = vld [vmem:[%s244 + $0x140] sm:$0xff]
      %v286 = vld [vmem:[%s244 + $0x148] sm:$0xff]
      %v287 = vld [vmem:[%s244 + $0x150] sm:$0xff]
      %v288 = vld [vmem:[%s244 + $0x158] sm:$0xff]
      %v289 = vld [vmem:[%s244 + $0x160] sm:$0xff]
      %v290 = vld [vmem:[%s244 + $0x168] sm:$0xff]
      %v291 = vld [vmem:[%s244 + $0x170] sm:$0xff]
      %v292 = vld [vmem:[%s244 + $0x178] sm:$0xff]
      %v293 = vld [vmem:[%s244 + $0x180] sm:$0xff]
      %v294 = vld [vmem:[%s244 + $0x188] sm:$0xff]
      %v295 = vld [vmem:[%s244 + $0x190] sm:$0xff]
      %v296 = vld [vmem:[%s244 + $0x198] sm:$0xff]
      %v297 = vld [vmem:[%s244 + $0x1a0] sm:$0xff]
      %v298 = vld [vmem:[%s244 + $0x1a8] sm:$0xff]
      %v299 = vld [vmem:[%s244 + $0x1b0] sm:$0xff]
      %v300 = vld [vmem:[%s244 + $0x1b8] sm:$0xff]
      %v301 = vld [vmem:[%s244 + $0x1c0] sm:$0xff]
      %v302 = vld [vmem:[%s244 + $0x1c8] sm:$0xff]
      %v303 = vld [vmem:[%s244 + $0x1d0] sm:$0xff]
      %v304 = vld [vmem:[%s244 + $0x1d8] sm:$0xff]
      %v305 = vld [vmem:[%s244 + $0x1e0] sm:$0xff]
      %v306 = vld [vmem:[%s244 + $0x1e8] sm:$0xff]
      %v307 = vld [vmem:[%s244 + $0x1f0] sm:$0xff]
      %v308 = vld [vmem:[%s244 + $0x1f8] sm:$0xff]
      %v309 = vld [vmem:[%s244 + $0x200] sm:$0xff]
      %v310 = vld [vmem:[%s244 + $0x208] sm:$0xff]
      %v311 = vld [vmem:[%s244 + $0x210] sm:$0xff]
      %v312 = vld [vmem:[%s244 + $0x218] sm:$0xff]
      %v313 = vld [vmem:[%s244 + $0x220] sm:$0xff]
      %v314 = vld [vmem:[%s244 + $0x228] sm:$0xff]
      %v315 = vld [vmem:[%s244 + $0x230] sm:$0xff]
      %v316 = vld [vmem:[%s244 + $0x238] sm:$0xff]
      %v317 = vld [vmem:[%s244 + $0x240] sm:$0xff]
      %v318 = vld [vmem:[%s244 + $0x248] sm:$0xff]
      %v319 = vld [vmem:[%s244 + $0x250] sm:$0xff]
      %v320 = vld [vmem:[%s244 + $0x258] sm:$0xff]
      %v321 = vld [vmem:[%s244 + $0x260] sm:$0xff]
      %v322 = vld [vmem:[%s244 + $0x268] sm:$0xff]
      %v323 = vld [vmem:[%s244 + $0x270] sm:$0xff]
      %v324 = vld [vmem:[%s244 + $0x278] sm:$0xff]
      %v325 = vld [vmem:[%s244 + $0x280] sm:$0xff]
      %v326 = vld [vmem:[%s244 + $0x288] sm:$0xff]
      %v327 = vld [vmem:[%s244 + $0x290] sm:$0xff]
      %v328 = vld [vmem:[%s244 + $0x298] sm:$0xff]
      %v329 = vld [vmem:[%s244 + $0x2a0] sm:$0xff]
      %v330 = vld [vmem:[%s244 + $0x2a8] sm:$0xff]
      %v331 = vld [vmem:[%s244 + $0x2b0] sm:$0xff]
      %v332 = vld [vmem:[%s244 + $0x2b8] sm:$0xff]
      %v333 = vld [vmem:[%s244 + $0x2c0] sm:$0xff]
      %v334 = vld [vmem:[%s244 + $0x2c8] sm:$0xff]
      %v335 = vld [vmem:[%s244 + $0x2d0] sm:$0xff]
      %v336 = vld [vmem:[%s244 + $0x2d8] sm:$0xff]
      %v337 = vld [vmem:[%s244 + $0x2e0] sm:$0xff]
      %v338 = vld [vmem:[%s244 + $0x2e8] sm:$0xff]
      %v339 = vld [vmem:[%s244 + $0x2f0] sm:$0xff]
      %v340 = vld [vmem:[%s244 + $0x2f8] sm:$0xff]
      %v341 = vld [vmem:[%s244 + $0x300] sm:$0xff]
      %v342 = vld [vmem:[%s244 + $0x308] sm:$0xff]
      %v343 = vld [vmem:[%s244 + $0x310] sm:$0xff]
      %v344 = vld [vmem:[%s244 + $0x318] sm:$0xff]
      %v345 = vld [vmem:[%s244 + $0x320] sm:$0xff]
      %v346 = vld [vmem:[%s244 + $0x328] sm:$0xff]
      %v347 = vld [vmem:[%s244 + $0x330] sm:$0xff]
      %v348 = vld [vmem:[%s244 + $0x338] sm:$0xff]
      %v349 = vld [vmem:[%s244 + $0x340] sm:$0xff]
      %v350 = vld [vmem:[%s244 + $0x348] sm:$0xff]
      %v351 = vld [vmem:[%s244 + $0x350] sm:$0xff]
      %v352 = vld [vmem:[%s244 + $0x358] sm:$0xff]
      %v353 = vld [vmem:[%s244 + $0x360] sm:$0xff]
      %v354 = vld [vmem:[%s244 + $0x368] sm:$0xff]
      %v355 = vld [vmem:[%s244 + $0x370] sm:$0xff]
      %v356 = vld [vmem:[%s244 + $0x378] sm:$0xff]
      %v357 = vld [vmem:[%s244 + $0x380] sm:$0xff]
      %v358 = vld [vmem:[%s244 + $0x388] sm:$0xff]
      %v359 = vld [vmem:[%s244 + $0x390] sm:$0xff]
      %v360 = vld [vmem:[%s244 + $0x398] sm:$0xff]
      %v361 = vld [vmem:[%s244 + $0x3a0] sm:$0xff]
      %v362 = vld [vmem:[%s244 + $0x3a8] sm:$0xff]
      %v363 = vld [vmem:[%s244 + $0x3b0] sm:$0xff]
      %v364 = vld [vmem:[%s244 + $0x3b8] sm:$0xff]
      %v365 = vld [vmem:[%s244 + $0x3c0] sm:$0xff]
      %v366 = vld [vmem:[%s244 + $0x3c8] sm:$0xff]
      %v367 = vld [vmem:[%s244 + $0x3d0] sm:$0xff]
      %v368 = vld [vmem:[%s244 + $0x3d8] sm:$0xff]
      %v369 = vld [vmem:[%s244 + $0x3e0] sm:$0xff]
      %v370 = vld [vmem:[%s244 + $0x3e8] sm:$0xff]
      %v371 = vld [vmem:[%s244 + $0x3f0] sm:$0xff]
      %v372 = vld [vmem:[%s244 + $0x3f8] sm:$0xff]
      %s373 = sadd.s32 %s242, 1
      %s374 = smul.u32 %s373, 32
      %s375 = scalar_lea.vmem %s220, %s374
      %v376 = vld [vmem:[%s375] sm:$0xff]
      %v377 = vld [vmem:[%s375 + $0x8] sm:$0xff]
      %v378 = vld [vmem:[%s375 + $0x10] sm:$0xff]
      %v379 = vld [vmem:[%s375 + $0x18] sm:$0xff]
      %v380 = vld [vmem:[%s375 + $0x20] sm:$0xff]
      %v381 = vld [vmem:[%s375 + $0x28] sm:$0xff]
      %v382 = vld [vmem:[%s375 + $0x30] sm:$0xff]
      %v383 = vld [vmem:[%s375 + $0x38] sm:$0xff]
      %v384 = vld [vmem:[%s375 + $0x40] sm:$0xff]
      %v385 = vld [vmem:[%s375 + $0x48] sm:$0xff]
      %v386 = vld [vmem:[%s375 + $0x50] sm:$0xff]
      %v387 = vld [vmem:[%s375 + $0x58] sm:$0xff]
      %v388 = vld [vmem:[%s375 + $0x60] sm:$0xff]
      %v389 = vld [vmem:[%s375 + $0x68] sm:$0xff]
      %v390 = vld [vmem:[%s375 + $0x70] sm:$0xff]
      %v391 = vld [vmem:[%s375 + $0x78] sm:$0xff]
      %v392 = vld [vmem:[%s375 + $0x80] sm:$0xff]
      %v393 = vld [vmem:[%s375 + $0x88] sm:$0xff]
      %v394 = vld [vmem:[%s375 + $0x90] sm:$0xff]
      %v395 = vld [vmem:[%s375 + $0x98] sm:$0xff]
      %v396 = vld [vmem:[%s375 + $0xa0] sm:$0xff]
      %v397 = vld [vmem:[%s375 + $0xa8] sm:$0xff]
      %v398 = vld [vmem:[%s375 + $0xb0] sm:$0xff]
      %v399 = vld [vmem:[%s375 + $0xb8] sm:$0xff]
      %v400 = vld [vmem:[%s375 + $0xc0] sm:$0xff]
      %v401 = vld [vmem:[%s375 + $0xc8] sm:$0xff]
      %v402 = vld [vmem:[%s375 + $0xd0] sm:$0xff]
      %v403 = vld [vmem:[%s375 + $0xd8] sm:$0xff]
      %v404 = vld [vmem:[%s375 + $0xe0] sm:$0xff]
      %v405 = vld [vmem:[%s375 + $0xe8] sm:$0xff]
      %v406 = vld [vmem:[%s375 + $0xf0] sm:$0xff]
      %v407 = vld [vmem:[%s375 + $0xf8] sm:$0xff]
      %v408 = vld [vmem:[%s375 + $0x100] sm:$0xff]
      %v409 = vld [vmem:[%s375 + $0x108] sm:$0xff]
      %v410 = vld [vmem:[%s375 + $0x110] sm:$0xff]
      %v411 = vld [vmem:[%s375 + $0x118] sm:$0xff]
      %v412 = vld [vmem:[%s375 + $0x120] sm:$0xff]
      %v413 = vld [vmem:[%s375 + $0x128] sm:$0xff]
      %v414 = vld [vmem:[%s375 + $0x130] sm:$0xff]
      %v415 = vld [vmem:[%s375 + $0x138] sm:$0xff]
      %v416 = vld [vmem:[%s375 + $0x140] sm:$0xff]
      %v417 = vld [vmem:[%s375 + $0x148] sm:$0xff]
      %v418 = vld [vmem:[%s375 + $0x150] sm:$0xff]
      %v419 = vld [vmem:[%s375 + $0x158] sm:$0xff]
      %v420 = vld [vmem:[%s375 + $0x160] sm:$0xff]
      %v421 = vld [vmem:[%s375 + $0x168] sm:$0xff]
      %v422 = vld [vmem:[%s375 + $0x170] sm:$0xff]
      %v423 = vld [vmem:[%s375 + $0x178] sm:$0xff]
      %v424 = vld [vmem:[%s375 + $0x180] sm:$0xff]
      %v425 = vld [vmem:[%s375 + $0x188] sm:$0xff]
      %v426 = vld [vmem:[%s375 + $0x190] sm:$0xff]
      %v427 = vld [vmem:[%s375 + $0x198] sm:$0xff]
      %v428 = vld [vmem:[%s375 + $0x1a0] sm:$0xff]
      %v429 = vld [vmem:[%s375 + $0x1a8] sm:$0xff]
      %v430 = vld [vmem:[%s375 + $0x1b0] sm:$0xff]
      %v431 = vld [vmem:[%s375 + $0x1b8] sm:$0xff]
      %v432 = vld [vmem:[%s375 + $0x1c0] sm:$0xff]
      %v433 = vld [vmem:[%s375 + $0x1c8] sm:$0xff]
      %v434 = vld [vmem:[%s375 + $0x1d0] sm:$0xff]
      %v435 = vld [vmem:[%s375 + $0x1d8] sm:$0xff]
      %v436 = vld [vmem:[%s375 + $0x1e0] sm:$0xff]
      %v437 = vld [vmem:[%s375 + $0x1e8] sm:$0xff]
      %v438 = vld [vmem:[%s375 + $0x1f0] sm:$0xff]
      %v439 = vld [vmem:[%s375 + $0x1f8] sm:$0xff]
      %v440 = vld [vmem:[%s375 + $0x200] sm:$0xff]
      %v441 = vld [vmem:[%s375 + $0x208] sm:$0xff]
      %v442 = vld [vmem:[%s375 + $0x210] sm:$0xff]
      %v443 = vld [vmem:[%s375 + $0x218] sm:$0xff]
      %v444 = vld [vmem:[%s375 + $0x220] sm:$0xff]
      %v445 = vld [vmem:[%s375 + $0x228] sm:$0xff]
      %v446 = vld [vmem:[%s375 + $0x230] sm:$0xff]
      %v447 = vld [vmem:[%s375 + $0x238] sm:$0xff]
      %v448 = vld [vmem:[%s375 + $0x240] sm:$0xff]
      %v449 = vld [vmem:[%s375 + $0x248] sm:$0xff]
      %v450 = vld [vmem:[%s375 + $0x250] sm:$0xff]
      %v451 = vld [vmem:[%s375 + $0x258] sm:$0xff]
      %v452 = vld [vmem:[%s375 + $0x260] sm:$0xff]
      %v453 = vld [vmem:[%s375 + $0x268] sm:$0xff]
      %v454 = vld [vmem:[%s375 + $0x270] sm:$0xff]
      %v455 = vld [vmem:[%s375 + $0x278] sm:$0xff]
      %v456 = vld [vmem:[%s375 + $0x280] sm:$0xff]
      %v457 = vld [vmem:[%s375 + $0x288] sm:$0xff]
      %v458 = vld [vmem:[%s375 + $0x290] sm:$0xff]
      %v459 = vld [vmem:[%s375 + $0x298] sm:$0xff]
      %v460 = vld [vmem:[%s375 + $0x2a0] sm:$0xff]
      %v461 = vld [vmem:[%s375 + $0x2a8] sm:$0xff]
      %v462 = vld [vmem:[%s375 + $0x2b0] sm:$0xff]
      %v463 = vld [vmem:[%s375 + $0x2b8] sm:$0xff]
      %v464 = vld [vmem:[%s375 + $0x2c0] sm:$0xff]
      %v465 = vld [vmem:[%s375 + $0x2c8] sm:$0xff]
      %v466 = vld [vmem:[%s375 + $0x2d0] sm:$0xff]
      %v467 = vld [vmem:[%s375 + $0x2d8] sm:$0xff]
      %v468 = vld [vmem:[%s375 + $0x2e0] sm:$0xff]
      %v469 = vld [vmem:[%s375 + $0x2e8] sm:$0xff]
      %v470 = vld [vmem:[%s375 + $0x2f0] sm:$0xff]
      %v471 = vld [vmem:[%s375 + $0x2f8] sm:$0xff]
      %v472 = vld [vmem:[%s375 + $0x300] sm:$0xff]
      %v473 = vld [vmem:[%s375 + $0x308] sm:$0xff]
      %v474 = vld [vmem:[%s375 + $0x310] sm:$0xff]
      %v475 = vld [vmem:[%s375 + $0x318] sm:$0xff]
      %v476 = vld [vmem:[%s375 + $0x320] sm:$0xff]
      %v477 = vld [vmem:[%s375 + $0x328] sm:$0xff]
      %v478 = vld [vmem:[%s375 + $0x330] sm:$0xff]
      %v479 = vld [vmem:[%s375 + $0x338] sm:$0xff]
      %v480 = vld [vmem:[%s375 + $0x340] sm:$0xff]
      %v481 = vld [vmem:[%s375 + $0x348] sm:$0xff]
      %v482 = vld [vmem:[%s375 + $0x350] sm:$0xff]
      %v483 = vld [vmem:[%s375 + $0x358] sm:$0xff]
      %v484 = vld [vmem:[%s375 + $0x360] sm:$0xff]
      %v485 = vld [vmem:[%s375 + $0x368] sm:$0xff]
      %v486 = vld [vmem:[%s375 + $0x370] sm:$0xff]
      %v487 = vld [vmem:[%s375 + $0x378] sm:$0xff]
      %v488 = vld [vmem:[%s375 + $0x380] sm:$0xff]
      %v489 = vld [vmem:[%s375 + $0x388] sm:$0xff]
      %v490 = vld [vmem:[%s375 + $0x390] sm:$0xff]
      %v491 = vld [vmem:[%s375 + $0x398] sm:$0xff]
      %v492 = vld [vmem:[%s375 + $0x3a0] sm:$0xff]
      %v493 = vld [vmem:[%s375 + $0x3a8] sm:$0xff]
      %v494 = vld [vmem:[%s375 + $0x3b0] sm:$0xff]
      %v495 = vld [vmem:[%s375 + $0x3b8] sm:$0xff]
      %v496 = vld [vmem:[%s375 + $0x3c0] sm:$0xff]
      %v497 = vld [vmem:[%s375 + $0x3c8] sm:$0xff]
      %v498 = vld [vmem:[%s375 + $0x3d0] sm:$0xff]
      %v499 = vld [vmem:[%s375 + $0x3d8] sm:$0xff]
      %v500 = vld [vmem:[%s375 + $0x3e0] sm:$0xff]
      %v501 = vld [vmem:[%s375 + $0x3e8] sm:$0xff]
      %v502 = vld [vmem:[%s375 + $0x3f0] sm:$0xff]
      %v503 = vld [vmem:[%s375 + $0x3f8] sm:$0xff]
      %v504 = vld [vmem:[%s224] sm:$0xff]
      %v505 = vld [vmem:[%s224 + $0x8] sm:$0xff]
      %v506 = vld [vmem:[%s224 + $0x10] sm:$0xff]
      %v507 = vld [vmem:[%s224 + $0x18] sm:$0xff]
      %v508 = vld [vmem:[%s224 + $0x20] sm:$0xff]
      %v509 = vld [vmem:[%s224 + $0x28] sm:$0xff]
      %v510 = vld [vmem:[%s224 + $0x30] sm:$0xff]
      %v511 = vld [vmem:[%s224 + $0x38] sm:$0xff]
      %v512 = vld [vmem:[%s224 + $0x40] sm:$0xff]
      %v513 = vld [vmem:[%s224 + $0x48] sm:$0xff]
      %v514 = vld [vmem:[%s224 + $0x50] sm:$0xff]
      %v515 = vld [vmem:[%s224 + $0x58] sm:$0xff]
      %v516 = vld [vmem:[%s224 + $0x60] sm:$0xff]
      %v517 = vld [vmem:[%s224 + $0x68] sm:$0xff]
      %v518 = vld [vmem:[%s224 + $0x70] sm:$0xff]
      %v519 = vld [vmem:[%s224 + $0x78] sm:$0xff]
      %v520 = vld [vmem:[%s224 + $0x80] sm:$0xff]
      %v521 = vld [vmem:[%s224 + $0x88] sm:$0xff]
      %v522 = vld [vmem:[%s224 + $0x90] sm:$0xff]
      %v523 = vld [vmem:[%s224 + $0x98] sm:$0xff]
      %v524 = vld [vmem:[%s224 + $0xa0] sm:$0xff]
      %v525 = vld [vmem:[%s224 + $0xa8] sm:$0xff]
      %v526 = vld [vmem:[%s224 + $0xb0] sm:$0xff]
      %v527 = vld [vmem:[%s224 + $0xb8] sm:$0xff]
      %v528 = vld [vmem:[%s224 + $0xc0] sm:$0xff]
      %v529 = vld [vmem:[%s224 + $0xc8] sm:$0xff]
      %v530 = vld [vmem:[%s224 + $0xd0] sm:$0xff]
      %v531 = vld [vmem:[%s224 + $0xd8] sm:$0xff]
      %v532 = vld [vmem:[%s224 + $0xe0] sm:$0xff]
      %v533 = vld [vmem:[%s224 + $0xe8] sm:$0xff]
      %v534 = vld [vmem:[%s224 + $0xf0] sm:$0xff]
      %v535 = vld [vmem:[%s224 + $0xf8] sm:$0xff]
      %v536 = vld [vmem:[%s227] sm:$0x1]
      %v538 = vperm.slane %v536, 0
      %540 = vmatpush.msra.mxu0 %v519
      %541 = vmatpush.msra.mxu0 %v518
      %542 = vmatpush.msra.mxu0 %v517
      %543 = vmatpush.msra.mxu0 %v516
      %544 = vmatpush.msra.mxu0 %v515
      %545 = vmatpush.msra.mxu0 %v514
      %546 = vmatpush.msra.mxu0 %v513
      %547 = vmatpush.msra.mxu0 %v512
      %548 = vmatpush.msra.mxu0 %v511
      %549 = vmatpush.msra.mxu0 %v510
      %550 = vmatpush.msra.mxu0 %v509
      %551 = vmatpush.msra.mxu0 %v508
      %552 = vmatpush.msra.mxu0 %v507
      %553 = vmatpush.msra.mxu0 %v506
      %554 = vmatpush.msra.mxu0 %v505
      %555 = vmatpush.msra.mxu0 %v504
      %556 = vmatmul.f32.gmra.mxu0 %v245
      %v557 = vpop.f32.mrf.mxu0
      %v558 = vadd.f32 %v538, %v557
      %559 = vmatmul.f32.gmra.mxu0 %v246
      %v560 = vpop.f32.mrf.mxu0
      %v561 = vadd.f32 %v538, %v560
      %562 = vmatmul.f32.gmra.mxu0 %v247
      %v563 = vpop.f32.mrf.mxu0
      %v564 = vadd.f32 %v538, %v563
      %565 = vmatmul.f32.gmra.mxu0 %v248
      %v566 = vpop.f32.mrf.mxu0
      %v567 = vadd.f32 %v538, %v566
      %568 = vmatmul.f32.gmra.mxu0 %v249
      %v569 = vpop.f32.mrf.mxu0
      %v570 = vadd.f32 %v538, %v569
      %571 = vmatmul.f32.gmra.mxu0 %v250
      %v572 = vpop.f32.mrf.mxu0
      %v573 = vadd.f32 %v538, %v572
      %574 = vmatmul.f32.gmra.mxu0 %v251
      %v575 = vpop.f32.mrf.mxu0
      %v576 = vadd.f32 %v538, %v575
      %577 = vmatmul.f32.gmra.mxu0 %v252
      %v578 = vpop.f32.mrf.mxu0
      %v579 = vadd.f32 %v538, %v578
      %580 = vmatmul.f32.gmra.mxu0 %v253
      %v581 = vpop.f32.mrf.mxu0
      %v582 = vadd.f32 %v538, %v581
      %583 = vmatmul.f32.gmra.mxu0 %v254
      %v584 = vpop.f32.mrf.mxu0
      %v585 = vadd.f32 %v538, %v584
      %586 = vmatmul.f32.gmra.mxu0 %v255
      %v587 = vpop.f32.mrf.mxu0
      %v588 = vadd.f32 %v538, %v587
      %589 = vmatmul.f32.gmra.mxu0 %v256
      %v590 = vpop.f32.mrf.mxu0
      %v591 = vadd.f32 %v538, %v590
      %592 = vmatmul.f32.gmra.mxu0 %v257
      %v593 = vpop.f32.mrf.mxu0
      %v594 = vadd.f32 %v538, %v593
      %595 = vmatmul.f32.gmra.mxu0 %v258
      %v596 = vpop.f32.mrf.mxu0
      %v597 = vadd.f32 %v538, %v596
      %598 = vmatmul.f32.gmra.mxu0 %v259
      %v599 = vpop.f32.mrf.mxu0
      %v600 = vadd.f32 %v538, %v599
      %601 = vmatmul.f32.gmra.mxu0 %v260
      %v602 = vpop.f32.mrf.mxu0
      %v603 = vadd.f32 %v538, %v602
      %604 = vmatmul.f32.gmra.mxu0 %v261
      %v605 = vpop.f32.mrf.mxu0
      %v606 = vadd.f32 %v538, %v605
      %607 = vmatmul.f32.gmra.mxu0 %v262
      %v608 = vpop.f32.mrf.mxu0
      %v609 = vadd.f32 %v538, %v608
      %610 = vmatmul.f32.gmra.mxu0 %v263
      %v611 = vpop.f32.mrf.mxu0
      %v612 = vadd.f32 %v538, %v611
      %613 = vmatmul.f32.gmra.mxu0 %v264
      %v614 = vpop.f32.mrf.mxu0
      %v615 = vadd.f32 %v538, %v614
      %616 = vmatmul.f32.gmra.mxu0 %v265
      %v617 = vpop.f32.mrf.mxu0
      %v618 = vadd.f32 %v538, %v617
      %619 = vmatmul.f32.gmra.mxu0 %v266
      %v620 = vpop.f32.mrf.mxu0
      %v621 = vadd.f32 %v538, %v620
      %622 = vmatmul.f32.gmra.mxu0 %v267
      %v623 = vpop.f32.mrf.mxu0
      %v624 = vadd.f32 %v538, %v623
      %625 = vmatmul.f32.gmra.mxu0 %v268
      %v626 = vpop.f32.mrf.mxu0
      %v627 = vadd.f32 %v538, %v626
      %628 = vmatmul.f32.gmra.mxu0 %v269
      %v629 = vpop.f32.mrf.mxu0
      %v630 = vadd.f32 %v538, %v629
      %631 = vmatmul.f32.gmra.mxu0 %v270
      %v632 = vpop.f32.mrf.mxu0
      %v633 = vadd.f32 %v538, %v632
      %634 = vmatmul.f32.gmra.mxu0 %v271
      %v635 = vpop.f32.mrf.mxu0
      %v636 = vadd.f32 %v538, %v635
      %637 = vmatmul.f32.gmra.mxu0 %v272
      %v638 = vpop.f32.mrf.mxu0
      %v639 = vadd.f32 %v538, %v638
      %640 = vmatmul.f32.gmra.mxu0 %v273
      %v641 = vpop.f32.mrf.mxu0
      %v642 = vadd.f32 %v538, %v641
      %643 = vmatmul.f32.gmra.mxu0 %v274
      %v644 = vpop.f32.mrf.mxu0
      %v645 = vadd.f32 %v538, %v644
      %646 = vmatmul.f32.gmra.mxu0 %v275
      %v647 = vpop.f32.mrf.mxu0
      %v648 = vadd.f32 %v538, %v647
      %649 = vmatmul.f32.gmra.mxu0 %v276
      %v650 = vpop.f32.mrf.mxu0
      %v651 = vadd.f32 %v538, %v650
      %652 = vmatmul.f32.gmra.mxu0 %v277
      %v653 = vpop.f32.mrf.mxu0
      %v654 = vadd.f32 %v538, %v653
      %655 = vmatmul.f32.gmra.mxu0 %v278
      %v656 = vpop.f32.mrf.mxu0
      %v657 = vadd.f32 %v538, %v656
      %658 = vmatmul.f32.gmra.mxu0 %v279
      %v659 = vpop.f32.mrf.mxu0
      %v660 = vadd.f32 %v538, %v659
      %661 = vmatmul.f32.gmra.mxu0 %v280
      %v662 = vpop.f32.mrf.mxu0
      %v663 = vadd.f32 %v538, %v662
      %664 = vmatmul.f32.gmra.mxu0 %v281
      %v665 = vpop.f32.mrf.mxu0
      %v666 = vadd.f32 %v538, %v665
      %667 = vmatmul.f32.gmra.mxu0 %v282
      %v668 = vpop.f32.mrf.mxu0
      %v669 = vadd.f32 %v538, %v668
      %670 = vmatmul.f32.gmra.mxu0 %v283
      %v671 = vpop.f32.mrf.mxu0
      %v672 = vadd.f32 %v538, %v671
      %673 = vmatmul.f32.gmra.mxu0 %v284
      %v674 = vpop.f32.mrf.mxu0
      %v675 = vadd.f32 %v538, %v674
      %676 = vmatmul.f32.gmra.mxu0 %v285
      %v677 = vpop.f32.mrf.mxu0
      %v678 = vadd.f32 %v538, %v677
      %679 = vmatmul.f32.gmra.mxu0 %v286
      %v680 = vpop.f32.mrf.mxu0
      %v681 = vadd.f32 %v538, %v680
      %682 = vmatmul.f32.gmra.mxu0 %v287
      %v683 = vpop.f32.mrf.mxu0
      %v684 = vadd.f32 %v538, %v683
      %685 = vmatmul.f32.gmra.mxu0 %v288
      %v686 = vpop.f32.mrf.mxu0
      %v687 = vadd.f32 %v538, %v686
      %688 = vmatmul.f32.gmra.mxu0 %v289
      %v689 = vpop.f32.mrf.mxu0
      %v690 = vadd.f32 %v538, %v689
      %691 = vmatmul.f32.gmra.mxu0 %v290
      %v692 = vpop.f32.mrf.mxu0
      %v693 = vadd.f32 %v538, %v692
      %694 = vmatmul.f32.gmra.mxu0 %v291
      %v695 = vpop.f32.mrf.mxu0
      %v696 = vadd.f32 %v538, %v695
      %697 = vmatmul.f32.gmra.mxu0 %v292
      %v698 = vpop.f32.mrf.mxu0
      %v699 = vadd.f32 %v538, %v698
      %700 = vmatmul.f32.gmra.mxu0 %v293
      %v701 = vpop.f32.mrf.mxu0
      %v702 = vadd.f32 %v538, %v701
      %703 = vmatmul.f32.gmra.mxu0 %v294
      %v704 = vpop.f32.mrf.mxu0
      %v705 = vadd.f32 %v538, %v704
      %706 = vmatmul.f32.gmra.mxu0 %v295
      %v707 = vpop.f32.mrf.mxu0
      %v708 = vadd.f32 %v538, %v707
      %709 = vmatmul.f32.gmra.mxu0 %v296
      %v710 = vpop.f32.mrf.mxu0
      %v711 = vadd.f32 %v538, %v710
      %712 = vmatmul.f32.gmra.mxu0 %v297
      %v713 = vpop.f32.mrf.mxu0
      %v714 = vadd.f32 %v538, %v713
      %715 = vmatmul.f32.gmra.mxu0 %v298
      %v716 = vpop.f32.mrf.mxu0
      %v717 = vadd.f32 %v538, %v716
      %718 = vmatmul.f32.gmra.mxu0 %v299
      %v719 = vpop.f32.mrf.mxu0
      %v720 = vadd.f32 %v538, %v719
      %721 = vmatmul.f32.gmra.mxu0 %v300
      %v722 = vpop.f32.mrf.mxu0
      %v723 = vadd.f32 %v538, %v722
      %724 = vmatmul.f32.gmra.mxu0 %v301
      %v725 = vpop.f32.mrf.mxu0
      %v726 = vadd.f32 %v538, %v725
      %727 = vmatmul.f32.gmra.mxu0 %v302
      %v728 = vpop.f32.mrf.mxu0
      %v729 = vadd.f32 %v538, %v728
      %730 = vmatmul.f32.gmra.mxu0 %v303
      %v731 = vpop.f32.mrf.mxu0
      %v732 = vadd.f32 %v538, %v731
      %733 = vmatmul.f32.gmra.mxu0 %v304
      %v734 = vpop.f32.mrf.mxu0
      %v735 = vadd.f32 %v538, %v734
      %736 = vmatmul.f32.gmra.mxu0 %v305
      %v737 = vpop.f32.mrf.mxu0
      %v738 = vadd.f32 %v538, %v737
      %739 = vmatmul.f32.gmra.mxu0 %v306
      %v740 = vpop.f32.mrf.mxu0
      %v741 = vadd.f32 %v538, %v740
      %742 = vmatmul.f32.gmra.mxu0 %v307
      %v743 = vpop.f32.mrf.mxu0
      %v744 = vadd.f32 %v538, %v743
      %745 = vmatmul.f32.gmra.mxu0 %v308
      %v746 = vpop.f32.mrf.mxu0
      %v747 = vadd.f32 %v538, %v746
      %748 = vmatmul.f32.gmra.mxu0 %v309
      %v749 = vpop.f32.mrf.mxu0
      %v750 = vadd.f32 %v538, %v749
      %751 = vmatmul.f32.gmra.mxu0 %v310
      %v752 = vpop.f32.mrf.mxu0
      %v753 = vadd.f32 %v538, %v752
      %754 = vmatmul.f32.gmra.mxu0 %v311
      %v755 = vpop.f32.mrf.mxu0
      %v756 = vadd.f32 %v538, %v755
      %757 = vmatmul.f32.gmra.mxu0 %v312
      %v758 = vpop.f32.mrf.mxu0
      %v759 = vadd.f32 %v538, %v758
      %760 = vmatmul.f32.gmra.mxu0 %v313
      %v761 = vpop.f32.mrf.mxu0
      %v762 = vadd.f32 %v538, %v761
      %763 = vmatmul.f32.gmra.mxu0 %v314
      %v764 = vpop.f32.mrf.mxu0
      %v765 = vadd.f32 %v538, %v764
      %766 = vmatmul.f32.gmra.mxu0 %v315
      %v767 = vpop.f32.mrf.mxu0
      %v768 = vadd.f32 %v538, %v767
      %769 = vmatmul.f32.gmra.mxu0 %v316
      %v770 = vpop.f32.mrf.mxu0
      %v771 = vadd.f32 %v538, %v770
      %772 = vmatmul.f32.gmra.mxu0 %v317
      %v773 = vpop.f32.mrf.mxu0
      %v774 = vadd.f32 %v538, %v773
      %775 = vmatmul.f32.gmra.mxu0 %v318
      %v776 = vpop.f32.mrf.mxu0
      %v777 = vadd.f32 %v538, %v776
      %778 = vmatmul.f32.gmra.mxu0 %v319
      %v779 = vpop.f32.mrf.mxu0
      %v780 = vadd.f32 %v538, %v779
      %781 = vmatmul.f32.gmra.mxu0 %v320
      %v782 = vpop.f32.mrf.mxu0
      %v783 = vadd.f32 %v538, %v782
      %784 = vmatmul.f32.gmra.mxu0 %v321
      %v785 = vpop.f32.mrf.mxu0
      %v786 = vadd.f32 %v538, %v785
      %787 = vmatmul.f32.gmra.mxu0 %v322
      %v788 = vpop.f32.mrf.mxu0
      %v789 = vadd.f32 %v538, %v788
      %790 = vmatmul.f32.gmra.mxu0 %v323
      %v791 = vpop.f32.mrf.mxu0
      %v792 = vadd.f32 %v538, %v791
      %793 = vmatmul.f32.gmra.mxu0 %v324
      %v794 = vpop.f32.mrf.mxu0
      %v795 = vadd.f32 %v538, %v794
      %796 = vmatmul.f32.gmra.mxu0 %v325
      %v797 = vpop.f32.mrf.mxu0
      %v798 = vadd.f32 %v538, %v797
      %799 = vmatmul.f32.gmra.mxu0 %v326
      %v800 = vpop.f32.mrf.mxu0
      %v801 = vadd.f32 %v538, %v800
      %802 = vmatmul.f32.gmra.mxu0 %v327
      %v803 = vpop.f32.mrf.mxu0
      %v804 = vadd.f32 %v538, %v803
      %805 = vmatmul.f32.gmra.mxu0 %v328
      %v806 = vpop.f32.mrf.mxu0
      %v807 = vadd.f32 %v538, %v806
      %808 = vmatmul.f32.gmra.mxu0 %v329
      %v809 = vpop.f32.mrf.mxu0
      %v810 = vadd.f32 %v538, %v809
      %811 = vmatmul.f32.gmra.mxu0 %v330
      %v812 = vpop.f32.mrf.mxu0
      %v813 = vadd.f32 %v538, %v812
      %814 = vmatmul.f32.gmra.mxu0 %v331
      %v815 = vpop.f32.mrf.mxu0
      %v816 = vadd.f32 %v538, %v815
      %817 = vmatmul.f32.gmra.mxu0 %v332
      %v818 = vpop.f32.mrf.mxu0
      %v819 = vadd.f32 %v538, %v818
      %820 = vmatmul.f32.gmra.mxu0 %v333
      %v821 = vpop.f32.mrf.mxu0
      %v822 = vadd.f32 %v538, %v821
      %823 = vmatmul.f32.gmra.mxu0 %v334
      %v824 = vpop.f32.mrf.mxu0
      %v825 = vadd.f32 %v538, %v824
      %826 = vmatmul.f32.gmra.mxu0 %v335
      %v827 = vpop.f32.mrf.mxu0
      %v828 = vadd.f32 %v538, %v827
      %829 = vmatmul.f32.gmra.mxu0 %v336
      %v830 = vpop.f32.mrf.mxu0
      %v831 = vadd.f32 %v538, %v830
      %832 = vmatmul.f32.gmra.mxu0 %v337
      %v833 = vpop.f32.mrf.mxu0
      %v834 = vadd.f32 %v538, %v833
      %835 = vmatmul.f32.gmra.mxu0 %v338
      %v836 = vpop.f32.mrf.mxu0
      %v837 = vadd.f32 %v538, %v836
      %838 = vmatmul.f32.gmra.mxu0 %v339
      %v839 = vpop.f32.mrf.mxu0
      %v840 = vadd.f32 %v538, %v839
      %841 = vmatmul.f32.gmra.mxu0 %v340
      %v842 = vpop.f32.mrf.mxu0
      %v843 = vadd.f32 %v538, %v842
      %844 = vmatmul.f32.gmra.mxu0 %v341
      %v845 = vpop.f32.mrf.mxu0
      %v846 = vadd.f32 %v538, %v845
      %847 = vmatmul.f32.gmra.mxu0 %v342
      %v848 = vpop.f32.mrf.mxu0
      %v849 = vadd.f32 %v538, %v848
      %850 = vmatmul.f32.gmra.mxu0 %v343
      %v851 = vpop.f32.mrf.mxu0
      %v852 = vadd.f32 %v538, %v851
      %853 = vmatmul.f32.gmra.mxu0 %v344
      %v854 = vpop.f32.mrf.mxu0
      %v855 = vadd.f32 %v538, %v854
      %856 = vmatmul.f32.gmra.mxu0 %v345
      %v857 = vpop.f32.mrf.mxu0
      %v858 = vadd.f32 %v538, %v857
      %859 = vmatmul.f32.gmra.mxu0 %v346
      %v860 = vpop.f32.mrf.mxu0
      %v861 = vadd.f32 %v538, %v860
      %862 = vmatmul.f32.gmra.mxu0 %v347
      %v863 = vpop.f32.mrf.mxu0
      %v864 = vadd.f32 %v538, %v863
      %865 = vmatmul.f32.gmra.mxu0 %v348
      %v866 = vpop.f32.mrf.mxu0
      %v867 = vadd.f32 %v538, %v866
      %868 = vmatmul.f32.gmra.mxu0 %v349
      %v869 = vpop.f32.mrf.mxu0
      %v870 = vadd.f32 %v538, %v869
      %871 = vmatmul.f32.gmra.mxu0 %v350
      %v872 = vpop.f32.mrf.mxu0
      %v873 = vadd.f32 %v538, %v872
      %874 = vmatmul.f32.gmra.mxu0 %v351
      %v875 = vpop.f32.mrf.mxu0
      %v876 = vadd.f32 %v538, %v875
      %877 = vmatmul.f32.gmra.mxu0 %v352
      %v878 = vpop.f32.mrf.mxu0
      %v879 = vadd.f32 %v538, %v878
      %880 = vmatmul.f32.gmra.mxu0 %v353
      %v881 = vpop.f32.mrf.mxu0
      %v882 = vadd.f32 %v538, %v881
      %883 = vmatmul.f32.gmra.mxu0 %v354
      %v884 = vpop.f32.mrf.mxu0
      %v885 = vadd.f32 %v538, %v884
      %886 = vmatmul.f32.gmra.mxu0 %v355
      %v887 = vpop.f32.mrf.mxu0
      %v888 = vadd.f32 %v538, %v887
      %889 = vmatmul.f32.gmra.mxu0 %v356
      %v890 = vpop.f32.mrf.mxu0
      %v891 = vadd.f32 %v538, %v890
      %892 = vmatmul.f32.gmra.mxu0 %v357
      %v893 = vpop.f32.mrf.mxu0
      %v894 = vadd.f32 %v538, %v893
      %895 = vmatmul.f32.gmra.mxu0 %v358
      %v896 = vpop.f32.mrf.mxu0
      %v897 = vadd.f32 %v538, %v896
      %898 = vmatmul.f32.gmra.mxu0 %v359
      %v899 = vpop.f32.mrf.mxu0
      %v900 = vadd.f32 %v538, %v899
      %901 = vmatmul.f32.gmra.mxu0 %v360
      %v902 = vpop.f32.mrf.mxu0
      %v903 = vadd.f32 %v538, %v902
      %904 = vmatmul.f32.gmra.mxu0 %v361
      %v905 = vpop.f32.mrf.mxu0
      %v906 = vadd.f32 %v538, %v905
      %907 = vmatmul.f32.gmra.mxu0 %v362
      %v908 = vpop.f32.mrf.mxu0
      %v909 = vadd.f32 %v538, %v908
      %910 = vmatmul.f32.gmra.mxu0 %v363
      %v911 = vpop.f32.mrf.mxu0
      %v912 = vadd.f32 %v538, %v911
      %913 = vmatmul.f32.gmra.mxu0 %v364
      %v914 = vpop.f32.mrf.mxu0
      %v915 = vadd.f32 %v538, %v914
      %916 = vmatmul.f32.gmra.mxu0 %v365
      %v917 = vpop.f32.mrf.mxu0
      %v918 = vadd.f32 %v538, %v917
      %919 = vmatmul.f32.gmra.mxu0 %v366
      %v920 = vpop.f32.mrf.mxu0
      %v921 = vadd.f32 %v538, %v920
      %922 = vmatmul.f32.gmra.mxu0 %v367
      %v923 = vpop.f32.mrf.mxu0
      %v924 = vadd.f32 %v538, %v923
      %925 = vmatmul.f32.gmra.mxu0 %v368
      %v926 = vpop.f32.mrf.mxu0
      %v927 = vadd.f32 %v538, %v926
      %928 = vmatmul.f32.gmra.mxu0 %v369
      %v929 = vpop.f32.mrf.mxu0
      %v930 = vadd.f32 %v538, %v929
      %931 = vmatmul.f32.gmra.mxu0 %v370
      %v932 = vpop.f32.mrf.mxu0
      %v933 = vadd.f32 %v538, %v932
      %934 = vmatmul.f32.gmra.mxu0 %v371
      %v935 = vpop.f32.mrf.mxu0
      %v936 = vadd.f32 %v538, %v935
      %937 = vmatmul.f32.gmra.mxu0 %v372
      %v938 = vpop.f32.mrf.mxu0
      %v939 = vadd.f32 %v538, %v938
      %940 = vdwg.mxu0
      %941 = vmatpush.msra.mxu0 %v535
      %942 = vmatpush.msra.mxu0 %v534
      %943 = vmatpush.msra.mxu0 %v533
      %944 = vmatpush.msra.mxu0 %v532
      %945 = vmatpush.msra.mxu0 %v531
      %946 = vmatpush.msra.mxu0 %v530
      %947 = vmatpush.msra.mxu0 %v529
      %948 = vmatpush.msra.mxu0 %v528
      %949 = vmatpush.msra.mxu0 %v527
      %950 = vmatpush.msra.mxu0 %v526
      %951 = vmatpush.msra.mxu0 %v525
      %952 = vmatpush.msra.mxu0 %v524
      %953 = vmatpush.msra.mxu0 %v523
      %954 = vmatpush.msra.mxu0 %v522
      %955 = vmatpush.msra.mxu0 %v521
      %956 = vmatpush.msra.mxu0 %v520
      %957 = vmatmul.f32.gmra.mxu0 %v376
      %v958 = vpop.f32.mrf.mxu0
      %v959 = vadd.f32 %v558, %v958
      %960 = vmatmul.f32.gmra.mxu0 %v377
      %v961 = vpop.f32.mrf.mxu0
      %v962 = vadd.f32 %v561, %v961
      %963 = vmatmul.f32.gmra.mxu0 %v378
      %v964 = vpop.f32.mrf.mxu0
      %v965 = vadd.f32 %v564, %v964
      %966 = vmatmul.f32.gmra.mxu0 %v379
      %v967 = vpop.f32.mrf.mxu0
      %v968 = vadd.f32 %v567, %v967
      %969 = vmatmul.f32.gmra.mxu0 %v380
      %v970 = vpop.f32.mrf.mxu0
      %v971 = vadd.f32 %v570, %v970
      %972 = vmatmul.f32.gmra.mxu0 %v381
      %v973 = vpop.f32.mrf.mxu0
      %v974 = vadd.f32 %v573, %v973
      %975 = vmatmul.f32.gmra.mxu0 %v382
      %v976 = vpop.f32.mrf.mxu0
      %v977 = vadd.f32 %v576, %v976
      %978 = vmatmul.f32.gmra.mxu0 %v383
      %v979 = vpop.f32.mrf.mxu0
      %v980 = vadd.f32 %v579, %v979
      %981 = vmatmul.f32.gmra.mxu0 %v384
      %v982 = vpop.f32.mrf.mxu0
      %v983 = vadd.f32 %v582, %v982
      %984 = vmatmul.f32.gmra.mxu0 %v385
      %v985 = vpop.f32.mrf.mxu0
      %v986 = vadd.f32 %v585, %v985
      %987 = vmatmul.f32.gmra.mxu0 %v386
      %v988 = vpop.f32.mrf.mxu0
      %v989 = vadd.f32 %v588, %v988
      %990 = vmatmul.f32.gmra.mxu0 %v387
      %v991 = vpop.f32.mrf.mxu0
      %v992 = vadd.f32 %v591, %v991
      %993 = vmatmul.f32.gmra.mxu0 %v388
      %v994 = vpop.f32.mrf.mxu0
      %v995 = vadd.f32 %v594, %v994
      %996 = vmatmul.f32.gmra.mxu0 %v389
      %v997 = vpop.f32.mrf.mxu0
      %v998 = vadd.f32 %v597, %v997
      %999 = vmatmul.f32.gmra.mxu0 %v390
      %v1000 = vpop.f32.mrf.mxu0
      %v1001 = vadd.f32 %v600, %v1000
      %1002 = vmatmul.f32.gmra.mxu0 %v391
      %v1003 = vpop.f32.mrf.mxu0
      %v1004 = vadd.f32 %v603, %v1003
      %1005 = vmatmul.f32.gmra.mxu0 %v392
      %v1006 = vpop.f32.mrf.mxu0
      %v1007 = vadd.f32 %v606, %v1006
      %1008 = vmatmul.f32.gmra.mxu0 %v393
      %v1009 = vpop.f32.mrf.mxu0
      %v1010 = vadd.f32 %v609, %v1009
      %1011 = vmatmul.f32.gmra.mxu0 %v394
      %v1012 = vpop.f32.mrf.mxu0
      %v1013 = vadd.f32 %v612, %v1012
      %1014 = vmatmul.f32.gmra.mxu0 %v395
      %v1015 = vpop.f32.mrf.mxu0
      %v1016 = vadd.f32 %v615, %v1015
      %1017 = vmatmul.f32.gmra.mxu0 %v396
      %v1018 = vpop.f32.mrf.mxu0
      %v1019 = vadd.f32 %v618, %v1018
      %1020 = vmatmul.f32.gmra.mxu0 %v397
      %v1021 = vpop.f32.mrf.mxu0
      %v1022 = vadd.f32 %v621, %v1021
      %1023 = vmatmul.f32.gmra.mxu0 %v398
      %v1024 = vpop.f32.mrf.mxu0
      %v1025 = vadd.f32 %v624, %v1024
      %1026 = vmatmul.f32.gmra.mxu0 %v399
      %v1027 = vpop.f32.mrf.mxu0
      %v1028 = vadd.f32 %v627, %v1027
      %1029 = vmatmul.f32.gmra.mxu0 %v400
      %v1030 = vpop.f32.mrf.mxu0
      %v1031 = vadd.f32 %v630, %v1030
      %1032 = vmatmul.f32.gmra.mxu0 %v401
      %v1033 = vpop.f32.mrf.mxu0
      %v1034 = vadd.f32 %v633, %v1033
      %1035 = vmatmul.f32.gmra.mxu0 %v402
      %v1036 = vpop.f32.mrf.mxu0
      %v1037 = vadd.f32 %v636, %v1036
      %1038 = vmatmul.f32.gmra.mxu0 %v403
      %v1039 = vpop.f32.mrf.mxu0
      %v1040 = vadd.f32 %v639, %v1039
      %1041 = vmatmul.f32.gmra.mxu0 %v404
      %v1042 = vpop.f32.mrf.mxu0
      %v1043 = vadd.f32 %v642, %v1042
      %1044 = vmatmul.f32.gmra.mxu0 %v405
      %v1045 = vpop.f32.mrf.mxu0
      %v1046 = vadd.f32 %v645, %v1045
      %1047 = vmatmul.f32.gmra.mxu0 %v406
      %v1048 = vpop.f32.mrf.mxu0
      %v1049 = vadd.f32 %v648, %v1048
      %1050 = vmatmul.f32.gmra.mxu0 %v407
      %v1051 = vpop.f32.mrf.mxu0
      %v1052 = vadd.f32 %v651, %v1051
      %1053 = vmatmul.f32.gmra.mxu0 %v408
      %v1054 = vpop.f32.mrf.mxu0
      %v1055 = vadd.f32 %v654, %v1054
      %1056 = vmatmul.f32.gmra.mxu0 %v409
      %v1057 = vpop.f32.mrf.mxu0
      %v1058 = vadd.f32 %v657, %v1057
      %1059 = vmatmul.f32.gmra.mxu0 %v410
      %v1060 = vpop.f32.mrf.mxu0
      %v1061 = vadd.f32 %v660, %v1060
      %1062 = vmatmul.f32.gmra.mxu0 %v411
      %v1063 = vpop.f32.mrf.mxu0
      %v1064 = vadd.f32 %v663, %v1063
      %1065 = vmatmul.f32.gmra.mxu0 %v412
      %v1066 = vpop.f32.mrf.mxu0
      %v1067 = vadd.f32 %v666, %v1066
      %1068 = vmatmul.f32.gmra.mxu0 %v413
      %v1069 = vpop.f32.mrf.mxu0
      %v1070 = vadd.f32 %v669, %v1069
      %1071 = vmatmul.f32.gmra.mxu0 %v414
      %v1072 = vpop.f32.mrf.mxu0
      %v1073 = vadd.f32 %v672, %v1072
      %1074 = vmatmul.f32.gmra.mxu0 %v415
      %v1075 = vpop.f32.mrf.mxu0
      %v1076 = vadd.f32 %v675, %v1075
      %1077 = vmatmul.f32.gmra.mxu0 %v416
      %v1078 = vpop.f32.mrf.mxu0
      %v1079 = vadd.f32 %v678, %v1078
      %1080 = vmatmul.f32.gmra.mxu0 %v417
      %v1081 = vpop.f32.mrf.mxu0
      %v1082 = vadd.f32 %v681, %v1081
      %1083 = vmatmul.f32.gmra.mxu0 %v418
      %v1084 = vpop.f32.mrf.mxu0
      %v1085 = vadd.f32 %v684, %v1084
      %1086 = vmatmul.f32.gmra.mxu0 %v419
      %v1087 = vpop.f32.mrf.mxu0
      %v1088 = vadd.f32 %v687, %v1087
      %1089 = vmatmul.f32.gmra.mxu0 %v420
      %v1090 = vpop.f32.mrf.mxu0
      %v1091 = vadd.f32 %v690, %v1090
      %1092 = vmatmul.f32.gmra.mxu0 %v421
      %v1093 = vpop.f32.mrf.mxu0
      %v1094 = vadd.f32 %v693, %v1093
      %1095 = vmatmul.f32.gmra.mxu0 %v422
      %v1096 = vpop.f32.mrf.mxu0
      %v1097 = vadd.f32 %v696, %v1096
      %1098 = vmatmul.f32.gmra.mxu0 %v423
      %v1099 = vpop.f32.mrf.mxu0
      %v1100 = vadd.f32 %v699, %v1099
      %1101 = vmatmul.f32.gmra.mxu0 %v424
      %v1102 = vpop.f32.mrf.mxu0
      %v1103 = vadd.f32 %v702, %v1102
      %1104 = vmatmul.f32.gmra.mxu0 %v425
      %v1105 = vpop.f32.mrf.mxu0
      %v1106 = vadd.f32 %v705, %v1105
      %1107 = vmatmul.f32.gmra.mxu0 %v426
      %v1108 = vpop.f32.mrf.mxu0
      %v1109 = vadd.f32 %v708, %v1108
      %1110 = vmatmul.f32.gmra.mxu0 %v427
      %v1111 = vpop.f32.mrf.mxu0
      %v1112 = vadd.f32 %v711, %v1111
      %1113 = vmatmul.f32.gmra.mxu0 %v428
      %v1114 = vpop.f32.mrf.mxu0
      %v1115 = vadd.f32 %v714, %v1114
      %1116 = vmatmul.f32.gmra.mxu0 %v429
      %v1117 = vpop.f32.mrf.mxu0
      %v1118 = vadd.f32 %v717, %v1117
      %1119 = vmatmul.f32.gmra.mxu0 %v430
      %v1120 = vpop.f32.mrf.mxu0
      %v1121 = vadd.f32 %v720, %v1120
      %1122 = vmatmul.f32.gmra.mxu0 %v431
      %v1123 = vpop.f32.mrf.mxu0
      %v1124 = vadd.f32 %v723, %v1123
      %1125 = vmatmul.f32.gmra.mxu0 %v432
      %v1126 = vpop.f32.mrf.mxu0
      %v1127 = vadd.f32 %v726, %v1126
      %1128 = vmatmul.f32.gmra.mxu0 %v433
      %v1129 = vpop.f32.mrf.mxu0
      %v1130 = vadd.f32 %v729, %v1129
      %1131 = vmatmul.f32.gmra.mxu0 %v434
      %v1132 = vpop.f32.mrf.mxu0
      %v1133 = vadd.f32 %v732, %v1132
      %1134 = vmatmul.f32.gmra.mxu0 %v435
      %v1135 = vpop.f32.mrf.mxu0
      %v1136 = vadd.f32 %v735, %v1135
      %1137 = vmatmul.f32.gmra.mxu0 %v436
      %v1138 = vpop.f32.mrf.mxu0
      %v1139 = vadd.f32 %v738, %v1138
      %1140 = vmatmul.f32.gmra.mxu0 %v437
      %v1141 = vpop.f32.mrf.mxu0
      %v1142 = vadd.f32 %v741, %v1141
      %1143 = vmatmul.f32.gmra.mxu0 %v438
      %v1144 = vpop.f32.mrf.mxu0
      %v1145 = vadd.f32 %v744, %v1144
      %1146 = vmatmul.f32.gmra.mxu0 %v439
      %v1147 = vpop.f32.mrf.mxu0
      %v1148 = vadd.f32 %v747, %v1147
      %1149 = vmatmul.f32.gmra.mxu0 %v440
      %v1150 = vpop.f32.mrf.mxu0
      %v1151 = vadd.f32 %v750, %v1150
      %1152 = vmatmul.f32.gmra.mxu0 %v441
      %v1153 = vpop.f32.mrf.mxu0
      %v1154 = vadd.f32 %v753, %v1153
      %1155 = vmatmul.f32.gmra.mxu0 %v442
      %v1156 = vpop.f32.mrf.mxu0
      %v1157 = vadd.f32 %v756, %v1156
      %1158 = vmatmul.f32.gmra.mxu0 %v443
      %v1159 = vpop.f32.mrf.mxu0
      %v1160 = vadd.f32 %v759, %v1159
      %1161 = vmatmul.f32.gmra.mxu0 %v444
      %v1162 = vpop.f32.mrf.mxu0
      %v1163 = vadd.f32 %v762, %v1162
      %1164 = vmatmul.f32.gmra.mxu0 %v445
      %v1165 = vpop.f32.mrf.mxu0
      %v1166 = vadd.f32 %v765, %v1165
      %1167 = vmatmul.f32.gmra.mxu0 %v446
      %v1168 = vpop.f32.mrf.mxu0
      %v1169 = vadd.f32 %v768, %v1168
      %1170 = vmatmul.f32.gmra.mxu0 %v447
      %v1171 = vpop.f32.mrf.mxu0
      %v1172 = vadd.f32 %v771, %v1171
      %1173 = vmatmul.f32.gmra.mxu0 %v448
      %v1174 = vpop.f32.mrf.mxu0
      %v1175 = vadd.f32 %v774, %v1174
      %1176 = vmatmul.f32.gmra.mxu0 %v449
      %v1177 = vpop.f32.mrf.mxu0
      %v1178 = vadd.f32 %v777, %v1177
      %1179 = vmatmul.f32.gmra.mxu0 %v450
      %v1180 = vpop.f32.mrf.mxu0
      %v1181 = vadd.f32 %v780, %v1180
      %1182 = vmatmul.f32.gmra.mxu0 %v451
      %v1183 = vpop.f32.mrf.mxu0
      %v1184 = vadd.f32 %v783, %v1183
      %1185 = vmatmul.f32.gmra.mxu0 %v452
      %v1186 = vpop.f32.mrf.mxu0
      %v1187 = vadd.f32 %v786, %v1186
      %1188 = vmatmul.f32.gmra.mxu0 %v453
      %v1189 = vpop.f32.mrf.mxu0
      %v1190 = vadd.f32 %v789, %v1189
      %1191 = vmatmul.f32.gmra.mxu0 %v454
      %v1192 = vpop.f32.mrf.mxu0
      %v1193 = vadd.f32 %v792, %v1192
      %1194 = vmatmul.f32.gmra.mxu0 %v455
      %v1195 = vpop.f32.mrf.mxu0
      %v1196 = vadd.f32 %v795, %v1195
      %1197 = vmatmul.f32.gmra.mxu0 %v456
      %v1198 = vpop.f32.mrf.mxu0
      %v1199 = vadd.f32 %v798, %v1198
      %1200 = vmatmul.f32.gmra.mxu0 %v457
      %v1201 = vpop.f32.mrf.mxu0
      %v1202 = vadd.f32 %v801, %v1201
      %1203 = vmatmul.f32.gmra.mxu0 %v458
      %v1204 = vpop.f32.mrf.mxu0
      %v1205 = vadd.f32 %v804, %v1204
      %1206 = vmatmul.f32.gmra.mxu0 %v459
      %v1207 = vpop.f32.mrf.mxu0
      %v1208 = vadd.f32 %v807, %v1207
      %1209 = vmatmul.f32.gmra.mxu0 %v460
      %v1210 = vpop.f32.mrf.mxu0
      %v1211 = vadd.f32 %v810, %v1210
      %1212 = vmatmul.f32.gmra.mxu0 %v461
      %v1213 = vpop.f32.mrf.mxu0
      %v1214 = vadd.f32 %v813, %v1213
      %1215 = vmatmul.f32.gmra.mxu0 %v462
      %v1216 = vpop.f32.mrf.mxu0
      %v1217 = vadd.f32 %v816, %v1216
      %1218 = vmatmul.f32.gmra.mxu0 %v463
      %v1219 = vpop.f32.mrf.mxu0
      %v1220 = vadd.f32 %v819, %v1219
      %1221 = vmatmul.f32.gmra.mxu0 %v464
      %v1222 = vpop.f32.mrf.mxu0
      %v1223 = vadd.f32 %v822, %v1222
      %1224 = vmatmul.f32.gmra.mxu0 %v465
      %v1225 = vpop.f32.mrf.mxu0
      %v1226 = vadd.f32 %v825, %v1225
      %1227 = vmatmul.f32.gmra.mxu0 %v466
      %v1228 = vpop.f32.mrf.mxu0
      %v1229 = vadd.f32 %v828, %v1228
      %1230 = vmatmul.f32.gmra.mxu0 %v467
      %v1231 = vpop.f32.mrf.mxu0
      %v1232 = vadd.f32 %v831, %v1231
      %1233 = vmatmul.f32.gmra.mxu0 %v468
      %v1234 = vpop.f32.mrf.mxu0
      %v1235 = vadd.f32 %v834, %v1234
      %1236 = vmatmul.f32.gmra.mxu0 %v469
      %v1237 = vpop.f32.mrf.mxu0
      %v1238 = vadd.f32 %v837, %v1237
      %1239 = vmatmul.f32.gmra.mxu0 %v470
      %v1240 = vpop.f32.mrf.mxu0
      %v1241 = vadd.f32 %v840, %v1240
      %1242 = vmatmul.f32.gmra.mxu0 %v471
      %v1243 = vpop.f32.mrf.mxu0
      %v1244 = vadd.f32 %v843, %v1243
      %1245 = vmatmul.f32.gmra.mxu0 %v472
      %v1246 = vpop.f32.mrf.mxu0
      %v1247 = vadd.f32 %v846, %v1246
      %1248 = vmatmul.f32.gmra.mxu0 %v473
      %v1249 = vpop.f32.mrf.mxu0
      %v1250 = vadd.f32 %v849, %v1249
      %1251 = vmatmul.f32.gmra.mxu0 %v474
      %v1252 = vpop.f32.mrf.mxu0
      %v1253 = vadd.f32 %v852, %v1252
      %1254 = vmatmul.f32.gmra.mxu0 %v475
      %v1255 = vpop.f32.mrf.mxu0
      %v1256 = vadd.f32 %v855, %v1255
      %1257 = vmatmul.f32.gmra.mxu0 %v476
      %v1258 = vpop.f32.mrf.mxu0
      %v1259 = vadd.f32 %v858, %v1258
      %1260 = vmatmul.f32.gmra.mxu0 %v477
      %v1261 = vpop.f32.mrf.mxu0
      %v1262 = vadd.f32 %v861, %v1261
      %1263 = vmatmul.f32.gmra.mxu0 %v478
      %v1264 = vpop.f32.mrf.mxu0
      %v1265 = vadd.f32 %v864, %v1264
      %1266 = vmatmul.f32.gmra.mxu0 %v479
      %v1267 = vpop.f32.mrf.mxu0
      %v1268 = vadd.f32 %v867, %v1267
      %1269 = vmatmul.f32.gmra.mxu0 %v480
      %v1270 = vpop.f32.mrf.mxu0
      %v1271 = vadd.f32 %v870, %v1270
      %1272 = vmatmul.f32.gmra.mxu0 %v481
      %v1273 = vpop.f32.mrf.mxu0
      %v1274 = vadd.f32 %v873, %v1273
      %1275 = vmatmul.f32.gmra.mxu0 %v482
      %v1276 = vpop.f32.mrf.mxu0
      %v1277 = vadd.f32 %v876, %v1276
      %1278 = vmatmul.f32.gmra.mxu0 %v483
      %v1279 = vpop.f32.mrf.mxu0
      %v1280 = vadd.f32 %v879, %v1279
      %1281 = vmatmul.f32.gmra.mxu0 %v484
      %v1282 = vpop.f32.mrf.mxu0
      %v1283 = vadd.f32 %v882, %v1282
      %1284 = vmatmul.f32.gmra.mxu0 %v485
      %v1285 = vpop.f32.mrf.mxu0
      %v1286 = vadd.f32 %v885, %v1285
      %1287 = vmatmul.f32.gmra.mxu0 %v486
      %v1288 = vpop.f32.mrf.mxu0
      %v1289 = vadd.f32 %v888, %v1288
      %1290 = vmatmul.f32.gmra.mxu0 %v487
      %v1291 = vpop.f32.mrf.mxu0
      %v1292 = vadd.f32 %v891, %v1291
      %1293 = vmatmul.f32.gmra.mxu0 %v488
      %v1294 = vpop.f32.mrf.mxu0
      %v1295 = vadd.f32 %v894, %v1294
      %1296 = vmatmul.f32.gmra.mxu0 %v489
      %v1297 = vpop.f32.mrf.mxu0
      %v1298 = vadd.f32 %v897, %v1297
      %1299 = vmatmul.f32.gmra.mxu0 %v490
      %v1300 = vpop.f32.mrf.mxu0
      %v1301 = vadd.f32 %v900, %v1300
      %1302 = vmatmul.f32.gmra.mxu0 %v491
      %v1303 = vpop.f32.mrf.mxu0
      %v1304 = vadd.f32 %v903, %v1303
      %1305 = vmatmul.f32.gmra.mxu0 %v492
      %v1306 = vpop.f32.mrf.mxu0
      %v1307 = vadd.f32 %v906, %v1306
      %1308 = vmatmul.f32.gmra.mxu0 %v493
      %v1309 = vpop.f32.mrf.mxu0
      %v1310 = vadd.f32 %v909, %v1309
      %1311 = vmatmul.f32.gmra.mxu0 %v494
      %v1312 = vpop.f32.mrf.mxu0
      %v1313 = vadd.f32 %v912, %v1312
      %1314 = vmatmul.f32.gmra.mxu0 %v495
      %v1315 = vpop.f32.mrf.mxu0
      %v1316 = vadd.f32 %v915, %v1315
      %1317 = vmatmul.f32.gmra.mxu0 %v496
      %v1318 = vpop.f32.mrf.mxu0
      %v1319 = vadd.f32 %v918, %v1318
      %1320 = vmatmul.f32.gmra.mxu0 %v497
      %v1321 = vpop.f32.mrf.mxu0
      %v1322 = vadd.f32 %v921, %v1321
      %1323 = vmatmul.f32.gmra.mxu0 %v498
      %v1324 = vpop.f32.mrf.mxu0
      %v1325 = vadd.f32 %v924, %v1324
      %1326 = vmatmul.f32.gmra.mxu0 %v499
      %v1327 = vpop.f32.mrf.mxu0
      %v1328 = vadd.f32 %v927, %v1327
      %1329 = vmatmul.f32.gmra.mxu0 %v500
      %v1330 = vpop.f32.mrf.mxu0
      %v1331 = vadd.f32 %v930, %v1330
      %1332 = vmatmul.f32.gmra.mxu0 %v501
      %v1333 = vpop.f32.mrf.mxu0
      %v1334 = vadd.f32 %v933, %v1333
      %1335 = vmatmul.f32.gmra.mxu0 %v502
      %v1336 = vpop.f32.mrf.mxu0
      %v1337 = vadd.f32 %v936, %v1336
      %1338 = vmatmul.f32.gmra.mxu0 %v503
      %v1339 = vpop.f32.mrf.mxu0
      %v1340 = vadd.f32 %v939, %v1339
      %1341 = vdwg.mxu0
      %v1342 = vmul.f32 %v959, 0.2
      %v1343 = vmul.f32 %v962, 0.2
      %v1344 = vmul.f32 %v965, 0.2
      %v1345 = vmul.f32 %v968, 0.2
      %v1346 = vmul.f32 %v971, 0.2
      %v1347 = vmul.f32 %v974, 0.2
      %v1348 = vmul.f32 %v977, 0.2
      %v1349 = vmul.f32 %v980, 0.2
      %v1350 = vmul.f32 %v983, 0.2
      %v1351 = vmul.f32 %v986, 0.2
      %v1352 = vmul.f32 %v989, 0.2
      %v1353 = vmul.f32 %v992, 0.2
      %v1354 = vmul.f32 %v995, 0.2
      %v1355 = vmul.f32 %v998, 0.2
      %v1356 = vmul.f32 %v1001, 0.2
      %v1357 = vmul.f32 %v1004, 0.2
      %v1358 = vmul.f32 %v1007, 0.2
      %v1359 = vmul.f32 %v1010, 0.2
      %v1360 = vmul.f32 %v1013, 0.2
      %v1361 = vmul.f32 %v1016, 0.2
      %v1362 = vmul.f32 %v1019, 0.2
      %v1363 = vmul.f32 %v1022, 0.2
      %v1364 = vmul.f32 %v1025, 0.2
      %v1365 = vmul.f32 %v1028, 0.2
      %v1366 = vmul.f32 %v1031, 0.2
      %v1367 = vmul.f32 %v1034, 0.2
      %v1368 = vmul.f32 %v1037, 0.2
      %v1369 = vmul.f32 %v1040, 0.2
      %v1370 = vmul.f32 %v1043, 0.2
      %v1371 = vmul.f32 %v1046, 0.2
      %v1372 = vmul.f32 %v1049, 0.2
      %v1373 = vmul.f32 %v1052, 0.2
      %v1374 = vmul.f32 %v1055, 0.2
      %v1375 = vmul.f32 %v1058, 0.2
      %v1376 = vmul.f32 %v1061, 0.2
      %v1377 = vmul.f32 %v1064, 0.2
      %v1378 = vmul.f32 %v1067, 0.2
      %v1379 = vmul.f32 %v1070, 0.2
      %v1380 = vmul.f32 %v1073, 0.2
      %v1381 = vmul.f32 %v1076, 0.2
      %v1382 = vmul.f32 %v1079, 0.2
      %v1383 = vmul.f32 %v1082, 0.2
      %v1384 = vmul.f32 %v1085, 0.2
      %v1385 = vmul.f32 %v1088, 0.2
      %v1386 = vmul.f32 %v1091, 0.2
      %v1387 = vmul.f32 %v1094, 0.2
      %v1388 = vmul.f32 %v1097, 0.2
      %v1389 = vmul.f32 %v1100, 0.2
      %v1390 = vmul.f32 %v1103, 0.2
      %v1391 = vmul.f32 %v1106, 0.2
      %v1392 = vmul.f32 %v1109, 0.2
      %v1393 = vmul.f32 %v1112, 0.2
      %v1394 = vmul.f32 %v1115, 0.2
      %v1395 = vmul.f32 %v1118, 0.2
      %v1396 = vmul.f32 %v1121, 0.2
      %v1397 = vmul.f32 %v1124, 0.2
      %v1398 = vmul.f32 %v1127, 0.2
      %v1399 = vmul.f32 %v1130, 0.2
      %v1400 = vmul.f32 %v1133, 0.2
      %v1401 = vmul.f32 %v1136, 0.2
      %v1402 = vmul.f32 %v1139, 0.2
      %v1403 = vmul.f32 %v1142, 0.2
      %v1404 = vmul.f32 %v1145, 0.2
      %v1405 = vmul.f32 %v1148, 0.2
      %v1406 = vmul.f32 %v1151, 0.2
      %v1407 = vmul.f32 %v1154, 0.2
      %v1408 = vmul.f32 %v1157, 0.2
      %v1409 = vmul.f32 %v1160, 0.2
      %v1410 = vmul.f32 %v1163, 0.2
      %v1411 = vmul.f32 %v1166, 0.2
      %v1412 = vmul.f32 %v1169, 0.2
      %v1413 = vmul.f32 %v1172, 0.2
      %v1414 = vmul.f32 %v1175, 0.2
      %v1415 = vmul.f32 %v1178, 0.2
      %v1416 = vmul.f32 %v1181, 0.2
      %v1417 = vmul.f32 %v1184, 0.2
      %v1418 = vmul.f32 %v1187, 0.2
      %v1419 = vmul.f32 %v1190, 0.2
      %v1420 = vmul.f32 %v1193, 0.2
      %v1421 = vmul.f32 %v1196, 0.2
      %v1422 = vmul.f32 %v1199, 0.2
      %v1423 = vmul.f32 %v1202, 0.2
      %v1424 = vmul.f32 %v1205, 0.2
      %v1425 = vmul.f32 %v1208, 0.2
      %v1426 = vmul.f32 %v1211, 0.2
      %v1427 = vmul.f32 %v1214, 0.2
      %v1428 = vmul.f32 %v1217, 0.2
      %v1429 = vmul.f32 %v1220, 0.2
      %v1430 = vmul.f32 %v1223, 0.2
      %v1431 = vmul.f32 %v1226, 0.2
      %v1432 = vmul.f32 %v1229, 0.2
      %v1433 = vmul.f32 %v1232, 0.2
      %v1434 = vmul.f32 %v1235, 0.2
      %v1435 = vmul.f32 %v1238, 0.2
      %v1436 = vmul.f32 %v1241, 0.2
      %v1437 = vmul.f32 %v1244, 0.2
      %v1438 = vmul.f32 %v1247, 0.2
      %v1439 = vmul.f32 %v1250, 0.2
      %v1440 = vmul.f32 %v1253, 0.2
      %v1441 = vmul.f32 %v1256, 0.2
      %v1442 = vmul.f32 %v1259, 0.2
      %v1443 = vmul.f32 %v1262, 0.2
      %v1444 = vmul.f32 %v1265, 0.2
      %v1445 = vmul.f32 %v1268, 0.2
      %v1446 = vmul.f32 %v1271, 0.2
      %v1447 = vmul.f32 %v1274, 0.2
      %v1448 = vmul.f32 %v1277, 0.2
      %v1449 = vmul.f32 %v1280, 0.2
      %v1450 = vmul.f32 %v1283, 0.2
      %v1451 = vmul.f32 %v1286, 0.2
      %v1452 = vmul.f32 %v1289, 0.2
      %v1453 = vmul.f32 %v1292, 0.2
      %v1454 = vmul.f32 %v1295, 0.2
      %v1455 = vmul.f32 %v1298, 0.2
      %v1456 = vmul.f32 %v1301, 0.2
      %v1457 = vmul.f32 %v1304, 0.2
      %v1458 = vmul.f32 %v1307, 0.2
      %v1459 = vmul.f32 %v1310, 0.2
      %v1460 = vmul.f32 %v1313, 0.2
      %v1461 = vmul.f32 %v1316, 0.2
      %v1462 = vmul.f32 %v1319, 0.2
      %v1463 = vmul.f32 %v1322, 0.2
      %v1464 = vmul.f32 %v1325, 0.2
      %v1465 = vmul.f32 %v1328, 0.2
      %v1466 = vmul.f32 %v1331, 0.2
      %v1467 = vmul.f32 %v1334, 0.2
      %v1468 = vmul.f32 %v1337, 0.2
      %v1469 = vmul.f32 %v1340, 0.2
      %v1470 = vmax.f32 %v959, %v1342
      %v1471 = vmax.f32 %v962, %v1343
      %v1472 = vmax.f32 %v965, %v1344
      %v1473 = vmax.f32 %v968, %v1345
      %v1474 = vmax.f32 %v971, %v1346
      %v1475 = vmax.f32 %v974, %v1347
      %v1476 = vmax.f32 %v977, %v1348
      %v1477 = vmax.f32 %v980, %v1349
      %v1478 = vmax.f32 %v983, %v1350
      %v1479 = vmax.f32 %v986, %v1351
      %v1480 = vmax.f32 %v989, %v1352
      %v1481 = vmax.f32 %v992, %v1353
      %v1482 = vmax.f32 %v995, %v1354
      %v1483 = vmax.f32 %v998, %v1355
      %v1484 = vmax.f32 %v1001, %v1356
      %v1485 = vmax.f32 %v1004, %v1357
      %v1486 = vmax.f32 %v1007, %v1358
      %v1487 = vmax.f32 %v1010, %v1359
      %v1488 = vmax.f32 %v1013, %v1360
      %v1489 = vmax.f32 %v1016, %v1361
      %v1490 = vmax.f32 %v1019, %v1362
      %v1491 = vmax.f32 %v1022, %v1363
      %v1492 = vmax.f32 %v1025, %v1364
      %v1493 = vmax.f32 %v1028, %v1365
      %v1494 = vmax.f32 %v1031, %v1366
      %v1495 = vmax.f32 %v1034, %v1367
      %v1496 = vmax.f32 %v1037, %v1368
      %v1497 = vmax.f32 %v1040, %v1369
      %v1498 = vmax.f32 %v1043, %v1370
      %v1499 = vmax.f32 %v1046, %v1371
      %v1500 = vmax.f32 %v1049, %v1372
      %v1501 = vmax.f32 %v1052, %v1373
      %v1502 = vmax.f32 %v1055, %v1374
      %v1503 = vmax.f32 %v1058, %v1375
      %v1504 = vmax.f32 %v1061, %v1376
      %v1505 = vmax.f32 %v1064, %v1377
      %v1506 = vmax.f32 %v1067, %v1378
      %v1507 = vmax.f32 %v1070, %v1379
      %v1508 = vmax.f32 %v1073, %v1380
      %v1509 = vmax.f32 %v1076, %v1381
      %v1510 = vmax.f32 %v1079, %v1382
      %v1511 = vmax.f32 %v1082, %v1383
      %v1512 = vmax.f32 %v1085, %v1384
      %v1513 = vmax.f32 %v1088, %v1385
      %v1514 = vmax.f32 %v1091, %v1386
      %v1515 = vmax.f32 %v1094, %v1387
      %v1516 = vmax.f32 %v1097, %v1388
      %v1517 = vmax.f32 %v1100, %v1389
      %v1518 = vmax.f32 %v1103, %v1390
      %v1519 = vmax.f32 %v1106, %v1391
      %v1520 = vmax.f32 %v1109, %v1392
      %v1521 = vmax.f32 %v1112, %v1393
      %v1522 = vmax.f32 %v1115, %v1394
      %v1523 = vmax.f32 %v1118, %v1395
      %v1524 = vmax.f32 %v1121, %v1396
      %v1525 = vmax.f32 %v1124, %v1397
      %v1526 = vmax.f32 %v1127, %v1398
      %v1527 = vmax.f32 %v1130, %v1399
      %v1528 = vmax.f32 %v1133, %v1400
      %v1529 = vmax.f32 %v1136, %v1401
      %v1530 = vmax.f32 %v1139, %v1402
      %v1531 = vmax.f32 %v1142, %v1403
      %v1532 = vmax.f32 %v1145, %v1404
      %v1533 = vmax.f32 %v1148, %v1405
      %v1534 = vmax.f32 %v1151, %v1406
      %v1535 = vmax.f32 %v1154, %v1407
      %v1536 = vmax.f32 %v1157, %v1408
      %v1537 = vmax.f32 %v1160, %v1409
      %v1538 = vmax.f32 %v1163, %v1410
      %v1539 = vmax.f32 %v1166, %v1411
      %v1540 = vmax.f32 %v1169, %v1412
      %v1541 = vmax.f32 %v1172, %v1413
      %v1542 = vmax.f32 %v1175, %v1414
      %v1543 = vmax.f32 %v1178, %v1415
      %v1544 = vmax.f32 %v1181, %v1416
      %v1545 = vmax.f32 %v1184, %v1417
      %v1546 = vmax.f32 %v1187, %v1418
      %v1547 = vmax.f32 %v1190, %v1419
      %v1548 = vmax.f32 %v1193, %v1420
      %v1549 = vmax.f32 %v1196, %v1421
      %v1550 = vmax.f32 %v1199, %v1422
      %v1551 = vmax.f32 %v1202, %v1423
      %v1552 = vmax.f32 %v1205, %v1424
      %v1553 = vmax.f32 %v1208, %v1425
      %v1554 = vmax.f32 %v1211, %v1426
      %v1555 = vmax.f32 %v1214, %v1427
      %v1556 = vmax.f32 %v1217, %v1428
      %v1557 = vmax.f32 %v1220, %v1429
      %v1558 = vmax.f32 %v1223, %v1430
      %v1559 = vmax.f32 %v1226, %v1431
      %v1560 = vmax.f32 %v1229, %v1432
      %v1561 = vmax.f32 %v1232, %v1433
      %v1562 = vmax.f32 %v1235, %v1434
      %v1563 = vmax.f32 %v1238, %v1435
      %v1564 = vmax.f32 %v1241, %v1436
      %v1565 = vmax.f32 %v1244, %v1437
      %v1566 = vmax.f32 %v1247, %v1438
      %v1567 = vmax.f32 %v1250, %v1439
      %v1568 = vmax.f32 %v1253, %v1440
      %v1569 = vmax.f32 %v1256, %v1441
      %v1570 = vmax.f32 %v1259, %v1442
      %v1571 = vmax.f32 %v1262, %v1443
      %v1572 = vmax.f32 %v1265, %v1444
      %v1573 = vmax.f32 %v1268, %v1445
      %v1574 = vmax.f32 %v1271, %v1446
      %v1575 = vmax.f32 %v1274, %v1447
      %v1576 = vmax.f32 %v1277, %v1448
      %v1577 = vmax.f32 %v1280, %v1449
      %v1578 = vmax.f32 %v1283, %v1450
      %v1579 = vmax.f32 %v1286, %v1451
      %v1580 = vmax.f32 %v1289, %v1452
      %v1581 = vmax.f32 %v1292, %v1453
      %v1582 = vmax.f32 %v1295, %v1454
      %v1583 = vmax.f32 %v1298, %v1455
      %v1584 = vmax.f32 %v1301, %v1456
      %v1585 = vmax.f32 %v1304, %v1457
      %v1586 = vmax.f32 %v1307, %v1458
      %v1587 = vmax.f32 %v1310, %v1459
      %v1588 = vmax.f32 %v1313, %v1460
      %v1589 = vmax.f32 %v1316, %v1461
      %v1590 = vmax.f32 %v1319, %v1462
      %v1591 = vmax.f32 %v1322, %v1463
      %v1592 = vmax.f32 %v1325, %v1464
      %v1593 = vmax.f32 %v1328, %v1465
      %v1594 = vmax.f32 %v1331, %v1466
      %v1595 = vmax.f32 %v1334, %v1467
      %v1596 = vmax.f32 %v1337, %v1468
      %v1597 = vmax.f32 %v1340, %v1469
      %1598 = vst [vmem:[%s240] sm:$0xff] %v1470
      %1599 = vst [vmem:[%s240 + $0x8] sm:$0xff] %v1471
      %1600 = vst [vmem:[%s240 + $0x10] sm:$0xff] %v1472
      %1601 = vst [vmem:[%s240 + $0x18] sm:$0xff] %v1473
      %1602 = vst [vmem:[%s240 + $0x20] sm:$0xff] %v1474
      %1603 = vst [vmem:[%s240 + $0x28] sm:$0xff] %v1475
      %1604 = vst [vmem:[%s240 + $0x30] sm:$0xff] %v1476
      %1605 = vst [vmem:[%s240 + $0x38] sm:$0xff] %v1477
      %1606 = vst [vmem:[%s240 + $0x40] sm:$0xff] %v1478
      %1607 = vst [vmem:[%s240 + $0x48] sm:$0xff] %v1479
      %1608 = vst [vmem:[%s240 + $0x50] sm:$0xff] %v1480
      %1609 = vst [vmem:[%s240 + $0x58] sm:$0xff] %v1481
      %1610 = vst [vmem:[%s240 + $0x60] sm:$0xff] %v1482
      %1611 = vst [vmem:[%s240 + $0x68] sm:$0xff] %v1483
      %1612 = vst [vmem:[%s240 + $0x70] sm:$0xff] %v1484
      %1613 = vst [vmem:[%s240 + $0x78] sm:$0xff] %v1485
      %1614 = vst [vmem:[%s240 + $0x80] sm:$0xff] %v1486
      %1615 = vst [vmem:[%s240 + $0x88] sm:$0xff] %v1487
      %1616 = vst [vmem:[%s240 + $0x90] sm:$0xff] %v1488
      %1617 = vst [vmem:[%s240 + $0x98] sm:$0xff] %v1489
      %1618 = vst [vmem:[%s240 + $0xa0] sm:$0xff] %v1490
      %1619 = vst [vmem:[%s240 + $0xa8] sm:$0xff] %v1491
      %1620 = vst [vmem:[%s240 + $0xb0] sm:$0xff] %v1492
      %1621 = vst [vmem:[%s240 + $0xb8] sm:$0xff] %v1493
      %1622 = vst [vmem:[%s240 + $0xc0] sm:$0xff] %v1494
      %1623 = vst [vmem:[%s240 + $0xc8] sm:$0xff] %v1495
      %1624 = vst [vmem:[%s240 + $0xd0] sm:$0xff] %v1496
      %1625 = vst [vmem:[%s240 + $0xd8] sm:$0xff] %v1497
      %1626 = vst [vmem:[%s240 + $0xe0] sm:$0xff] %v1498
      %1627 = vst [vmem:[%s240 + $0xe8] sm:$0xff] %v1499
      %1628 = vst [vmem:[%s240 + $0xf0] sm:$0xff] %v1500
      %1629 = vst [vmem:[%s240 + $0xf8] sm:$0xff] %v1501
      %1630 = vst [vmem:[%s240 + $0x100] sm:$0xff] %v1502
      %1631 = vst [vmem:[%s240 + $0x108] sm:$0xff] %v1503
      %1632 = vst [vmem:[%s240 + $0x110] sm:$0xff] %v1504
      %1633 = vst [vmem:[%s240 + $0x118] sm:$0xff] %v1505
      %1634 = vst [vmem:[%s240 + $0x120] sm:$0xff] %v1506
      %1635 = vst [vmem:[%s240 + $0x128] sm:$0xff] %v1507
      %1636 = vst [vmem:[%s240 + $0x130] sm:$0xff] %v1508
      %1637 = vst [vmem:[%s240 + $0x138] sm:$0xff] %v1509
      %1638 = vst [vmem:[%s240 + $0x140] sm:$0xff] %v1510
      %1639 = vst [vmem:[%s240 + $0x148] sm:$0xff] %v1511
      %1640 = vst [vmem:[%s240 + $0x150] sm:$0xff] %v1512
      %1641 = vst [vmem:[%s240 + $0x158] sm:$0xff] %v1513
      %1642 = vst [vmem:[%s240 + $0x160] sm:$0xff] %v1514
      %1643 = vst [vmem:[%s240 + $0x168] sm:$0xff] %v1515
      %1644 = vst [vmem:[%s240 + $0x170] sm:$0xff] %v1516
      %1645 = vst [vmem:[%s240 + $0x178] sm:$0xff] %v1517
      %1646 = vst [vmem:[%s240 + $0x180] sm:$0xff] %v1518
      %1647 = vst [vmem:[%s240 + $0x188] sm:$0xff] %v1519
      %1648 = vst [vmem:[%s240 + $0x190] sm:$0xff] %v1520
      %1649 = vst [vmem:[%s240 + $0x198] sm:$0xff] %v1521
      %1650 = vst [vmem:[%s240 + $0x1a0] sm:$0xff] %v1522
      %1651 = vst [vmem:[%s240 + $0x1a8] sm:$0xff] %v1523
      %1652 = vst [vmem:[%s240 + $0x1b0] sm:$0xff] %v1524
      %1653 = vst [vmem:[%s240 + $0x1b8] sm:$0xff] %v1525
      %1654 = vst [vmem:[%s240 + $0x1c0] sm:$0xff] %v1526
      %1655 = vst [vmem:[%s240 + $0x1c8] sm:$0xff] %v1527
      %1656 = vst [vmem:[%s240 + $0x1d0] sm:$0xff] %v1528
      %1657 = vst [vmem:[%s240 + $0x1d8] sm:$0xff] %v1529
      %1658 = vst [vmem:[%s240 + $0x1e0] sm:$0xff] %v1530
      %1659 = vst [vmem:[%s240 + $0x1e8] sm:$0xff] %v1531
      %1660 = vst [vmem:[%s240 + $0x1f0] sm:$0xff] %v1532
      %1661 = vst [vmem:[%s240 + $0x1f8] sm:$0xff] %v1533
      %1662 = vst [vmem:[%s240 + $0x200] sm:$0xff] %v1534
      %1663 = vst [vmem:[%s240 + $0x208] sm:$0xff] %v1535
      %1664 = vst [vmem:[%s240 + $0x210] sm:$0xff] %v1536
      %1665 = vst [vmem:[%s240 + $0x218] sm:$0xff] %v1537
      %1666 = vst [vmem:[%s240 + $0x220] sm:$0xff] %v1538
      %1667 = vst [vmem:[%s240 + $0x228] sm:$0xff] %v1539
      %1668 = vst [vmem:[%s240 + $0x230] sm:$0xff] %v1540
      %1669 = vst [vmem:[%s240 + $0x238] sm:$0xff] %v1541
      %1670 = vst [vmem:[%s240 + $0x240] sm:$0xff] %v1542
      %1671 = vst [vmem:[%s240 + $0x248] sm:$0xff] %v1543
      %1672 = vst [vmem:[%s240 + $0x250] sm:$0xff] %v1544
      %1673 = vst [vmem:[%s240 + $0x258] sm:$0xff] %v1545
      %1674 = vst [vmem:[%s240 + $0x260] sm:$0xff] %v1546
      %1675 = vst [vmem:[%s240 + $0x268] sm:$0xff] %v1547
      %1676 = vst [vmem:[%s240 + $0x270] sm:$0xff] %v1548
      %1677 = vst [vmem:[%s240 + $0x278] sm:$0xff] %v1549
      %1678 = vst [vmem:[%s240 + $0x280] sm:$0xff] %v1550
      %1679 = vst [vmem:[%s240 + $0x288] sm:$0xff] %v1551
      %1680 = vst [vmem:[%s240 + $0x290] sm:$0xff] %v1552
      %1681 = vst [vmem:[%s240 + $0x298] sm:$0xff] %v1553
      %1682 = vst [vmem:[%s240 + $0x2a0] sm:$0xff] %v1554
      %1683 = vst [vmem:[%s240 + $0x2a8] sm:$0xff] %v1555
      %1684 = vst [vmem:[%s240 + $0x2b0] sm:$0xff] %v1556
      %1685 = vst [vmem:[%s240 + $0x2b8] sm:$0xff] %v1557
      %1686 = vst [vmem:[%s240 + $0x2c0] sm:$0xff] %v1558
      %1687 = vst [vmem:[%s240 + $0x2c8] sm:$0xff] %v1559
      %1688 = vst [vmem:[%s240 + $0x2d0] sm:$0xff] %v1560
      %1689 = vst [vmem:[%s240 + $0x2d8] sm:$0xff] %v1561
      %1690 = vst [vmem:[%s240 + $0x2e0] sm:$0xff] %v1562
      %1691 = vst [vmem:[%s240 + $0x2e8] sm:$0xff] %v1563
      %1692 = vst [vmem:[%s240 + $0x2f0] sm:$0xff] %v1564
      %1693 = vst [vmem:[%s240 + $0x2f8] sm:$0xff] %v1565
      %1694 = vst [vmem:[%s240 + $0x300] sm:$0xff] %v1566
      %1695 = vst [vmem:[%s240 + $0x308] sm:$0xff] %v1567
      %1696 = vst [vmem:[%s240 + $0x310] sm:$0xff] %v1568
      %1697 = vst [vmem:[%s240 + $0x318] sm:$0xff] %v1569
      %1698 = vst [vmem:[%s240 + $0x320] sm:$0xff] %v1570
      %1699 = vst [vmem:[%s240 + $0x328] sm:$0xff] %v1571
      %1700 = vst [vmem:[%s240 + $0x330] sm:$0xff] %v1572
      %1701 = vst [vmem:[%s240 + $0x338] sm:$0xff] %v1573
      %1702 = vst [vmem:[%s240 + $0x340] sm:$0xff] %v1574
      %1703 = vst [vmem:[%s240 + $0x348] sm:$0xff] %v1575
      %1704 = vst [vmem:[%s240 + $0x350] sm:$0xff] %v1576
      %1705 = vst [vmem:[%s240 + $0x358] sm:$0xff] %v1577
      %1706 = vst [vmem:[%s240 + $0x360] sm:$0xff] %v1578
      %1707 = vst [vmem:[%s240 + $0x368] sm:$0xff] %v1579
      %1708 = vst [vmem:[%s240 + $0x370] sm:$0xff] %v1580
      %1709 = vst [vmem:[%s240 + $0x378] sm:$0xff] %v1581
      %1710 = vst [vmem:[%s240 + $0x380] sm:$0xff] %v1582
      %1711 = vst [vmem:[%s240 + $0x388] sm:$0xff] %v1583
      %1712 = vst [vmem:[%s240 + $0x390] sm:$0xff] %v1584
      %1713 = vst [vmem:[%s240 + $0x398] sm:$0xff] %v1585
      %1714 = vst [vmem:[%s240 + $0x3a0] sm:$0xff] %v1586
      %1715 = vst [vmem:[%s240 + $0x3a8] sm:$0xff] %v1587
      %1716 = vst [vmem:[%s240 + $0x3b0] sm:$0xff] %v1588
      %1717 = vst [vmem:[%s240 + $0x3b8] sm:$0xff] %v1589
      %1718 = vst [vmem:[%s240 + $0x3c0] sm:$0xff] %v1590
      %1719 = vst [vmem:[%s240 + $0x3c8] sm:$0xff] %v1591
      %1720 = vst [vmem:[%s240 + $0x3d0] sm:$0xff] %v1592
      %1721 = vst [vmem:[%s240 + $0x3d8] sm:$0xff] %v1593
      %1722 = vst [vmem:[%s240 + $0x3e0] sm:$0xff] %v1594
      %1723 = vst [vmem:[%s240 + $0x3e8] sm:$0xff] %v1595
      %1724 = vst [vmem:[%s240 + $0x3f0] sm:$0xff] %v1596
      %1725 = vst [vmem:[%s240 + $0x3f8] sm:$0xff] %v1597
      %s1726 = smul.u32 32, %s20
      %p1727 = scmp.lt.s32.totalorder %s19, 1
      %s1728 = scalar_select %p1727, %s19, 1
      %p1729 = scmp.lt.s32.totalorder %s1726, 31
      %s1730 = scalar_select %p1729, %s1726, 31
      %p1731 = scmp.lt.s32.totalorder %s21, 0
      %s1732 = scalar_select %p1731, %s21, 0
      %s1733 = smul.addr %s1730, 4
      %s1734 = sadd.s32 %s1732, %s1733
      %s1735 = smul.addr %s1728, 128
      %s1736 = sadd.s32 %s1734, %s1735
      %s1737 = smul.addr %s1736, 8
      %s1738 = scalar_lea.vmem %s3, %s1737
      // Predicated region
      $region33: #{discriminator_forward.5} parent=31 // pred_check
        %p1739 = pneg %p133
      $region34: #{discriminator_forward.5} parent=31 // pred_check_branch
        %1741 = sbr.rel (%p1739) target = $region36
      $region35: #{discriminator_forward.5} parent=31 // pred_region
        %s1742 = smul.u32 32, %s20
      $region36: #{discriminator_forward.5} parent=31 // pred_fallthru
        _
    $region32: #{discriminator_forward.5} parent=5 // pred_fallthru
      _
    %p1743 = scmp.le.s32.totalorder 2, %s9
    // Predicated region
    $region37: #{discriminator_forward.5} parent=5 // pred_check
      %p1744 = pneg %p1743
    $region38: #{discriminator_forward.5} parent=5 // pred_check_branch
      %1746 = sbr.rel (%p1744) target = $region40
    $region39: #{discriminator_forward.5} parent=5 // pred_region
      %s1747 = ssub.s32 %s9, 2
      // Predicated region
      $region41: #{discriminator_forward.5} parent=39 // pred_check
        %p1748 = pneg %p139
      $region42: #{discriminator_forward.5} parent=39 // pred_check_branch
        %1750 = sbr.rel (%p1748) target = $region44
      $region43: #{discriminator_forward.5} parent=39 // pred_region
        %s1751 = smul.u32 32, %s23
        %p1752 = scmp.lt.s32.totalorder %s22, 1
        %s1753 = scalar_select %p1752, %s22, 1
        %p1754 = scmp.lt.s32.totalorder %s1751, 31
        %s1755 = scalar_select %p1754, %s1751, 31
        %p1756 = scmp.lt.s32.totalorder %s24, 0
        %s1757 = scalar_select %p1756, %s24, 0
        %s1758 = smul.addr %s1755, 4
        %s1759 = sadd.s32 %s1757, %s1758
        %s1760 = smul.addr %s1753, 128
        %s1761 = sadd.s32 %s1759, %s1760
        %s1762 = smul.addr %s1761, 8
        %s1763 = scalar_lea.vmem %s3, %s1762
      $region44: #{discriminator_forward.5} parent=39 // pred_fallthru
        _
    $region40: #{discriminator_forward.5} parent=5 // pred_fallthru
      _
  $region6: #{discriminator_forward.5} parent=0 // loop_footer
    %s13 = sadd.s32 1, %s9
  $region7: #{discriminator_forward.5} parent=0 // loop_footer_branch
    %8 = sbr.rel target = $region3
  $region8: #{discriminator_forward.5} parent=0 // loop_exit
    _

// kernel: discriminator_forward.6
$region0: #{discriminator_forward.6}
  #allocation0 [shape = 'u32[]', space=smem, size = 0x4, offset = 0x4, fixed_abs, tag = 'smem constant byte address 0x4 - core index']
  #allocation1 [shape = 'u32[72,128]{1,0:T(1,128)}', space=vmem, size = 0x9000, scoped, tag = 'internal scratch']
  %s0 = inlined_call_operand.vmem [shape: f32[2,17,16,128], index: 0, kind: input, shape index: {}]
  %s1 = inlined_call_operand.vmem [shape: f32[256,128], index: 1, kind: input, shape index: {}]
  %s2 = inlined_call_operand.vmem [shape: f32[1,128], index: 2, kind: input, shape index: {}]
  %s3 = inlined_call_operand.vmem [shape: f32[2,16,16,128], index: 3, kind: output, shape index: {}]
  %s4 = sld [smem:[#allocation0]]
  $region45: #{discriminator_forward.6} parent=0
    _
  %s6 = ssub.s32 1, %s4
  %s7 = scalar_select 0, %s6, %s4
  loop: start=0, step=1, limit=4
  $region2: #{discriminator_forward.6} parent=0 // loop_pre_header
    _
  $region3: #{discriminator_forward.6} parent=0 // loop_header
    %s9 = sphi 0, %s13
    %p10 = scmp.ge.s32.totalorder %s9, 4
    %s16 = sphi 0, %s35
    %s17 = sphi 0, %s31
    %s18 = sphi 0, %s27
    %s19 = sphi 0, %s16
    %s20 = sphi 0, %s17
    %s21 = sphi 0, %s18
    %s22 = sphi 0, %s19
    %s23 = sphi 0, %s20
    %s24 = sphi 0, %s21
    %s38 = sphi 0, %s40
    %s41 = sphi 0, %s38
    %s42 = sphi 0, %s41
    %s58 = sphi 0, %s42
    %s64 = sphi 0, %s66
    %s67 = sphi 0, %s64
    %s68 = sphi 0, %s67
    %s84 = sphi 0, %s68
    %s90 = sphi 0, %s92
    %s93 = sphi 0, %s90
    %s94 = sphi 0, %s93
    %s110 = sphi 0, %s94
    %s120 = sphi 0, %s122
    %s123 = sphi 0, %s120
    %s124 = sphi 0, %s123
    %s140 = sphi 0, %s124
  $region4: #{discriminator_forward.6} parent=0 // loop_header_branch
    %12 = sbr.rel (%p10) target = $region8
  $region5: #{discriminator_forward.6} parent=0 // loop_body
    %s14 = ssub.s32 %s9, 1
    %s15 = ssub.s32 %s9, 2
    %s25 = sadd.s32 1, %s18
    %p26 = scmp.ge.s32.totalorder %s25, 1
    %s27 = scalar_select %p26, 0, %s25
    %s28 = sadd.s32 1, %s17
    %s29 = scalar_select %p26, %s28, %s17
    %p30 = scmp.ge.s32.totalorder %s29, 1
    %s31 = scalar_select %p30, 0, %s29
    %s32 = sadd.s32 1, %s16
    %s33 = scalar_select %p30, %s32, %s16
    %p34 = scmp.ge.s32.totalorder %s33, 2
    %s35 = scalar_select %p34, 0, %s33
    %s36 = ssub.s32 %s16, %s35
    %p37 = scmp.eq.s32.totalorder %s36, 0
    %s39 = sadd.s32 %s38, 1
    %s40 = scalar_select %p37, %s38, %s39
    %p43 = pneg %p37
    %p44 = scmp.eq.s32.totalorder %s9, 1
    %p45 = por %p43, %p44
    %p46 = scmp.ne.s32.totalorder %s38, %s41
    %p47 = scmp.eq.s32.totalorder %s9, 0
    %p48 = por %p46, %p47
    %p49 = scmp.ne.s32.totalorder %s38, %s41
    %p50 = scmp.eq.s32.totalorder %s14, 1
    %p51 = por %p49, %p50
    %p52 = scmp.ne.s32.totalorder %s41, %s42
    %p53 = scmp.eq.s32.totalorder %s14, 0
    %p54 = por %p52, %p53
    %p55 = scmp.ne.s32.totalorder %s41, %s42
    %p56 = scmp.eq.s32.totalorder %s15, 1
    %p57 = por %p55, %p56
    %p59 = scmp.ne.s32.totalorder %s42, %s58
    %p60 = scmp.eq.s32.totalorder %s15, 0
    %p61 = por %p59, %p60
    %s62 = ssub.s32 %s18, %s27
    %p63 = scmp.eq.s32.totalorder %s62, 0
    %s65 = sadd.s32 %s64, 1
    %s66 = scalar_select %p63, %s64, %s65
    %p69 = pneg %p63
    %p70 = scmp.eq.s32.totalorder %s9, 1
    %p71 = por %p69, %p70
    %p72 = scmp.ne.s32.totalorder %s64, %s67
    %p73 = scmp.eq.s32.totalorder %s9, 0
    %p74 = por %p72, %p73
    %p75 = scmp.ne.s32.totalorder %s64, %s67
    %p76 = scmp.eq.s32.totalorder %s14, 1
    %p77 = por %p75, %p76
    %p78 = scmp.ne.s32.totalorder %s67, %s68
    %p79 = scmp.eq.s32.totalorder %s14, 0
    %p80 = por %p78, %p79
    %p81 = scmp.ne.s32.totalorder %s67, %s68
    %p82 = scmp.eq.s32.totalorder %s15, 1
    %p83 = por %p81, %p82
    %p85 = scmp.ne.s32.totalorder %s68, %s84
    %p86 = scmp.eq.s32.totalorder %s15, 0
    %p87 = por %p85, %p86
    %s88 = ssub.s32 %s18, %s27
    %p89 = scmp.eq.s32.totalorder %s88, 0
    %s91 = sadd.s32 %s90, 1
    %s92 = scalar_select %p89, %s90, %s91
    %p95 = pneg %p89
    %p96 = scmp.eq.s32.totalorder %s9, 1
    %p97 = por %p95, %p96
    %p98 = scmp.ne.s32.totalorder %s90, %s93
    %p99 = scmp.eq.s32.totalorder %s9, 0
    %p100 = por %p98, %p99
    %p101 = scmp.ne.s32.totalorder %s90, %s93
    %p102 = scmp.eq.s32.totalorder %s14, 1
    %p103 = por %p101, %p102
    %p104 = scmp.ne.s32.totalorder %s93, %s94
    %p105 = scmp.eq.s32.totalorder %s14, 0
    %p106 = por %p104, %p105
    %p107 = scmp.ne.s32.totalorder %s93, %s94
    %p108 = scmp.eq.s32.totalorder %s15, 1
    %p109 = por %p107, %p108
    %p111 = scmp.ne.s32.totalorder %s94, %s110
    %p112 = scmp.eq.s32.totalorder %s15, 0
    %p113 = por %p111, %p112
    %s114 = ssub.s32 %s16, %s35
    %s115 = ssub.s32 %s17, %s31
    %s116 = sor.u32 %s114, %s115
    %s117 = ssub.s32 %s18, %s27
    %s118 = sor.u32 %s116, %s117
    %p119 = scmp.eq.s32.totalorder %s118, 0
    %s121 = sadd.s32 %s120, 1
    %s122 = scalar_select %p119, %s120, %s121
    %p125 = pneg %p119
    %p126 = scmp.eq.s32.totalorder %s9, 1
    %p127 = por %p125, %p126
    %p128 = scmp.ne.s32.totalorder %s120, %s123
    %p129 = scmp.eq.s32.totalorder %s9, 0
    %p130 = por %p128, %p129
    %p131 = scmp.ne.s32.totalorder %s120, %s123
    %p132 = scmp.eq.s32.totalorder %s14, 1
    %p133 = por %p131, %p132
    %p134 = scmp.ne.s32.totalorder %s123, %s124
    %p135 = scmp.eq.s32.totalorder %s14, 0
    %p136 = por %p134, %p135
    %p137 = scmp.ne.s32.totalorder %s123, %s124
    %p138 = scmp.eq.s32.totalorder %s15, 1
    %p139 = por %p137, %p138
    %p141 = scmp.ne.s32.totalorder %s124, %s140
    %p142 = scmp.eq.s32.totalorder %s15, 0
    %p143 = por %p141, %p142
    %p144 = scmp.le.s32.totalorder 1, %s9
    %p145 = scmp.lt.s32.totalorder %s9, 3
    %p146 = pnand %p144, %p145
    %p147 = pneg %p146
    // Predicated region
    $region9: #{discriminator_forward.6} parent=5 // pred_check
      _
    $region10: #{discriminator_forward.6} parent=5 // pred_check_branch
      %149 = sbr.rel (%p146) target = $region12
    $region11: #{discriminator_forward.6} parent=5 // pred_region
      %s150 = ssub.s32 %s9, 1
      // Predicated region
      $region13: #{discriminator_forward.6} parent=11 // pred_check
        %p151 = pneg %p80
      $region14: #{discriminator_forward.6} parent=11 // pred_check_branch
        %153 = sbr.rel (%p151) target = $region16
      $region15: #{discriminator_forward.6} parent=11 // pred_region
        %p154 = scmp.lt.s32.totalorder %s21, 0
        %s155 = scalar_select %p154, %s21, 0
        %s156 = smul.addr %s155, 8
        %s157 = scalar_lea.vmem %s1, %s156
      $region16: #{discriminator_forward.6} parent=11 // pred_fallthru
        _
      // Predicated region
      $region17: #{discriminator_forward.6} parent=11 // pred_check
        %p158 = pneg %p106
      $region18: #{discriminator_forward.6} parent=11 // pred_check_branch
        %160 = sbr.rel (%p158) target = $region20
      $region19: #{discriminator_forward.6} parent=11 // pred_region
        %p161 = scmp.lt.s32.totalorder %s21, 0
        %s162 = scalar_select %p161, %s21, 0
        %s163 = scalar_lea.vmem %s2, %s162
      $region20: #{discriminator_forward.6} parent=11 // pred_fallthru
        _
    $region12: #{discriminator_forward.6} parent=5 // pred_fallthru
      _
    %p164 = scmp.lt.s32.totalorder %s9, 2
    // Predicated region
    $region21: #{discriminator_forward.6} parent=5 // pred_check
      %p165 = pneg %p164
    $region22: #{discriminator_forward.6} parent=5 // pred_check_branch
      %167 = sbr.rel (%p165) target = $region24
    $region23: #{discriminator_forward.6} parent=5 // pred_region
      // Predicated region
      $region25: #{discriminator_forward.6} parent=23 // pred_check
        %p168 = pneg %p48
      $region26: #{discriminator_forward.6} parent=23 // pred_check_branch
        %170 = sbr.rel (%p168) target = $region28
      $region27: #{discriminator_forward.6} parent=23 // pred_region
        %p171 = scmp.lt.s32.totalorder %s16, 1
        %s172 = scalar_select %p171, %s16, 1
        %s173 = smul.addr %s172, 34
        %s174 = smul.addr %s173, 8
        %s175 = scalar_lea.vmem %s0, %s174
      $region28: #{discriminator_forward.6} parent=23 // pred_fallthru
        _
    $region24: #{discriminator_forward.6} parent=5 // pred_fallthru
      _
    %p176 = scmp.le.s32.totalorder 1, %s9
    %p177 = scmp.lt.s32.totalorder %s9, 3
    %p178 = pnand %p176, %p177
    %p179 = pneg %p178
    // Predicated region
    $region29: #{discriminator_forward.6} parent=5 // pred_check
      _
    $region30: #{discriminator_forward.6} parent=5 // pred_check_branch
      %181 = sbr.rel (%p178) target = $region32
    $region31: #{discriminator_forward.6} parent=5 // pred_region
      %s182 = ssub.s32 %s9, 1
      %p183 = scmp.lt.s32.totalorder %s19, 1
      %s184 = scalar_select %p183, %s19, 1
      %s185 = smul.addr %s184, 34
      %s186 = smul.addr %s185, 8
      %s187 = scalar_lea.vmem %s0, %s186
      %p188 = pneg %p54
      %p189 = pneg %p51
      %p190 = scmp.lt.s32.totalorder %s21, 0
      %s191 = scalar_select %p190, %s21, 0
      %s192 = smul.addr %s191, 8
      %s193 = scalar_lea.vmem %s1, %s192
      %p194 = pneg %p80
      %p195 = pneg %p77
      %p196 = scmp.lt.s32.totalorder %s21, 0
      %s197 = scalar_select %p196, %s21, 0
      %s198 = scalar_lea.vmem %s2, %s197
      %p199 = pneg %p106
      %p200 = pneg %p103
      %p201 = pneg %p136
      %p202 = pneg %p133
      %s203 = smul.u32 16, %s20
      %p204 = scmp.lt.s32.totalorder %s19, 1
      %s205 = scalar_select %p204, %s19, 1
      %p206 = scmp.lt.s32.totalorder %s203, 15
      %s207 = scalar_select %p206, %s203, 15
      %p208 = scmp.lt.s32.totalorder %s21, 0
      %s209 = scalar_select %p208, %s21, 0
      %s210 = smul.addr %s207, 2
      %s211 = sadd.s32 %s209, %s210
      %s212 = smul.addr %s205, 32
      %s213 = sadd.s32 %s211, %s212
      %s214 = smul.addr %s213, 8
      %s215 = scalar_lea.vmem %s3, %s214
      %p216 = scmp.lt.s32.totalorder %s19, 1
      %s217 = scalar_select %p216, %s19, 1
      %s218 = smul.addr %s217, 34
      %s219 = smul.addr %s218, 8
      %s220 = scalar_lea.vmem %s0, %s219
      %p221 = scmp.lt.s32.totalorder %s21, 0
      %s222 = scalar_select %p221, %s21, 0
      %s223 = smul.addr %s222, 8
      %s224 = scalar_lea.vmem %s1, %s223
      %p225 = scmp.lt.s32.totalorder %s21, 0
      %s226 = scalar_select %p225, %s21, 0
      %s227 = scalar_lea.vmem %s2, %s226
      %s228 = smul.u32 16, %s20
      %p229 = scmp.lt.s32.totalorder %s19, 1
      %s230 = scalar_select %p229, %s19, 1
      %p231 = scmp.lt.s32.totalorder %s228, 15
      %s232 = scalar_select %p231, %s228, 15
      %p233 = scmp.lt.s32.totalorder %s21, 0
      %s234 = scalar_select %p233, %s21, 0
      %s235 = smul.addr %s232, 2
      %s236 = sadd.s32 %s234, %s235
      %s237 = smul.addr %s230, 32
      %s238 = sadd.s32 %s236, %s237
      %s239 = smul.addr %s238, 8
      %s240 = scalar_lea.vmem %s3, %s239
      %s241 = smul.u32 16, %s20
      %s242 = smul.u32 %s20, 16
      %s243 = smul.u32 %s242, 16
      %s244 = scalar_lea.vmem %s220, %s243
      %v245 = vld [vmem:[%s244] sm:$0xff]
      %v246 = vld [vmem:[%s244 + $0x8] sm:$0xff]
      %v247 = vld [vmem:[%s244 + $0x10] sm:$0xff]
      %v248 = vld [vmem:[%s244 + $0x18] sm:$0xff]
      %v249 = vld [vmem:[%s244 + $0x20] sm:$0xff]
      %v250 = vld [vmem:[%s244 + $0x28] sm:$0xff]
      %v251 = vld [vmem:[%s244 + $0x30] sm:$0xff]
      %v252 = vld [vmem:[%s244 + $0x38] sm:$0xff]
      %v253 = vld [vmem:[%s244 + $0x40] sm:$0xff]
      %v254 = vld [vmem:[%s244 + $0x48] sm:$0xff]
      %v255 = vld [vmem:[%s244 + $0x50] sm:$0xff]
      %v256 = vld [vmem:[%s244 + $0x58] sm:$0xff]
      %v257 = vld [vmem:[%s244 + $0x60] sm:$0xff]
      %v258 = vld [vmem:[%s244 + $0x68] sm:$0xff]
      %v259 = vld [vmem:[%s244 + $0x70] sm:$0xff]
      %v260 = vld [vmem:[%s244 + $0x78] sm:$0xff]
      %v261 = vld [vmem:[%s244 + $0x80] sm:$0xff]
      %v262 = vld [vmem:[%s244 + $0x88] sm:$0xff]
      %v263 = vld [vmem:[%s244 + $0x90] sm:$0xff]
      %v264 = vld [vmem:[%s244 + $0x98] sm:$0xff]
      %v265 = vld [vmem:[%s244 + $0xa0] sm:$0xff]
      %v266 = vld [vmem:[%s244 + $0xa8] sm:$0xff]
      %v267 = vld [vmem:[%s244 + $0xb0] sm:$0xff]
      %v268 = vld [vmem:[%s244 + $0xb8] sm:$0xff]
      %v269 = vld [vmem:[%s244 + $0xc0] sm:$0xff]
      %v270 = vld [vmem:[%s244 + $0xc8] sm:$0xff]
      %v271 = vld [vmem:[%s244 + $0xd0] sm:$0xff]
      %v272 = vld [vmem:[%s244 + $0xd8] sm:$0xff]
      %v273 = vld [vmem:[%s244 + $0xe0] sm:$0xff]
      %v274 = vld [vmem:[%s244 + $0xe8] sm:$0xff]
      %v275 = vld [vmem:[%s244 + $0xf0] sm:$0xff]
      %v276 = vld [vmem:[%s244 + $0xf8] sm:$0xff]
      %s277 = sadd.s32 %s242, 1
      %s278 = smul.u32 %s277, 16
      %s279 = scalar_lea.vmem %s220, %s278
      %v280 = vld [vmem:[%s279] sm:$0xff]
      %v281 = vld [vmem:[%s279 + $0x8] sm:$0xff]
      %v282 = vld [vmem:[%s279 + $0x10] sm:$0xff]
      %v283 = vld [vmem:[%s279 + $0x18] sm:$0xff]
      %v284 = vld [vmem:[%s279 + $0x20] sm:$0xff]
      %v285 = vld [vmem:[%s279 + $0x28] sm:$0xff]
      %v286 = vld [vmem:[%s279 + $0x30] sm:$0xff]
      %v287 = vld [vmem:[%s279 + $0x38] sm:$0xff]
      %v288 = vld [vmem:[%s279 + $0x40] sm:$0xff]
      %v289 = vld [vmem:[%s279 + $0x48] sm:$0xff]
      %v290 = vld [vmem:[%s279 + $0x50] sm:$0xff]
      %v291 = vld [vmem:[%s279 + $0x58] sm:$0xff]
      %v292 = vld [vmem:[%s279 + $0x60] sm:$0xff]
      %v293 = vld [vmem:[%s279 + $0x68] sm:$0xff]
      %v294 = vld [vmem:[%s279 + $0x70] sm:$0xff]
      %v295 = vld [vmem:[%s279 + $0x78] sm:$0xff]
      %v296 = vld [vmem:[%s279 + $0x80] sm:$0xff]
      %v297 = vld [vmem:[%s279 + $0x88] sm:$0xff]
      %v298 = vld [vmem:[%s279 + $0x90] sm:$0xff]
      %v299 = vld [vmem:[%s279 + $0x98] sm:$0xff]
      %v300 = vld [vmem:[%s279 + $0xa0] sm:$0xff]
      %v301 = vld [vmem:[%s279 + $0xa8] sm:$0xff]
      %v302 = vld [vmem:[%s279 + $0xb0] sm:$0xff]
      %v303 = vld [vmem:[%s279 + $0xb8] sm:$0xff]
      %v304 = vld [vmem:[%s279 + $0xc0] sm:$0xff]
      %v305 = vld [vmem:[%s279 + $0xc8] sm:$0xff]
      %v306 = vld [vmem:[%s279 + $0xd0] sm:$0xff]
      %v307 = vld [vmem:[%s279 + $0xd8] sm:$0xff]
      %v308 = vld [vmem:[%s279 + $0xe0] sm:$0xff]
      %v309 = vld [vmem:[%s279 + $0xe8] sm:$0xff]
      %v310 = vld [vmem:[%s279 + $0xf0] sm:$0xff]
      %v311 = vld [vmem:[%s279 + $0xf8] sm:$0xff]
      %v312 = vld [vmem:[%s224] sm:$0xff]
      %v313 = vld [vmem:[%s224 + $0x8] sm:$0xff]
      %v314 = vld [vmem:[%s224 + $0x10] sm:$0xff]
      %v315 = vld [vmem:[%s224 + $0x18] sm:$0xff]
      %v316 = vld [vmem:[%s224 + $0x20] sm:$0xff]
      %v317 = vld [vmem:[%s224 + $0x28] sm:$0xff]
      %v318 = vld [vmem:[%s224 + $0x30] sm:$0xff]
      %v319 = vld [vmem:[%s224 + $0x38] sm:$0xff]
      %v320 = vld [vmem:[%s224 + $0x40] sm:$0xff]
      %v321 = vld [vmem:[%s224 + $0x48] sm:$0xff]
      %v322 = vld [vmem:[%s224 + $0x50] sm:$0xff]
      %v323 = vld [vmem:[%s224 + $0x58] sm:$0xff]
      %v324 = vld [vmem:[%s224 + $0x60] sm:$0xff]
      %v325 = vld [vmem:[%s224 + $0x68] sm:$0xff]
      %v326 = vld [vmem:[%s224 + $0x70] sm:$0xff]
      %v327 = vld [vmem:[%s224 + $0x78] sm:$0xff]
      %v328 = vld [vmem:[%s224 + $0x80] sm:$0xff]
      %v329 = vld [vmem:[%s224 + $0x88] sm:$0xff]
      %v330 = vld [vmem:[%s224 + $0x90] sm:$0xff]
      %v331 = vld [vmem:[%s224 + $0x98] sm:$0xff]
      %v332 = vld [vmem:[%s224 + $0xa0] sm:$0xff]
      %v333 = vld [vmem:[%s224 + $0xa8] sm:$0xff]
      %v334 = vld [vmem:[%s224 + $0xb0] sm:$0xff]
      %v335 = vld [vmem:[%s224 + $0xb8] sm:$0xff]
      %v336 = vld [vmem:[%s224 + $0xc0] sm:$0xff]
      %v337 = vld [vmem:[%s224 + $0xc8] sm:$0xff]
      %v338 = vld [vmem:[%s224 + $0xd0] sm:$0xff]
      %v339 = vld [vmem:[%s224 + $0xd8] sm:$0xff]
      %v340 = vld [vmem:[%s224 + $0xe0] sm:$0xff]
      %v341 = vld [vmem:[%s224 + $0xe8] sm:$0xff]
      %v342 = vld [vmem:[%s224 + $0xf0] sm:$0xff]
      %v343 = vld [vmem:[%s224 + $0xf8] sm:$0xff]
      %v344 = vld [vmem:[%s227] sm:$0x1]
      %v346 = vperm.slane %v344, 0
      %348 = vmatpush.msra.mxu0 %v327
      %349 = vmatpush.msra.mxu0 %v326
      %350 = vmatpush.msra.mxu0 %v325
      %351 = vmatpush.msra.mxu0 %v324
      %352 = vmatpush.msra.mxu0 %v323
      %353 = vmatpush.msra.mxu0 %v322
      %354 = vmatpush.msra.mxu0 %v321
      %355 = vmatpush.msra.mxu0 %v320
      %356 = vmatpush.msra.mxu0 %v319
      %357 = vmatpush.msra.mxu0 %v318
      %358 = vmatpush.msra.mxu0 %v317
      %359 = vmatpush.msra.mxu0 %v316
      %360 = vmatpush.msra.mxu0 %v315
      %361 = vmatpush.msra.mxu0 %v314
      %362 = vmatpush.msra.mxu0 %v313
      %363 = vmatpush.msra.mxu0 %v312
      %364 = vmatmul.f32.gmra.mxu0 %v245
      %v365 = vpop.f32.mrf.mxu0
      %v366 = vadd.f32 %v346, %v365
      %367 = vmatmul.f32.gmra.mxu0 %v246
      %v368 = vpop.f32.mrf.mxu0
      %v369 = vadd.f32 %v346, %v368
      %370 = vmatmul.f32.gmra.mxu0 %v247
      %v371 = vpop.f32.mrf.mxu0
      %v372 = vadd.f32 %v346, %v371
      %373 = vmatmul.f32.gmra.mxu0 %v248
      %v374 = vpop.f32.mrf.mxu0
      %v375 = vadd.f32 %v346, %v374
      %376 = vmatmul.f32.gmra.mxu0 %v249
      %v377 = vpop.f32.mrf.mxu0
      %v378 = vadd.f32 %v346, %v377
      %379 = vmatmul.f32.gmra.mxu0 %v250
      %v380 = vpop.f32.mrf.mxu0
      %v381 = vadd.f32 %v346, %v380
      %382 = vmatmul.f32.gmra.mxu0 %v251
      %v383 = vpop.f32.mrf.mxu0
      %v384 = vadd.f32 %v346, %v383
      %385 = vmatmul.f32.gmra.mxu0 %v252
      %v386 = vpop.f32.mrf.mxu0
      %v387 = vadd.f32 %v346, %v386
      %388 = vmatmul.f32.gmra.mxu0 %v253
      %v389 = vpop.f32.mrf.mxu0
      %v390 = vadd.f32 %v346, %v389
      %391 = vmatmul.f32.gmra.mxu0 %v254
      %v392 = vpop.f32.mrf.mxu0
      %v393 = vadd.f32 %v346, %v392
      %394 = vmatmul.f32.gmra.mxu0 %v255
      %v395 = vpop.f32.mrf.mxu0
      %v396 = vadd.f32 %v346, %v395
      %397 = vmatmul.f32.gmra.mxu0 %v256
      %v398 = vpop.f32.mrf.mxu0
      %v399 = vadd.f32 %v346, %v398
      %400 = vmatmul.f32.gmra.mxu0 %v257
      %v401 = vpop.f32.mrf.mxu0
      %v402 = vadd.f32 %v346, %v401
      %403 = vmatmul.f32.gmra.mxu0 %v258
      %v404 = vpop.f32.mrf.mxu0
      %v405 = vadd.f32 %v346, %v404
      %406 = vmatmul.f32.gmra.mxu0 %v259
      %v407 = vpop.f32.mrf.mxu0
      %v408 = vadd.f32 %v346, %v407
      %409 = vmatmul.f32.gmra.mxu0 %v260
      %v410 = vpop.f32.mrf.mxu0
      %v411 = vadd.f32 %v346, %v410
      %412 = vmatmul.f32.gmra.mxu0 %v261
      %v413 = vpop.f32.mrf.mxu0
      %v414 = vadd.f32 %v346, %v413
      %415 = vmatmul.f32.gmra.mxu0 %v262
      %v416 = vpop.f32.mrf.mxu0
      %v417 = vadd.f32 %v346, %v416
      %418 = vmatmul.f32.gmra.mxu0 %v263
      %v419 = vpop.f32.mrf.mxu0
      %v420 = vadd.f32 %v346, %v419
      %421 = vmatmul.f32.gmra.mxu0 %v264
      %v422 = vpop.f32.mrf.mxu0
      %v423 = vadd.f32 %v346, %v422
      %424 = vmatmul.f32.gmra.mxu0 %v265
      %v425 = vpop.f32.mrf.mxu0
      %v426 = vadd.f32 %v346, %v425
      %427 = vmatmul.f32.gmra.mxu0 %v266
      %v428 = vpop.f32.mrf.mxu0
      %v429 = vadd.f32 %v346, %v428
      %430 = vmatmul.f32.gmra.mxu0 %v267
      %v431 = vpop.f32.mrf.mxu0
      %v432 = vadd.f32 %v346, %v431
      %433 = vmatmul.f32.gmra.mxu0 %v268
      %v434 = vpop.f32.mrf.mxu0
      %v435 = vadd.f32 %v346, %v434
      %436 = vmatmul.f32.gmra.mxu0 %v269
      %v437 = vpop.f32.mrf.mxu0
      %v438 = vadd.f32 %v346, %v437
      %439 = vmatmul.f32.gmra.mxu0 %v270
      %v440 = vpop.f32.mrf.mxu0
      %v441 = vadd.f32 %v346, %v440
      %442 = vmatmul.f32.gmra.mxu0 %v271
      %v443 = vpop.f32.mrf.mxu0
      %v444 = vadd.f32 %v346, %v443
      %445 = vmatmul.f32.gmra.mxu0 %v272
      %v446 = vpop.f32.mrf.mxu0
      %v447 = vadd.f32 %v346, %v446
      %448 = vmatmul.f32.gmra.mxu0 %v273
      %v449 = vpop.f32.mrf.mxu0
      %v450 = vadd.f32 %v346, %v449
      %451 = vmatmul.f32.gmra.mxu0 %v274
      %v452 = vpop.f32.mrf.mxu0
      %v453 = vadd.f32 %v346, %v452
      %454 = vmatmul.f32.gmra.mxu0 %v275
      %v455 = vpop.f32.mrf.mxu0
      %v456 = vadd.f32 %v346, %v455
      %457 = vmatmul.f32.gmra.mxu0 %v276
      %v458 = vpop.f32.mrf.mxu0
      %v459 = vadd.f32 %v346, %v458
      %460 = vdwg.mxu0
      %461 = vmatpush.msra.mxu0 %v343
      %462 = vmatpush.msra.mxu0 %v342
      %463 = vmatpush.msra.mxu0 %v341
      %464 = vmatpush.msra.mxu0 %v340
      %465 = vmatpush.msra.mxu0 %v339
      %466 = vmatpush.msra.mxu0 %v338
      %467 = vmatpush.msra.mxu0 %v337
      %468 = vmatpush.msra.mxu0 %v336
      %469 = vmatpush.msra.mxu0 %v335
      %470 = vmatpush.msra.mxu0 %v334
      %471 = vmatpush.msra.mxu0 %v333
      %472 = vmatpush.msra.mxu0 %v332
      %473 = vmatpush.msra.mxu0 %v331
      %474 = vmatpush.msra.mxu0 %v330
      %475 = vmatpush.msra.mxu0 %v329
      %476 = vmatpush.msra.mxu0 %v328
      %477 = vmatmul.f32.gmra.mxu0 %v280
      %v478 = vpop.f32.mrf.mxu0
      %v479 = vadd.f32 %v366, %v478
      %480 = vmatmul.f32.gmra.mxu0 %v281
      %v481 = vpop.f32.mrf.mxu0
      %v482 = vadd.f32 %v369, %v481
      %483 = vmatmul.f32.gmra.mxu0 %v282
      %v484 = vpop.f32.mrf.mxu0
      %v485 = vadd.f32 %v372, %v484
      %486 = vmatmul.f32.gmra.mxu0 %v283
      %v487 = vpop.f32.mrf.mxu0
      %v488 = vadd.f32 %v375, %v487
      %489 = vmatmul.f32.gmra.mxu0 %v284
      %v490 = vpop.f32.mrf.mxu0
      %v491 = vadd.f32 %v378, %v490
      %492 = vmatmul.f32.gmra.mxu0 %v285
      %v493 = vpop.f32.mrf.mxu0
      %v494 = vadd.f32 %v381, %v493
      %495 = vmatmul.f32.gmra.mxu0 %v286
      %v496 = vpop.f32.mrf.mxu0
      %v497 = vadd.f32 %v384, %v496
      %498 = vmatmul.f32.gmra.mxu0 %v287
      %v499 = vpop.f32.mrf.mxu0
      %v500 = vadd.f32 %v387, %v499
      %501 = vmatmul.f32.gmra.mxu0 %v288
      %v502 = vpop.f32.mrf.mxu0
      %v503 = vadd.f32 %v390, %v502
      %504 = vmatmul.f32.gmra.mxu0 %v289
      %v505 = vpop.f32.mrf.mxu0
      %v506 = vadd.f32 %v393, %v505
      %507 = vmatmul.f32.gmra.mxu0 %v290
      %v508 = vpop.f32.mrf.mxu0
      %v509 = vadd.f32 %v396, %v508
      %510 = vmatmul.f32.gmra.mxu0 %v291
      %v511 = vpop.f32.mrf.mxu0
      %v512 = vadd.f32 %v399, %v511
      %513 = vmatmul.f32.gmra.mxu0 %v292
      %v514 = vpop.f32.mrf.mxu0
      %v515 = vadd.f32 %v402, %v514
      %516 = vmatmul.f32.gmra.mxu0 %v293
      %v517 = vpop.f32.mrf.mxu0
      %v518 = vadd.f32 %v405, %v517
      %519 = vmatmul.f32.gmra.mxu0 %v294
      %v520 = vpop.f32.mrf.mxu0
      %v521 = vadd.f32 %v408, %v520
      %522 = vmatmul.f32.gmra.mxu0 %v295
      %v523 = vpop.f32.mrf.mxu0
      %v524 = vadd.f32 %v411, %v523
      %525 = vmatmul.f32.gmra.mxu0 %v296
      %v526 = vpop.f32.mrf.mxu0
      %v527 = vadd.f32 %v414, %v526
      %528 = vmatmul.f32.gmra.mxu0 %v297
      %v529 = vpop.f32.mrf.mxu0
      %v530 = vadd.f32 %v417, %v529
      %531 = vmatmul.f32.gmra.mxu0 %v298
      %v532 = vpop.f32.mrf.mxu0
      %v533 = vadd.f32 %v420, %v532
      %534 = vmatmul.f32.gmra.mxu0 %v299
      %v535 = vpop.f32.mrf.mxu0
      %v536 = vadd.f32 %v423, %v535
      %537 = vmatmul.f32.gmra.mxu0 %v300
      %v538 = vpop.f32.mrf.mxu0
      %v539 = vadd.f32 %v426, %v538
      %540 = vmatmul.f32.gmra.mxu0 %v301
      %v541 = vpop.f32.mrf.mxu0
      %v542 = vadd.f32 %v429, %v541
      %543 = vmatmul.f32.gmra.mxu0 %v302
      %v544 = vpop.f32.mrf.mxu0
      %v545 = vadd.f32 %v432, %v544
      %546 = vmatmul.f32.gmra.mxu0 %v303
      %v547 = vpop.f32.mrf.mxu0
      %v548 = vadd.f32 %v435, %v547
      %549 = vmatmul.f32.gmra.mxu0 %v304
      %v550 = vpop.f32.mrf.mxu0
      %v551 = vadd.f32 %v438, %v550
      %552 = vmatmul.f32.gmra.mxu0 %v305
      %v553 = vpop.f32.mrf.mxu0
      %v554 = vadd.f32 %v441, %v553
      %555 = vmatmul.f32.gmra.mxu0 %v306
      %v556 = vpop.f32.mrf.mxu0
      %v557 = vadd.f32 %v444, %v556
      %558 = vmatmul.f32.gmra.mxu0 %v307
      %v559 = vpop.f32.mrf.mxu0
      %v560 = vadd.f32 %v447, %v559
      %561 = vmatmul.f32.gmra.mxu0 %v308
      %v562 = vpop.f32.mrf.mxu0
      %v563 = vadd.f32 %v450, %v562
      %564 = vmatmul.f32.gmra.mxu0 %v309
      %v565 = vpop.f32.mrf.mxu0
      %v566 = vadd.f32 %v453, %v565
      %567 = vmatmul.f32.gmra.mxu0 %v310
      %v568 = vpop.f32.mrf.mxu0
      %v569 = vadd.f32 %v456, %v568
      %570 = vmatmul.f32.gmra.mxu0 %v311
      %v571 = vpop.f32.mrf.mxu0
      %v572 = vadd.f32 %v459, %v571
      %573 = vdwg.mxu0
      %v574 = vadd.f32 %v479, %v482
      %v575 = vadd.f32 %v574, %v485
      %v576 = vadd.f32 %v575, %v488
      %v577 = vrot.slane %v576, 4
      %v578 = vadd.f32 %v576, %v577
      %v579 = vrot.slane %v578, 2
      %v580 = vadd.f32 %v578, %v579
      %v581 = vrot.slane %v580, 1
      %v582 = vadd.f32 %v580, %v581
      %v583 = vadd.f32 %v582, 0.0
      %v584 = vmul.f32 %v479, %v479
      %v585 = vmul.f32 %v482, %v482
      %v586 = vmul.f32 %v485, %v485
      %v587 = vmul.f32 %v488, %v488
      %v588 = vadd.f32 %v584, %v585
      %v589 = vadd.f32 %v588, %v586
      %v590 = vadd.f32 %v589, %v587
      %v591 = vrot.slane %v590, 4
      %v592 = vadd.f32 %v590, %v591
      %v593 = vrot.slane %v592, 2
      %v594 = vadd.f32 %v592, %v593
      %v595 = vrot.slane %v594, 1
      %v596 = vadd.f32 %v594, %v595
      %v597 = vadd.f32 %v596, 0.0
      %v598 = vadd.f32 %v491, %v494
      %v599 = vadd.f32 %v598, %v497
      %v600 = vadd.f32 %v599, %v500
      %v601 = vrot.slane %v600, 4
      %v602 = vadd.f32 %v600, %v601
      %v603 = vrot.slane %v602, 2
      %v604 = vadd.f32 %v602, %v603
      %v605 = vrot.slane %v604, 1
      %v606 = vadd.f32 %v604, %v605
      %v607 = vadd.f32 %v583, %v606
      %v608 = vmul.f32 %v491, %v491
      %v609 = vmul.f32 %v494, %v494
      %v610 = vmul.f32 %v497, %v497
      %v611 = vmul.f32 %v500, %v500
      %v612 = vadd.f32 %v608, %v609
      %v613 = vadd.f32 %v612, %v610
      %v614 = vadd.f32 %v613, %v611
      %v615 = vrot.slane %v614, 4
      %v616 = vadd.f32 %v614, %v615
      %v617 = vrot.slane %v616, 2
      %v618 = vadd.f32 %v616, %v617
      %v619 = vrot.slane %v618, 1
      %v620 = vadd.f32 %v618, %v619
      %v621 = vadd.f32 %v597, %v620
      %v622 = vadd.f32 %v503, %v506
      %v623 = vadd.f32 %v622, %v509
      %v624 = vadd.f32 %v623, %v512
      %v625 = vrot.slane %v624, 4
      %v626 = vadd.f32 %v624, %v625
      %v627 = vrot.slane %v626, 2
      %v628 = vadd.f32 %v626, %v627
      %v629 = vrot.slane %v628, 1
      %v630 = vadd.f32 %v628, %v629
      %v631 = vadd.f32 %v607, %v630
      %v632 = vmul.f32 %v503, %v503
      %v633 = vmul.f32 %v506, %v506
      %v634 = vmul.f32 %v509, %v509
      %v635 = vmul.f32 %v512, %v512
      %v636 = vadd.f32 %v632, %v633
      %v637 = vadd.f32 %v636, %v634
      %v638 = vadd.f32 %v637, %v635
      %v639 = vrot.slane %v638, 4
      %v640 = vadd.f32 %v638, %v639
      %v641 = vrot.slane %v640, 2
      %v642 = vadd.f32 %v640, %v641
      %v643 = vrot.slane %v642, 1
      %v644 = vadd.f32 %v642, %v643
      %v645 = vadd.f32 %v621, %v644
      %v646 = vadd.f32 %v515, %v518
      %v647 = vadd.f32 %v646, %v521
      %v648 = vadd.f32 %v647, %v524
      %v649 = vrot.slane %v648, 4
      %v650 = vadd.f32 %v648, %v649
      %v651 = vrot.slane %v650, 2
      %v652 = vadd.f32 %v650, %v651
      %v653 = vrot.slane %v652, 1
      %v654 = vadd.f32 %v652, %v653
      %v655 = vadd.f32 %v631, %v654
      %v656 = vmul.f32 %v515, %v515
      %v657 = vmul.f32 %v518, %v518
      %v658 = vmul.f32 %v521, %v521
      %v659 = vmul.f32 %v524, %v524
      %v660 = vadd.f32 %v656, %v657
      %v661 = vadd.f32 %v660, %v658
      %v662 = vadd.f32 %v661, %v659
      %v663 = vrot.slane %v662, 4
      %v664 = vadd.f32 %v662, %v663
      %v665 = vrot.slane %v664, 2
      %v666 = vadd.f32 %v664, %v665
      %v667 = vrot.slane %v666, 1
      %v668 = vadd.f32 %v666, %v667
      %v669 = vadd.f32 %v645, %v668
      %v670 = vadd.f32 %v527, %v530
      %v671 = vadd.f32 %v670, %v533
      %v672 = vadd.f32 %v671, %v536
      %v673 = vrot.slane %v672, 4
      %v674 = vadd.f32 %v672, %v673
      %v675 = vrot.slane %v674, 2
      %v676 = vadd.f32 %v674, %v675
      %v677 = vrot.slane %v676, 1
      %v678 = vadd.f32 %v676, %v677
      %v679 = vadd.f32 %v655, %v678
      %v680 = vmul.f32 %v527, %v527
      %v681 = vmul.f32 %v530, %v530
      %v682 = vmul.f32 %v533, %v533
      %v683 = vmul.f32 %v536, %v536
      %v684 = vadd.f32 %v680, %v681
      %v685 = vadd.f32 %v684, %v682
      %v686 = vadd.f32 %v685, %v683
      %v687 = vrot.slane %v686, 4
      %v688 = vadd.f32 %v686, %v687
      %v689 = vrot.slane %v688, 2
      %v690 = vadd.f32 %v688, %v689
      %v691 = vrot.slane %v690, 1
      %v692 = vadd.f32 %v690, %v691
      %v693 = vadd.f32 %v669, %v692
      %v694 = vadd.f32 %v539, %v542
      %v695 = vadd.f32 %v694, %v545
      %v696 = vadd.f32 %v695, %v548
      %v697 = vrot.slane %v696, 4
      %v698 = vadd.f32 %v696, %v697
      %v699 = vrot.slane %v698, 2
      %v700 = vadd.f32 %v698, %v699
      %v701 = vrot.slane %v700, 1
      %v702 = vadd.f32 %v700, %v701
      %v703 = vadd.f32 %v679, %v702
      %v704 = vmul.f32 %v539, %v539
      %v705 = vmul.f32 %v542, %v542
      %v706 = vmul.f32 %v545, %v545
      %v707 = vmul.f32 %v548, %v548
      %v708 = vadd.f32 %v704, %v705
      %v709 = vadd.f32 %v708, %v706
      %v710 = vadd.f32 %v709, %v707
      %v711 = vrot.slane %v710, 4
      %v712 = vadd.f32 %v710, %v711
      %v713 = vrot.slane %v712, 2
      %v714 = vadd.f32 %v712, %v713
      %v715 = vrot.slane %v714, 1
      %v716 = vadd.f32 %v714, %v715
      %v717 = vadd.f32 %v693, %v716
      %v718 = vadd.f32 %v551, %v554
      %v719 = vadd.f32 %v718, %v557
      %v720 = vadd.f32 %v719, %v560
      %v721 = vrot.slane %v720, 4
      %v722 = vadd.f32 %v720, %v721
      %v723 = vrot.slane %v722, 2
      %v724 = vadd.f32 %v722, %v723
      %v725 = vrot.slane %v724, 1
      %v726 = vadd.f32 %v724, %v725
      %v727 = vadd.f32 %v703, %v726
      %v728 = vmul.f32 %v551, %v551
      %v729 = vmul.f32 %v554, %v554
      %v730 = vmul.f32 %v557, %v557
      %v731 = vmul.f32 %v560, %v560
      %v732 = vadd.f32 %v728, %v729
      %v733 = vadd.f32 %v732, %v730
      %v734 = vadd.f32 %v733, %v731
      %v735 = vrot.slane %v734, 4
      %v736 = vadd.f32 %v734, %v735
      %v737 = vrot.slane %v736, 2
      %v738 = vadd.f32 %v736, %v737
      %v739 = vrot.slane %v738, 1
      %v740 = vadd.f32 %v738, %v739
      %v741 = vadd.f32 %v717, %v740
      %v742 = vadd.f32 %v563, %v566
      %v743 = vadd.f32 %v742, %v569
      %v744 = vadd.f32 %v743, %v572
      %v745 = vrot.slane %v744, 4
      %v746 = vadd.f32 %v744, %v745
      %v747 = vrot.slane %v746, 2
      %v748 = vadd.f32 %v746, %v747
      %v749 = vrot.slane %v748, 1
      %v750 = vadd.f32 %v748, %v749
      %v751 = vadd.f32 %v727, %v750
      %v752 = vmul.f32 %v563, %v563
      %v753 = vmul.f32 %v566, %v566
      %v754 = vmul.f32 %v569, %v569
      %v755 = vmul.f32 %v572, %v572
      %v756 = vadd.f32 %v752, %v753
      %v757 = vadd.f32 %v756, %v754
      %v758 = vadd.f32 %v757, %v755
      %v759 = vrot.slane %v758, 4
      %v760 = vadd.f32 %v758, %v759
      %v761 = vrot.slane %v760, 2
      %v762 = vadd.f32 %v760, %v761
      %v763 = vrot.slane %v762, 1
      %v764 = vadd.f32 %v762, %v763
      %v765 = vadd.f32 %v741, %v764
      %v766 = vmul.f32 %v751, 0.00390625
      %v767 = vmul.f32 %v765, 0.00390625
      %v768 = vmul.f32 %v766, %v766
      %v769 = vsub.f32 %v767, %v768
      %v770 = vmax.f32 %v769, 0.0
      %v771 = vsub.f32 %v479, %v766
      %v772 = vsub.f32 %v482, %v766
      %v773 = vsub.f32 %v485, %v766
      %v774 = vsub.f32 %v488, %v766
      %v775 = vsub.f32 %v491, %v766
      %v776 = vsub.f32 %v494, %v766
      %v777 = vsub.f32 %v497, %v766
      %v778 = vsub.f32 %v500, %v766
      %v779 = vsub.f32 %v503, %v766
      %v780 = vsub.f32 %v506, %v766
      %v781 = vsub.f32 %v509, %v766
      %v782 = vsub.f32 %v512, %v766
      %v783 = vsub.f32 %v515, %v766
      %v784 = vsub.f32 %v518, %v766
      %v785 = vsub.f32 %v521, %v766
      %v786 = vsub.f32 %v524, %v766
      %v787 = vsub.f32 %v527, %v766
      %v788 = vsub.f32 %v530, %v766
      %v789 = vsub.f32 %v533, %v766
      %v790 = vsub.f32 %v536, %v766
      %v791 = vsub.f32 %v539, %v766
      %v792 = vsub.f32 %v542, %v766
      %v793 = vsub.f32 %v545, %v766
      %v794 = vsub.f32 %v548, %v766
      %v795 = vsub.f32 %v551, %v766
      %v796 = vsub.f32 %v554, %v766
      %v797 = vsub.f32 %v557, %v766
      %v798 = vsub.f32 %v560, %v766
      %v799 = vsub.f32 %v563, %v766
      %v800 = vsub.f32 %v566, %v766
      %v801 = vsub.f32 %v569, %v766
      %v802 = vsub.f32 %v572, %v766
      %v803 = vadd.f32 %v770, 1e-05
      %v804 = vrsqrt.pop %v803
      %v805 = vmul.f32 %v804, %v803
      %v806 = vmul.f32 %v805, %v804
      %v807 = vmul.f32 0.5, %v806
      %v808 = vsub.f32 1.5, %v807
      %v809 = vmul.f32 %v804, %v808
      %vm810 = vweird.f32 %v803
      %vm811 = vweird.f32 %v804
      %vm812 = vmor %vm810, %vm811
      %v813 = vsel %vm812, %v804, %v809
      %v814 = vmul.f32 %v771, %v813
      %v815 = vmul.f32 %v772, %v813
      %v816 = vmul.f32 %v773, %v813
      %v817 = vmul.f32 %v774, %v813
      %v818 = vmul.f32 %v775, %v813
      %v819 = vmul.f32 %v776, %v813
      %v820 = vmul.f32 %v777, %v813
      %v821 = vmul.f32 %v778, %v813
      %v822 = vmul.f32 %v779, %v813
      %v823 = vmul.f32 %v780, %v813
      %v824 = vmul.f32 %v781, %v813
      %v825 = vmul.f32 %v782, %v813
      %v826 = vmul.f32 %v783, %v813
      %v827 = vmul.f32 %v784, %v813
      %v828 = vmul.f32 %v785, %v813
      %v829 = vmul.f32 %v786, %v813
      %v830 = vmul.f32 %v787, %v813
      %v831 = vmul.f32 %v788, %v813
      %v832 = vmul.f32 %v789, %v813
      %v833 = vmul.f32 %v790, %v813
      %v834 = vmul.f32 %v791, %v813
      %v835 = vmul.f32 %v792, %v813
      %v836 = vmul.f32 %v793, %v813
      %v837 = vmul.f32 %v794, %v813
      %v838 = vmul.f32 %v795, %v813
      %v839 = vmul.f32 %v796, %v813
      %v840 = vmul.f32 %v797, %v813
      %v841 = vmul.f32 %v798, %v813
      %v842 = vmul.f32 %v799, %v813
      %v843 = vmul.f32 %v800, %v813
      %v844 = vmul.f32 %v801, %v813
      %v845 = vmul.f32 %v802, %v813
      %v846 = vmul.f32 %v814, 0.2
      %v847 = vmul.f32 %v815, 0.2
      %v848 = vmul.f32 %v816, 0.2
      %v849 = vmul.f32 %v817, 0.2
      %v850 = vmul.f32 %v818, 0.2
      %v851 = vmul.f32 %v819, 0.2
      %v852 = vmul.f32 %v820, 0.2
      %v853 = vmul.f32 %v821, 0.2
      %v854 = vmul.f32 %v822, 0.2
      %v855 = vmul.f32 %v823, 0.2
      %v856 = vmul.f32 %v824, 0.2
      %v857 = vmul.f32 %v825, 0.2
      %v858 = vmul.f32 %v826, 0.2
      %v859 = vmul.f32 %v827, 0.2
      %v860 = vmul.f32 %v828, 0.2
      %v861 = vmul.f32 %v829, 0.2
      %v862 = vmul.f32 %v830, 0.2
      %v863 = vmul.f32 %v831, 0.2
      %v864 = vmul.f32 %v832, 0.2
      %v865 = vmul.f32 %v833, 0.2
      %v866 = vmul.f32 %v834, 0.2
      %v867 = vmul.f32 %v835, 0.2
      %v868 = vmul.f32 %v836, 0.2
      %v869 = vmul.f32 %v837, 0.2
      %v870 = vmul.f32 %v838, 0.2
      %v871 = vmul.f32 %v839, 0.2
      %v872 = vmul.f32 %v840, 0.2
      %v873 = vmul.f32 %v841, 0.2
      %v874 = vmul.f32 %v842, 0.2
      %v875 = vmul.f32 %v843, 0.2
      %v876 = vmul.f32 %v844, 0.2
      %v877 = vmul.f32 %v845, 0.2
      %v878 = vmax.f32 %v814, %v846
      %v879 = vmax.f32 %v815, %v847
      %v880 = vmax.f32 %v816, %v848
      %v881 = vmax.f32 %v817, %v849
      %v882 = vmax.f32 %v818, %v850
      %v883 = vmax.f32 %v819, %v851
      %v884 = vmax.f32 %v820, %v852
      %v885 = vmax.f32 %v821, %v853
      %v886 = vmax.f32 %v822, %v854
      %v887 = vmax.f32 %v823, %v855
      %v888 = vmax.f32 %v824, %v856
      %v889 = vmax.f32 %v825, %v857
      %v890 = vmax.f32 %v826, %v858
      %v891 = vmax.f32 %v827, %v859
      %v892 = vmax.f32 %v828, %v860
      %v893 = vmax.f32 %v829, %v861
      %v894 = vmax.f32 %v830, %v862
      %v895 = vmax.f32 %v831, %v863
      %v896 = vmax.f32 %v832, %v864
      %v897 = vmax.f32 %v833, %v865
      %v898 = vmax.f32 %v834, %v866
      %v899 = vmax.f32 %v835, %v867
      %v900 = vmax.f32 %v836, %v868
      %v901 = vmax.f32 %v837, %v869
      %v902 = vmax.f32 %v838, %v870
      %v903 = vmax.f32 %v839, %v871
      %v904 = vmax.f32 %v840, %v872
      %v905 = vmax.f32 %v841, %v873
      %v906 = vmax.f32 %v842, %v874
      %v907 = vmax.f32 %v843, %v875
      %v908 = vmax.f32 %v844, %v876
      %v909 = vmax.f32 %v845, %v877
      %910 = vst [vmem:[%s240] sm:$0xff] %v878
      %911 = vst [vmem:[%s240 + $0x8] sm:$0xff] %v879
      %912 = vst [vmem:[%s240 + $0x10] sm:$0xff] %v880
      %913 = vst [vmem:[%s240 + $0x18] sm:$0xff] %v881
      %914 = vst [vmem:[%s240 + $0x20] sm:$0xff] %v882
      %915 = vst [vmem:[%s240 + $0x28] sm:$0xff] %v883
      %916 = vst [vmem:[%s240 + $0x30] sm:$0xff] %v884
      %917 = vst [vmem:[%s240 + $0x38] sm:$0xff] %v885
      %918 = vst [vmem:[%s240 + $0x40] sm:$0xff] %v886
      %919 = vst [vmem:[%s240 + $0x48] sm:$0xff] %v887
      %920 = vst [vmem:[%s240 + $0x50] sm:$0xff] %v888
      %921 = vst [vmem:[%s240 + $0x58] sm:$0xff] %v889
      %922 = vst [vmem:[%s240 + $0x60] sm:$0xff] %v890
      %923 = vst [vmem:[%s240 + $0x68] sm:$0xff] %v891
      %924 = vst [vmem:[%s240 + $0x70] sm:$0xff] %v892
      %925 = vst [vmem:[%s240 + $0x78] sm:$0xff] %v893
      %926 = vst [vmem:[%s240 + $0x80] sm:$0xff] %v894
      %927 = vst [vmem:[%s240 + $0x88] sm:$0xff] %v895
      %928 = vst [vmem:[%s240 + $0x90] sm:$0xff] %v896
      %929 = vst [vmem:[%s240 + $0x98] sm:$0xff] %v897
      %930 = vst [vmem:[%s240 + $0xa0] sm:$0xff] %v898
      %931 = vst [vmem:[%s240 + $0xa8] sm:$0xff] %v899
      %932 = vst [vmem:[%s240 + $0xb0] sm:$0xff] %v900
      %933 = vst [vmem:[%s240 + $0xb8] sm:$0xff] %v901
      %934 = vst [vmem:[%s240 + $0xc0] sm:$0xff] %v902
      %935 = vst [vmem:[%s240 + $0xc8] sm:$0xff] %v903
      %936 = vst [vmem:[%s240 + $0xd0] sm:$0xff] %v904
      %937 = vst [vmem:[%s240 + $0xd8] sm:$0xff] %v905
      %938 = vst [vmem:[%s240 + $0xe0] sm:$0xff] %v906
      %939 = vst [vmem:[%s240 + $0xe8] sm:$0xff] %v907
      %940 = vst [vmem:[%s240 + $0xf0] sm:$0xff] %v908
      %941 = vst [vmem:[%s240 + $0xf8] sm:$0xff] %v909
      %s942 = smul.u32 16, %s20
      %p943 = scmp.lt.s32.totalorder %s19, 1
      %s944 = scalar_select %p943, %s19, 1
      %p945 = scmp.lt.s32.totalorder %s942, 15
      %s946 = scalar_select %p945, %s942, 15
      %p947 = scmp.lt.s32.totalorder %s21, 0
      %s948 = scalar_select %p947, %s21, 0
      %s949 = smul.addr %s946, 2
      %s950 = sadd.s32 %s948, %s949
      %s951 = smul.addr %s944, 32
      %s952 = sadd.s32 %s950, %s951
      %s953 = smul.addr %s952, 8
      %s954 = scalar_lea.vmem %s3, %s953
      // Predicated region
      $region33: #{discriminator_forward.6} parent=31 // pred_check
        %p955 = pneg %p133
      $region34: #{discriminator_forward.6} parent=31 // pred_check_branch
        %957 = sbr.rel (%p955) target = $region36
      $region35: #{discriminator_forward.6} parent=31 // pred_region
        %s958 = smul.u32 16, %s20
      $region36: #{discriminator_forward.6} parent=31 // pred_fallthru
        _
    $region32: #{discriminator_forward.6} parent=5 // pred_fallthru
      _
    %p959 = scmp.le.s32.totalorder 2, %s9
    // Predicated region
    $region37: #{discriminator_forward.6} parent=5 // pred_check
      %p960 = pneg %p959
    $region38: #{discriminator_forward.6} parent=5 // pred_check_branch
      %962 = sbr.rel (%p960) target = $region40
    $region39: #{discriminator_forward.6} parent=5 // pred_region
      %s963 = ssub.s32 %s9, 2
      // Predicated region
      $region41: #{discriminator_forward.6} parent=39 // pred_check
        %p964 = pneg %p139
      $region42: #{discriminator_forward.6} parent=39 // pred_check_branch
        %966 = sbr.rel (%p964) target = $region44
      $region43: #{discriminator_forward.6} parent=39 // pred_region
        %s967 = smul.u32 16, %s23
        %p968 = scmp.lt.s32.totalorder %s22, 1
        %s969 = scalar_select %p968, %s22, 1
        %p970 = scmp.lt.s32.totalorder %s967, 15
        %s971 = scalar_select %p970, %s967, 15
        %p972 = scmp.lt.s32.totalorder %s24, 0
        %s973 = scalar_select %p972, %s24, 0
        %s974 = smul.addr %s971, 2
        %s975 = sadd.s32 %s973, %s974
        %s976 = smul.addr %s969, 32
        %s977 = sadd.s32 %s975, %s976
        %s978 = smul.addr %s977, 8
        %s979 = scalar_lea.vmem %s3, %s978
      $region44: #{discriminator_forward.6} parent=39 // pred_fallthru
        _
    $region40: #{discriminator_forward.6} parent=5 // pred_fallthru
      _
  $region6: #{discriminator_forward.6} parent=0 // loop_footer
    %s13 = sadd.s32 1, %s9
  $region7: #{discriminator_forward.6} parent=0 // loop_footer_branch
    %8 = sbr.rel target = $region3
  $region8: #{discriminator_forward.6} parent=0 // loop_exit
    _

// kernel: discriminator_forward.7
$region0: #{discriminator_forward.7}
  #allocation0 [shape = 'u32[]', space=smem, size = 0x4, offset = 0x4, fixed_abs, tag = 'smem constant byte address 0x4 - core index']
  #allocation1 [shape = 'u32[72,128]{1,0:T(1,128)}', space=vmem, size = 0x9000, scoped, tag = 'internal scratch']
  %s0 = inlined_call_operand.vmem [shape: f32[2,9,8,256], index: 0, kind: input, shape index: {}]
  %s1 = inlined_call_operand.vmem [shape: f32[512,128], index: 1, kind: input, shape index: {}]
  %s2 = inlined_call_operand.vmem [shape: f32[1,128], index: 2, kind: input, shape index: {}]
  %s3 = inlined_call_operand.vmem [shape: f32[2,8,8,128], index: 3, kind: output, shape index: {}]
  %s4 = sld [smem:[#allocation0]]
  $region45: #{discriminator_forward.7} parent=0
    _
  %s6 = ssub.s32 1, %s4
  %s7 = scalar_select 0, %s6, %s4
  loop: start=0, step=1, limit=4
  $region2: #{discriminator_forward.7} parent=0 // loop_pre_header
    _
  $region3: #{discriminator_forward.7} parent=0 // loop_header
    %s9 = sphi 0, %s13
    %p10 = scmp.ge.s32.totalorder %s9, 4
    %s16 = sphi 0, %s35
    %s17 = sphi 0, %s31
    %s18 = sphi 0, %s27
    %s19 = sphi 0, %s16
    %s20 = sphi 0, %s17
    %s21 = sphi 0, %s18
    %s22 = sphi 0, %s19
    %s23 = sphi 0, %s20
    %s24 = sphi 0, %s21
    %s38 = sphi 0, %s40
    %s41 = sphi 0, %s38
    %s42 = sphi 0, %s41
    %s58 = sphi 0, %s42
    %s64 = sphi 0, %s66
    %s67 = sphi 0, %s64
    %s68 = sphi 0, %s67
    %s84 = sphi 0, %s68
    %s90 = sphi 0, %s92
    %s93 = sphi 0, %s90
    %s94 = sphi 0, %s93
    %s110 = sphi 0, %s94
    %s120 = sphi 0, %s122
    %s123 = sphi 0, %s120
    %s124 = sphi 0, %s123
    %s140 = sphi 0, %s124
  $region4: #{discriminator_forward.7} parent=0 // loop_header_branch
    %12 = sbr.rel (%p10) target = $region8
  $region5: #{discriminator_forward.7} parent=0 // loop_body
    %s14 = ssub.s32 %s9, 1
    %s15 = ssub.s32 %s9, 2
    %s25 = sadd.s32 1, %s18
    %p26 = scmp.ge.s32.totalorder %s25, 1
    %s27 = scalar_select %p26, 0, %s25
    %s28 = sadd.s32 1, %s17
    %s29 = scalar_select %p26, %s28, %s17
    %p30 = scmp.ge.s32.totalorder %s29, 1
    %s31 = scalar_select %p30, 0, %s29
    %s32 = sadd.s32 1, %s16
    %s33 = scalar_select %p30, %s32, %s16
    %p34 = scmp.ge.s32.totalorder %s33, 2
    %s35 = scalar_select %p34, 0, %s33
    %s36 = ssub.s32 %s16, %s35
    %p37 = scmp.eq.s32.totalorder %s36, 0
    %s39 = sadd.s32 %s38, 1
    %s40 = scalar_select %p37, %s38, %s39
    %p43 = pneg %p37
    %p44 = scmp.eq.s32.totalorder %s9, 1
    %p45 = por %p43, %p44
    %p46 = scmp.ne.s32.totalorder %s38, %s41
    %p47 = scmp.eq.s32.totalorder %s9, 0
    %p48 = por %p46, %p47
    %p49 = scmp.ne.s32.totalorder %s38, %s41
    %p50 = scmp.eq.s32.totalorder %s14, 1
    %p51 = por %p49, %p50
    %p52 = scmp.ne.s32.totalorder %s41, %s42
    %p53 = scmp.eq.s32.totalorder %s14, 0
    %p54 = por %p52, %p53
    %p55 = scmp.ne.s32.totalorder %s41, %s42
    %p56 = scmp.eq.s32.totalorder %s15, 1
    %p57 = por %p55, %p56
    %p59 = scmp.ne.s32.totalorder %s42, %s58
    %p60 = scmp.eq.s32.totalorder %s15, 0
    %p61 = por %p59, %p60
    %s62 = ssub.s32 %s18, %s27
    %p63 = scmp.eq.s32.totalorder %s62, 0
    %s65 = sadd.s32 %s64, 1
    %s66 = scalar_select %p63, %s64, %s65
    %p69 = pneg %p63
    %p70 = scmp.eq.s32.totalorder %s9, 1
    %p71 = por %p69, %p70
    %p72 = scmp.ne.s32.totalorder %s64, %s67
    %p73 = scmp.eq.s32.totalorder %s9, 0
    %p74 = por %p72, %p73
    %p75 = scmp.ne.s32.totalorder %s64, %s67
    %p76 = scmp.eq.s32.totalorder %s14, 1
    %p77 = por %p75, %p76
    %p78 = scmp.ne.s32.totalorder %s67, %s68
    %p79 = scmp.eq.s32.totalorder %s14, 0
    %p80 = por %p78, %p79
    %p81 = scmp.ne.s32.totalorder %s67, %s68
    %p82 = scmp.eq.s32.totalorder %s15, 1
    %p83 = por %p81, %p82
    %p85 = scmp.ne.s32.totalorder %s68, %s84
    %p86 = scmp.eq.s32.totalorder %s15, 0
    %p87 = por %p85, %p86
    %s88 = ssub.s32 %s18, %s27
    %p89 = scmp.eq.s32.totalorder %s88, 0
    %s91 = sadd.s32 %s90, 1
    %s92 = scalar_select %p89, %s90, %s91
    %p95 = pneg %p89
    %p96 = scmp.eq.s32.totalorder %s9, 1
    %p97 = por %p95, %p96
    %p98 = scmp.ne.s32.totalorder %s90, %s93
    %p99 = scmp.eq.s32.totalorder %s9, 0
    %p100 = por %p98, %p99
    %p101 = scmp.ne.s32.totalorder %s90, %s93
    %p102 = scmp.eq.s32.totalorder %s14, 1
    %p103 = por %p101, %p102
    %p104 = scmp.ne.s32.totalorder %s93, %s94
    %p105 = scmp.eq.s32.totalorder %s14, 0
    %p106 = por %p104, %p105
    %p107 = scmp.ne.s32.totalorder %s93, %s94
    %p108 = scmp.eq.s32.totalorder %s15, 1
    %p109 = por %p107, %p108
    %p111 = scmp.ne.s32.totalorder %s94, %s110
    %p112 = scmp.eq.s32.totalorder %s15, 0
    %p113 = por %p111, %p112
    %s114 = ssub.s32 %s16, %s35
    %s115 = ssub.s32 %s17, %s31
    %s116 = sor.u32 %s114, %s115
    %s117 = ssub.s32 %s18, %s27
    %s118 = sor.u32 %s116, %s117
    %p119 = scmp.eq.s32.totalorder %s118, 0
    %s121 = sadd.s32 %s120, 1
    %s122 = scalar_select %p119, %s120, %s121
    %p125 = pneg %p119
    %p126 = scmp.eq.s32.totalorder %s9, 1
    %p127 = por %p125, %p126
    %p128 = scmp.ne.s32.totalorder %s120, %s123
    %p129 = scmp.eq.s32.totalorder %s9, 0
    %p130 = por %p128, %p129
    %p131 = scmp.ne.s32.totalorder %s120, %s123
    %p132 = scmp.eq.s32.totalorder %s14, 1
    %p133 = por %p131, %p132
    %p134 = scmp.ne.s32.totalorder %s123, %s124
    %p135 = scmp.eq.s32.totalorder %s14, 0
    %p136 = por %p134, %p135
    %p137 = scmp.ne.s32.totalorder %s123, %s124
    %p138 = scmp.eq.s32.totalorder %s15, 1
    %p139 = por %p137, %p138
    %p141 = scmp.ne.s32.totalorder %s124, %s140
    %p142 = scmp.eq.s32.totalorder %s15, 0
    %p143 = por %p141, %p142
    %p144 = scmp.le.s32.totalorder 1, %s9
    %p145 = scmp.lt.s32.totalorder %s9, 3
    %p146 = pnand %p144, %p145
    %p147 = pneg %p146
    // Predicated region
    $region9: #{discriminator_forward.7} parent=5 // pred_check
      _
    $region10: #{discriminator_forward.7} parent=5 // pred_check_branch
      %149 = sbr.rel (%p146) target = $region12
    $region11: #{discriminator_forward.7} parent=5 // pred_region
      %s150 = ssub.s32 %s9, 1
      // Predicated region
      $region13: #{discriminator_forward.7} parent=11 // pred_check
        %p151 = pneg %p80
      $region14: #{discriminator_forward.7} parent=11 // pred_check_branch
        %153 = sbr.rel (%p151) target = $region16
      $region15: #{discriminator_forward.7} parent=11 // pred_region
        %p154 = scmp.lt.s32.totalorder %s21, 0
        %s155 = scalar_select %p154, %s21, 0
        %s156 = smul.addr %s155, 8
        %s157 = scalar_lea.vmem %s1, %s156
      $region16: #{discriminator_forward.7} parent=11 // pred_fallthru
        _
      // Predicated region
      $region17: #{discriminator_forward.7} parent=11 // pred_check
        %p158 = pneg %p106
      $region18: #{discriminator_forward.7} parent=11 // pred_check_branch
        %160 = sbr.rel (%p158) target = $region20
      $region19: #{discriminator_forward.7} parent=11 // pred_region
        %p161 = scmp.lt.s32.totalorder %s21, 0
        %s162 = scalar_select %p161, %s21, 0
        %s163 = scalar_lea.vmem %s2, %s162
      $region20: #{discriminator_forward.7} parent=11 // pred_fallthru
        _
    $region12: #{discriminator_forward.7} parent=5 // pred_fallthru
      _
    %p164 = scmp.lt.s32.totalorder %s9, 2
    // Predicated region
    $region21: #{discriminator_forward.7} parent=5 // pred_check
      %p165 = pneg %p164
    $region22: #{discriminator_forward.7} parent=5 // pred_check_branch
      %167 = sbr.rel (%p165) target = $region24
    $region23: #{discriminator_forward.7} parent=5 // pred_region
      // Predicated region
      $region25: #{discriminator_forward.7} parent=23 // pred_check
        %p168 = pneg %p48
      $region26: #{discriminator_forward.7} parent=23 // pred_check_branch
        %170 = sbr.rel (%p168) target = $region28
      $region27: #{discriminator_forward.7} parent=23 // pred_region
        %p171 = scmp.lt.s32.totalorder %s16, 1
        %s172 = scalar_select %p171, %s16, 1
        %s173 = smul.addr %s172, 18
        %s174 = smul.addr %s173, 8
        %s175 = scalar_lea.vmem %s0, %s174
      $region28: #{discriminator_forward.7} parent=23 // pred_fallthru
        _
    $region24: #{discriminator_forward.7} parent=5 // pred_fallthru
      _
    %p176 = scmp.le.s32.totalorder 1, %s9
    %p177 = scmp.lt.s32.totalorder %s9, 3
    %p178 = pnand %p176, %p177
    %p179 = pneg %p178
    // Predicated region
    $region29: #{discriminator_forward.7} parent=5 // pred_check
      _
    $region30: #{discriminator_forward.7} parent=5 // pred_check_branch
      %181 = sbr.rel (%p178) target = $region32
    $region31: #{discriminator_forward.7} parent=5 // pred_region
      %s182 = ssub.s32 %s9, 1
      %p183 = scmp.lt.s32.totalorder %s19, 1
      %s184 = scalar_select %p183, %s19, 1
      %s185 = smul.addr %s184, 18
      %s186 = smul.addr %s185, 8
      %s187 = scalar_lea.vmem %s0, %s186
      %p188 = pneg %p54
      %p189 = pneg %p51
      %p190 = scmp.lt.s32.totalorder %s21, 0
      %s191 = scalar_select %p190, %s21, 0
      %s192 = smul.addr %s191, 8
      %s193 = scalar_lea.vmem %s1, %s192
      %p194 = pneg %p80
      %p195 = pneg %p77
      %p196 = scmp.lt.s32.totalorder %s21, 0
      %s197 = scalar_select %p196, %s21, 0
      %s198 = scalar_lea.vmem %s2, %s197
      %p199 = pneg %p106
      %p200 = pneg %p103
      %p201 = pneg %p136
      %p202 = pneg %p133
      %s203 = smul.u32 8, %s20
      %p204 = scmp.lt.s32.totalorder %s19, 1
      %s205 = scalar_select %p204, %s19, 1
      %p206 = scmp.lt.s32.totalorder %s203, 7
      %s207 = scalar_select %p206, %s203, 7
      %p208 = scmp.lt.s32.totalorder %s21, 0
      %s209 = scalar_select %p208, %s21, 0
      %s210 = sadd.s32 %s209, %s207
      %s211 = smul.addr %s205, 8
      %s212 = sadd.s32 %s210, %s211
      %s213 = smul.addr %s212, 8
      %s214 = scalar_lea.vmem %s3, %s213
      %p215 = scmp.lt.s32.totalorder %s19, 1
      %s216 = scalar_select %p215, %s19, 1
      %s217 = smul.addr %s216, 18
      %s218 = smul.addr %s217, 8
      %s219 = scalar_lea.vmem %s0, %s218
      %p220 = scmp.lt.s32.totalorder %s21, 0
      %s221 = scalar_select %p220, %s21, 0
      %s222 = smul.addr %s221, 8
      %s223 = scalar_lea.vmem %s1, %s222
      %p224 = scmp.lt.s32.totalorder %s21, 0
      %s225 = scalar_select %p224, %s21, 0
      %s226 = scalar_lea.vmem %s2, %s225
      %s227 = smul.u32 8, %s20
      %p228 = scmp.lt.s32.totalorder %s19, 1
      %s229 = scalar_select %p228, %s19, 1
      %p230 = scmp.lt.s32.totalorder %s227, 7
      %s231 = scalar_select %p230, %s227, 7
      %p232 = scmp.lt.s32.totalorder %s21, 0
      %s233 = scalar_select %p232, %s21, 0
      %s234 = sadd.s32 %s233, %s231
      %s235 = smul.addr %s229, 8
      %s236 = sadd.s32 %s234, %s235
      %s237 = smul.addr %s236, 8
      %s238 = scalar_lea.vmem %s3, %s237
      %s239 = smul.u32 8, %s20
      %s240 = smul.u32 %s20, 8
      %s241 = smul.u32 %s240, 2
      %s242 = smul.addr %s241, 8
      %s243 = scalar_lea.vmem %s219, %s242
      %v244 = vld [vmem:[%s243] sm:$0xff]
      %v245 = vld [vmem:[%s243 + $0x8] sm:$0xff]
      %v246 = vld [vmem:[%s243 + $0x10] sm:$0xff]
      %v247 = vld [vmem:[%s243 + $0x18] sm:$0xff]
      %v248 = vld [vmem:[%s243 + $0x20] sm:$0xff]
      %v249 = vld [vmem:[%s243 + $0x28] sm:$0xff]
      %v250 = vld [vmem:[%s243 + $0x30] sm:$0xff]
      %v251 = vld [vmem:[%s243 + $0x38] sm:$0xff]
      %v252 = vld [vmem:[%s243 + $0x40] sm:$0xff]
      %v253 = vld [vmem:[%s243 + $0x48] sm:$0xff]
      %v254 = vld [vmem:[%s243 + $0x50] sm:$0xff]
      %v255 = vld [vmem:[%s243 + $0x58] sm:$0xff]
      %v256 = vld [vmem:[%s243 + $0x60] sm:$0xff]
      %v257 = vld [vmem:[%s243 + $0x68] sm:$0xff]
      %v258 = vld [vmem:[%s243 + $0x70] sm:$0xff]
      %v259 = vld [vmem:[%s243 + $0x78] sm:$0xff]
      %s260 = sadd.s32 %s240, 1
      %s261 = smul.u32 %s260, 2
      %s262 = smul.addr %s261, 8
      %s263 = scalar_lea.vmem %s219, %s262
      %v264 = vld [vmem:[%s263] sm:$0xff]
      %v265 = vld [vmem:[%s263 + $0x8] sm:$0xff]
      %v266 = vld [vmem:[%s263 + $0x10] sm:$0xff]
      %v267 = vld [vmem:[%s263 + $0x18] sm:$0xff]
      %v268 = vld [vmem:[%s263 + $0x20] sm:$0xff]
      %v269 = vld [vmem:[%s263 + $0x28] sm:$0xff]
      %v270 = vld [vmem:[%s263 + $0x30] sm:$0xff]
      %v271 = vld [vmem:[%s263 + $0x38] sm:$0xff]
      %v272 = vld [vmem:[%s263 + $0x40] sm:$0xff]
      %v273 = vld [vmem:[%s263 + $0x48] sm:$0xff]
      %v274 = vld [vmem:[%s263 + $0x50] sm:$0xff]
      %v275 = vld [vmem:[%s263 + $0x58] sm:$0xff]
      %v276 = vld [vmem:[%s263 + $0x60] sm:$0xff]
      %v277 = vld [vmem:[%s263 + $0x68] sm:$0xff]
      %v278 = vld [vmem:[%s263 + $0x70] sm:$0xff]
      %v279 = vld [vmem:[%s263 + $0x78] sm:$0xff]
      %v280 = vld [vmem:[%s223] sm:$0xff]
      %v281 = vld [vmem:[%s223 + $0x8] sm:$0xff]
      %v282 = vld [vmem:[%s223 + $0x10] sm:$0xff]
      %v283 = vld [vmem:[%s223 + $0x18] sm:$0xff]
      %v284 = vld [vmem:[%s223 + $0x20] sm:$0xff]
      %v285 = vld [vmem:[%s223 + $0x28] sm:$0xff]
      %v286 = vld [vmem:[%s223 + $0x30] sm:$0xff]
      %v287 = vld [vmem:[%s223 + $0x38] sm:$0xff]
      %v288 = vld [vmem:[%s223 + $0x40] sm:$0xff]
      %v289 = vld [vmem:[%s223 + $0x48] sm:$0xff]
      %v290 = vld [vmem:[%s223 + $0x50] sm:$0xff]
      %v291 = vld [vmem:[%s223 + $0x58] sm:$0xff]
      %v292 = vld [vmem:[%s223 + $0x60] sm:$0xff]
      %v293 = vld [vmem:[%s223 + $0x68] sm:$0xff]
      %v294 = vld [vmem:[%s223 + $0x70] sm:$0xff]
      %v295 = vld [vmem:[%s223 + $0x78] sm:$0xff]
      %v296 = vld [vmem:[%s223 + $0x80] sm:$0xff]
      %v297 = vld [vmem:[%s223 + $0x88] sm:$0xff]
      %v298 = vld [vmem:[%s223 + $0x90] sm:$0xff]
      %v299 = vld [vmem:[%s223 + $0x98] sm:$0xff]
      %v300 = vld [vmem:[%s223 + $0xa0] sm:$0xff]
      %v301 = vld [vmem:[%s223 + $0xa8] sm:$0xff]
      %v302 = vld [vmem:[%s223 + $0xb0] sm:$0xff]
      %v303 = vld [vmem:[%s223 + $0xb8] sm:$0xff]
      %v304 = vld [vmem:[%s223 + $0xc0] sm:$0xff]
      %v305 = vld [vmem:[%s223 + $0xc8] sm:$0xff]
      %v306 = vld [vmem:[%s223 + $0xd0] sm:$0xff]
      %v307 = vld [vmem:[%s223 + $0xd8] sm:$0xff]
      %v308 = vld [vmem:[%s223 + $0xe0] sm:$0xff]
      %v309 = vld [vmem:[%s223 + $0xe8] sm:$0xff]
      %v310 = vld [vmem:[%s223 + $0xf0] sm:$0xff]
      %v311 = vld [vmem:[%s223 + $0xf8] sm:$0xff]
      %v312 = vld [vmem:[%s223 + $0x100] sm:$0xff]
      %v313 = vld [vmem:[%s223 + $0x108] sm:$0xff]
      %v314 = vld [vmem:[%s223 + $0x110] sm:$0xff]
      %v315 = vld [vmem:[%s223 + $0x118] sm:$0xff]
      %v316 = vld [vmem:[%s223 + $0x120] sm:$0xff]
      %v317 = vld [vmem:[%s223 + $0x128] sm:$0xff]
      %v318 = vld [vmem:[%s223 + $0x130] sm:$0xff]
      %v319 = vld [vmem:[%s223 + $0x138] sm:$0xff]
      %v320 = vld [vmem:[%s223 + $0x140] sm:$0xff]
      %v321 = vld [vmem:[%s223 + $0x148] sm:$0xff]
      %v322 = vld [vmem:[%s223 + $0x150] sm:$0xff]
      %v323 = vld [vmem:[%s223 + $0x158] sm:$0xff]
      %v324 = vld [vmem:[%s223 + $0x160] sm:$0xff]
      %v325 = vld [vmem:[%s223 + $0x168] sm:$0xff]
      %v326 = vld [vmem:[%s223 + $0x170] sm:$0xff]
      %v327 = vld [vmem:[%s223 + $0x178] sm:$0xff]
      %v328 = vld [vmem:[%s223 + $0x180] sm:$0xff]
      %v329 = vld [vmem:[%s223 + $0x188] sm:$0xff]
      %v330 = vld [vmem:[%s223 + $0x190] sm:$0xff]
      %v331 = vld [vmem:[%s223 + $0x198] sm:$0xff]
      %v332 = vld [vmem:[%s223 + $0x1a0] sm:$0xff]
      %v333 = vld [vmem:[%s223 + $0x1a8] sm:$0xff]
      %v334 = vld [vmem:[%s223 + $0x1b0] sm:$0xff]
      %v335 = vld [vmem:[%s223 + $0x1b8] sm:$0xff]
      %v336 = vld [vmem:[%s223 + $0x1c0] sm:$0xff]
      %v337 = vld [vmem:[%s223 + $0x1c8] sm:$0xff]
      %v338 = vld [vmem:[%s223 + $0x1d0] sm:$0xff]
      %v339 = vld [vmem:[%s223 + $0x1d8] sm:$0xff]
      %v340 = vld [vmem:[%s223 + $0x1e0] sm:$0xff]
      %v341 = vld [vmem:[%s223 + $0x1e8] sm:$0xff]
      %v342 = vld [vmem:[%s223 + $0x1f0] sm:$0xff]
      %v343 = vld [vmem:[%s223 + $0x1f8] sm:$0xff]
      %v344 = vld [vmem:[%s226] sm:$0x1]
      %v346 = vperm.slane %v344, 0
      %348 = vmatpush.msra.mxu0 %v295
      %349 = vmatpush.msra.mxu0 %v294
      %350 = vmatpush.msra.mxu0 %v293
      %351 = vmatpush.msra.mxu0 %v292
      %352 = vmatpush.msra.mxu0 %v291
      %353 = vmatpush.msra.mxu0 %v290
      %354 = vmatpush.msra.mxu0 %v289
      %355 = vmatpush.msra.mxu0 %v288
      %356 = vmatpush.msra.mxu0 %v287
      %357 = vmatpush.msra.mxu0 %v286
      %358 = vmatpush.msra.mxu0 %v285
      %359 = vmatpush.msra.mxu0 %v284
      %360 = vmatpush.msra.mxu0 %v283
      %361 = vmatpush.msra.mxu0 %v282
      %362 = vmatpush.msra.mxu0 %v281
      %363 = vmatpush.msra.mxu0 %v280
      %364 = vmatmul.f32.gmra.mxu0 %v244
      %v365 = vpop.f32.mrf.mxu0
      %v366 = vadd.f32 %v346, %v365
      %367 = vmatmul.f32.gmra.mxu0 %v246
      %v368 = vpop.f32.mrf.mxu0
      %v369 = vadd.f32 %v346, %v368
      %370 = vmatmul.f32.gmra.mxu0 %v248
      %v371 = vpop.f32.mrf.mxu0
      %v372 = vadd.f32 %v346, %v371
      %373 = vmatmul.f32.gmra.mxu0 %v250
      %v374 = vpop.f32.mrf.mxu0
      %v375 = vadd.f32 %v346, %v374
      %376 = vmatmul.f32.gmra.mxu0 %v252
      %v377 = vpop.f32.mrf.mxu0
      %v378 = vadd.f32 %v346, %v377
      %379 = vmatmul.f32.gmra.mxu0 %v254
      %v380 = vpop.f32.mrf.mxu0
      %v381 = vadd.f32 %v346, %v380
      %382 = vmatmul.f32.gmra.mxu0 %v256
      %v383 = vpop.f32.mrf.mxu0
      %v384 = vadd.f32 %v346, %v383
      %385 = vmatmul.f32.gmra.mxu0 %v258
      %v386 = vpop.f32.mrf.mxu0
      %v387 = vadd.f32 %v346, %v386
      %388 = vdwg.mxu0
      %389 = vmatpush.msra.mxu0 %v311
      %390 = vmatpush.msra.mxu0 %v310
      %391 = vmatpush.msra.mxu0 %v309
      %392 = vmatpush.msra.mxu0 %v308
      %393 = vmatpush.msra.mxu0 %v307
      %394 = vmatpush.msra.mxu0 %v306
      %395 = vmatpush.msra.mxu0 %v305
      %396 = vmatpush.msra.mxu0 %v304
      %397 = vmatpush.msra.mxu0 %v303
      %398 = vmatpush.msra.mxu0 %v302
      %399 = vmatpush.msra.mxu0 %v301
      %400 = vmatpush.msra.mxu0 %v300
      %401 = vmatpush.msra.mxu0 %v299
      %402 = vmatpush.msra.mxu0 %v298
      %403 = vmatpush.msra.mxu0 %v297
      %404 = vmatpush.msra.mxu0 %v296
      %405 = vmatmul.f32.gmra.mxu0 %v245
      %v406 = vpop.f32.mrf.mxu0
      %v407 = vadd.f32 %v366, %v406
      %408 = vmatmul.f32.gmra.mxu0 %v247
      %v409 = vpop.f32.mrf.mxu0
      %v410 = vadd.f32 %v369, %v409
      %411 = vmatmul.f32.gmra.mxu0 %v249
      %v412 = vpop.f32.mrf.mxu0
      %v413 = vadd.f32 %v372, %v412
      %414 = vmatmul.f32.gmra.mxu0 %v251
      %v415 = vpop.f32.mrf.mxu0
      %v416 = vadd.f32 %v375, %v415
      %417 = vmatmul.f32.gmra.mxu0 %v253
      %v418 = vpop.f32.mrf.mxu0
      %v419 = vadd.f32 %v378, %v418
      %420 = vmatmul.f32.gmra.mxu0 %v255
      %v421 = vpop.f32.mrf.mxu0
      %v422 = vadd.f32 %v381, %v421
      %423 = vmatmul.f32.gmra.mxu0 %v257
      %v424 = vpop.f32.mrf.mxu0
      %v425 = vadd.f32 %v384, %v424
      %426 = vmatmul.f32.gmra.mxu0 %v259
      %v427 = vpop.f32.mrf.mxu0
      %v428 = vadd.f32 %v387, %v427
      %429 = vdwg.mxu0
      %430 = vmatpush.msra.mxu0 %v327
      %431 = vmatpush.msra.mxu0 %v326
      %432 = vmatpush.msra.mxu0 %v325
      %433 = vmatpush.msra.mxu0 %v324
      %434 = vmatpush.msra.mxu0 %v323
      %435 = vmatpush.msra.mxu0 %v322
      %436 = vmatpush.msra.mxu0 %v321
      %437 = vmatpush.msra.mxu0 %v320
      %438 = vmatpush.msra.mxu0 %v319
      %439 = vmatpush.msra.mxu0 %v318
      %440 = vmatpush.msra.mxu0 %v317
      %441 = vmatpush.msra.mxu0 %v316
      %442 = vmatpush.msra.mxu0 %v315
      %443 = vmatpush.msra.mxu0 %v314
      %444 = vmatpush.msra.mxu0 %v313
      %445 = vmatpush.msra.mxu0 %v312
      %446 = vmatmul.f32.gmra.mxu0 %v264
      %v447 = vpop.f32.mrf.mxu0
      %v448 = vadd.f32 %v407, %v447
      %449 = vmatmul.f32.gmra.mxu0 %v266
      %v450 = vpop.f32.mrf.mxu0
      %v451 = vadd.f32 %v410, %v450
      %452 = vmatmul.f32.gmra.mxu0 %v268
      %v453 = vpop.f32.mrf.mxu0
      %v454 = vadd.f32 %v413, %v453
      %455 = vmatmul.f32.gmra.mxu0 %v270
      %v456 = vpop.f32.mrf.mxu0
      %v457 = vadd.f32 %v416, %v456
      %458 = vmatmul.f32.gmra.mxu0 %v272
      %v459 = vpop.f32.mrf.mxu0
      %v460 = vadd.f32 %v419, %v459
      %461 = vmatmul.f32.gmra.mxu0 %v274
      %v462 = vpop.f32.mrf.mxu0
      %v463 = vadd.f32 %v422, %v462
      %464 = vmatmul.f32.gmra.mxu0 %v276
      %v465 = vpop.f32.mrf.mxu0
      %v466 = vadd.f32 %v425, %v465
      %467 = vmatmul.f32.gmra.mxu0 %v278
      %v468 = vpop.f32.mrf.mxu0
      %v469 = vadd.f32 %v428, %v468
      %470 = vdwg.mxu0
      %471 = vmatpush.msra.mxu0 %v343
      %472 = vmatpush.msra.mxu0 %v342
      %473 = vmatpush.msra.mxu0 %v341
      %474 = vmatpush.msra.mxu0 %v340
      %475 = vmatpush.msra.mxu0 %v339
      %476 = vmatpush.msra.mxu0 %v338
      %477 = vmatpush.msra.mxu0 %v337
      %478 = vmatpush.msra.mxu0 %v336
      %479 = vmatpush.msra.mxu0 %v335
      %480 = vmatpush.msra.mxu0 %v334
      %481 = vmatpush.msra.mxu0 %v333
      %482 = vmatpush.msra.mxu0 %v332
      %483 = vmatpush.msra.mxu0 %v331
      %484 = vmatpush.msra.mxu0 %v330
      %485 = vmatpush.msra.mxu0 %v329
      %486 = vmatpush.msra.mxu0 %v328
      %487 = vmatmul.f32.gmra.mxu0 %v265
      %v488 = vpop.f32.mrf.mxu0
      %v489 = vadd.f32 %v448, %v488
      %490 = vmatmul.f32.gmra.mxu0 %v267
      %v491 = vpop.f32.mrf.mxu0
      %v492 = vadd.f32 %v451, %v491
      %493 = vmatmul.f32.gmra.mxu0 %v269
      %v494 = vpop.f32.mrf.mxu0
      %v495 = vadd.f32 %v454, %v494
      %496 = vmatmul.f32.gmra.mxu0 %v271
      %v497 = vpop.f32.mrf.mxu0
      %v498 = vadd.f32 %v457, %v497
      %499 = vmatmul.f32.gmra.mxu0 %v273
      %v500 = vpop.f32.mrf.mxu0
      %v501 = vadd.f32 %v460, %v500
      %502 = vmatmul.f32.gmra.mxu0 %v275
      %v503 = vpop.f32.mrf.mxu0
      %v504 = vadd.f32 %v463, %v503
      %505 = vmatmul.f32.gmra.mxu0 %v277
      %v506 = vpop.f32.mrf.mxu0
      %v507 = vadd.f32 %v466, %v506
      %508 = vmatmul.f32.gmra.mxu0 %v279
      %v509 = vpop.f32.mrf.mxu0
      %v510 = vadd.f32 %v469, %v509
      %511 = vdwg.mxu0
      %v512 = vrot.slane %v489, 4
      %v513 = vadd.f32 %v489, %v512
      %v514 = vrot.slane %v513, 2
      %v515 = vadd.f32 %v513, %v514
      %v516 = vrot.slane %v515, 1
      %v517 = vadd.f32 %v515, %v516
      %v518 = vadd.f32 %v517, 0.0
      %v519 = vmul.f32 %v489, %v489
      %v520 = vrot.slane %v519, 4
      %v521 = vadd.f32 %v519, %v520
      %v522 = vrot.slane %v521, 2
      %v523 = vadd.f32 %v521, %v522
      %v524 = vrot.slane %v523, 1
      %v525 = vadd.f32 %v523, %v524
      %v526 = vadd.f32 %v525, 0.0
      %v527 = vrot.slane %v492, 4
      %v528 = vadd.f32 %v492, %v527
      %v529 = vrot.slane %v528, 2
      %v530 = vadd.f32 %v528, %v529
      %v531 = vrot.slane %v530, 1
      %v532 = vadd.f32 %v530, %v531
      %v533 = vadd.f32 %v518, %v532
      %v534 = vmul.f32 %v492, %v492
      %v535 = vrot.slane %v534, 4
      %v536 = vadd.f32 %v534, %v535
      %v537 = vrot.slane %v536, 2
      %v538 = vadd.f32 %v536, %v537
      %v539 = vrot.slane %v538, 1
      %v540 = vadd.f32 %v538, %v539
      %v541 = vadd.f32 %v526, %v540
      %v542 = vrot.slane %v495, 4
      %v543 = vadd.f32 %v495, %v542
      %v544 = vrot.slane %v543, 2
      %v545 = vadd.f32 %v543, %v544
      %v546 = vrot.slane %v545, 1
      %v547 = vadd.f32 %v545, %v546
      %v548 = vadd.f32 %v533, %v547
      %v549 = vmul.f32 %v495, %v495
      %v550 = vrot.slane %v549, 4
      %v551 = vadd.f32 %v549, %v550
      %v552 = vrot.slane %v551, 2
      %v553 = vadd.f32 %v551, %v552
      %v554 = vrot.slane %v553, 1
      %v555 = vadd.f32 %v553, %v554
      %v556 = vadd.f32 %v541, %v555
      %v557 = vrot.slane %v498, 4
      %v558 = vadd.f32 %v498, %v557
      %v559 = vrot.slane %v558, 2
      %v560 = vadd.f32 %v558, %v559
      %v561 = vrot.slane %v560, 1
      %v562 = vadd.f32 %v560, %v561
      %v563 = vadd.f32 %v548, %v562
      %v564 = vmul.f32 %v498, %v498
      %v565 = vrot.slane %v564, 4
      %v566 = vadd.f32 %v564, %v565
      %v567 = vrot.slane %v566, 2
      %v568 = vadd.f32 %v566, %v567
      %v569 = vrot.slane %v568, 1
      %v570 = vadd.f32 %v568, %v569
      %v571 = vadd.f32 %v556, %v570
      %v572 = vrot.slane %v501, 4
      %v573 = vadd.f32 %v501, %v572
      %v574 = vrot.slane %v573, 2
      %v575 = vadd.f32 %v573, %v574
      %v576 = vrot.slane %v575, 1
      %v577 = vadd.f32 %v575, %v576
      %v578 = vadd.f32 %v563, %v577
      %v579 = vmul.f32 %v501, %v501
      %v580 = vrot.slane %v579, 4
      %v581 = vadd.f32 %v579, %v580
      %v582 = vrot.slane %v581, 2
      %v583 = vadd.f32 %v581, %v582
      %v584 = vrot.slane %v583, 1
      %v585 = vadd.f32 %v583, %v584
      %v586 = vadd.f32 %v571, %v585
      %v587 = vrot.slane %v504, 4
      %v588 = vadd.f32 %v504, %v587
      %v589 = vrot.slane %v588, 2
      %v590 = vadd.f32 %v588, %v589
      %v591 = vrot.slane %v590, 1
      %v592 = vadd.f32 %v590, %v591
      %v593 = vadd.f32 %v578, %v592
      %v594 = vmul.f32 %v504, %v504
      %v595 = vrot.slane %v594, 4
      %v596 = vadd.f32 %v594, %v595
      %v597 = vrot.slane %v596, 2
      %v598 = vadd.f32 %v596, %v597
      %v599 = vrot.slane %v598, 1
      %v600 = vadd.f32 %v598, %v599
      %v601 = vadd.f32 %v586, %v600
      %v602 = vrot.slane %v507, 4
      %v603 = vadd.f32 %v507, %v602
      %v604 = vrot.slane %v603, 2
      %v605 = vadd.f32 %v603, %v604
      %v606 = vrot.slane %v605, 1
      %v607 = vadd.f32 %v605, %v606
      %v608 = vadd.f32 %v593, %v607
      %v609 = vmul.f32 %v507, %v507
      %v610 = vrot.slane %v609, 4
      %v611 = vadd.f32 %v609, %v610
      %v612 = vrot.slane %v611, 2
      %v613 = vadd.f32 %v611, %v612
      %v614 = vrot.slane %v613, 1
      %v615 = vadd.f32 %v613, %v614
      %v616 = vadd.f32 %v601, %v615
      %v617 = vrot.slane %v510, 4
      %v618 = vadd.f32 %v510, %v617
      %v619 = vrot.slane %v618, 2
      %v620 = vadd.f32 %v618, %v619
      %v621 = vrot.slane %v620, 1
      %v622 = vadd.f32 %v620, %v621
      %v623 = vadd.f32 %v608, %v622
      %v624 = vmul.f32 %v510, %v510
      %v625 = vrot.slane %v624, 4
      %v626 = vadd.f32 %v624, %v625
      %v627 = vrot.slane %v626, 2
      %v628 = vadd.f32 %v626, %v627
      %v629 = vrot.slane %v628, 1
      %v630 = vadd.f32 %v628, %v629
      %v631 = vadd.f32 %v616, %v630
      %v632 = vmul.f32 %v623, 0.015625
      %v633 = vmul.f32 %v631, 0.015625
      %v634 = vmul.f32 %v632, %v632
      %v635 = vsub.f32 %v633, %v634
      %v636 = vmax.f32 %v635, 0.0
      %v637 = vsub.f32 %v489, %v632
      %v638 = vsub.f32 %v492, %v632
      %v639 = vsub.f32 %v495, %v632
      %v640 = vsub.f32 %v498, %v632
      %v641 = vsub.f32 %v501, %v632
      %v642 = vsub.f32 %v504, %v632
      %v643 = vsub.f32 %v507, %v632
      %v644 = vsub.f32 %v510, %v632
      %v645 = vadd.f32 %v636, 1e-05
      %v646 = vrsqrt.pop %v645
      %v647 = vmul.f32 %v646, %v645
      %v648 = vmul.f32 %v647, %v646
      %v649 = vmul.f32 0.5, %v648
      %v650 = vsub.f32 1.5, %v649
      %v651 = vmul.f32 %v646, %v650
      %vm652 = vweird.f32 %v645
      %vm653 = vweird.f32 %v646
      %vm654 = vmor %vm652, %vm653
      %v655 = vsel %vm654, %v646, %v651
      %v656 = vmul.f32 %v637, %v655
      %v657 = vmul.f32 %v638, %v655
      %v658 = vmul.f32 %v639, %v655
      %v659 = vmul.f32 %v640, %v655
      %v660 = vmul.f32 %v641, %v655
      %v661 = vmul.f32 %v642, %v655
      %v662 = vmul.f32 %v643, %v655
      %v663 = vmul.f32 %v644, %v655
      %v664 = vmul.f32 %v656, 0.2
      %v665 = vmul.f32 %v657, 0.2
      %v666 = vmul.f32 %v658, 0.2
      %v667 = vmul.f32 %v659, 0.2
      %v668 = vmul.f32 %v660, 0.2
      %v669 = vmul.f32 %v661, 0.2
      %v670 = vmul.f32 %v662, 0.2
      %v671 = vmul.f32 %v663, 0.2
      %v672 = vmax.f32 %v656, %v664
      %v673 = vmax.f32 %v657, %v665
      %v674 = vmax.f32 %v658, %v666
      %v675 = vmax.f32 %v659, %v667
      %v676 = vmax.f32 %v660, %v668
      %v677 = vmax.f32 %v661, %v669
      %v678 = vmax.f32 %v662, %v670
      %v679 = vmax.f32 %v663, %v671
      %680 = vst [vmem:[%s238] sm:$0xff] %v672
      %681 = vst [vmem:[%s238 + $0x8] sm:$0xff] %v673
      %682 = vst [vmem:[%s238 + $0x10] sm:$0xff] %v674
      %683 = vst [vmem:[%s238 + $0x18] sm:$0xff] %v675
      %684 = vst [vmem:[%s238 + $0x20] sm:$0xff] %v676
      %685 = vst [vmem:[%s238 + $0x28] sm:$0xff] %v677
      %686 = vst [vmem:[%s238 + $0x30] sm:$0xff] %v678
      %687 = vst [vmem:[%s238 + $0x38] sm:$0xff] %v679
      %s688 = smul.u32 8, %s20
      %p689 = scmp.lt.s32.totalorder %s19, 1
      %s690 = scalar_select %p689, %s19, 1
      %p691 = scmp.lt.s32.totalorder %s688, 7
      %s692 = scalar_select %p691, %s688, 7
      %p693 = scmp.lt.s32.totalorder %s21, 0
      %s694 = scalar_select %p693, %s21, 0
      %s695 = sadd.s32 %s694, %s692
      %s696 = smul.addr %s690, 8
      %s697 = sadd.s32 %s695, %s696
      %s698 = smul.addr %s697, 8
      %s699 = scalar_lea.vmem %s3, %s698
      // Predicated region
      $region33: #{discriminator_forward.7} parent=31 // pred_check
        %p700 = pneg %p133
      $region34: #{discriminator_forward.7} parent=31 // pred_check_branch
        %702 = sbr.rel (%p700) target = $region36
      $region35: #{discriminator_forward.7} parent=31 // pred_region
        %s703 = smul.u32 8, %s20
      $region36: #{discriminator_forward.7} parent=31 // pred_fallthru
        _
    $region32: #{discriminator_forward.7} parent=5 // pred_fallthru
      _
    %p704 = scmp.le.s32.totalorder 2, %s9
    // Predicated region
    $region37: #{discriminator_forward.7} parent=5 // pred_check
      %p705 = pneg %p704
    $region38: #{discriminator_forward.7} parent=5 // pred_check_branch
      %707 = sbr.rel (%p705) target = $region40
    $region39: #{discriminator_forward.7} parent=5 // pred_region
      %s708 = ssub.s32 %s9, 2
      // Predicated region
      $region41: #{discriminator_forward.7} parent=39 // pred_check
        %p709 = pneg %p139
      $region42: #{discriminator_forward.7} parent=39 // pred_check_branch
        %711 = sbr.rel (%p709) target = $region44
      $region43: #{discriminator_forward.7} parent=39 // pred_region
        %s712 = smul.u32 8, %s23
        %p713 = scmp.lt.s32.totalorder %s22, 1
        %s714 = scalar_select %p713, %s22, 1
        %p715 = scmp.lt.s32.totalorder %s712, 7
        %s716 = scalar_select %p715, %s712, 7
        %p717 = scmp.lt.s32.totalorder %s24, 0
        %s718 = scalar_select %p717, %s24, 0
        %s719 = sadd.s32 %s718, %s716
        %s720 = smul.addr %s714, 8
        %s721 = sadd.s32 %s719, %s720
        %s722 = smul.addr %s721, 8
        %s723 = scalar_lea.vmem %s3, %s722
      $region44: #{discriminator_forward.7} parent=39 // pred_fallthru
        _
    $region40: #{discriminator_forward.7} parent=5 // pred_fallthru
      _
  $region6: #{discriminator_forward.7} parent=0 // loop_footer
    %s13 = sadd.s32 1, %s9
  $region7: #{discriminator_forward.7} parent=0 // loop_footer_branch
    %8 = sbr.rel target = $region3
  $region8: #{discriminator_forward.7} parent=0 // loop_exit
    _

// kernel: discriminator_forward.8
$region0: #{discriminator_forward.8}
  #allocation0 [shape = 'u32[]', space=smem, size = 0x4, offset = 0x4, fixed_abs, tag = 'smem constant byte address 0x4 - core index']
  #allocation1 [shape = 'u32[72,128]{1,0:T(1,128)}', space=vmem, size = 0x9000, scoped, tag = 'internal scratch']
  %s0 = inlined_call_operand.vmem [shape: f32[2,5,4,512], index: 0, kind: input, shape index: {}]
  %s1 = inlined_call_operand.vmem [shape: f32[1024,128], index: 1, kind: input, shape index: {}]
  %s2 = inlined_call_operand.vmem [shape: f32[1,128], index: 2, kind: input, shape index: {}]
  %s3 = inlined_call_operand.vmem [shape: f32[2,4,4,128], index: 3, kind: output, shape index: {}]
  %s4 = sld [smem:[#allocation0]]
  $region45: #{discriminator_forward.8} parent=0
    _
  %s6 = ssub.s32 1, %s4
  %s7 = scalar_select 0, %s6, %s4
  loop: start=0, step=1, limit=4
  $region2: #{discriminator_forward.8} parent=0 // loop_pre_header
    _
  $region3: #{discriminator_forward.8} parent=0 // loop_header
    %s9 = sphi 0, %s13
    %p10 = scmp.ge.s32.totalorder %s9, 4
    %s16 = sphi 0, %s35
    %s17 = sphi 0, %s31
    %s18 = sphi 0, %s27
    %s19 = sphi 0, %s16
    %s20 = sphi 0, %s17
    %s21 = sphi 0, %s18
    %s22 = sphi 0, %s19
    %s23 = sphi 0, %s20
    %s24 = sphi 0, %s21
    %s38 = sphi 0, %s40
    %s41 = sphi 0, %s38
    %s42 = sphi 0, %s41
    %s58 = sphi 0, %s42
    %s64 = sphi 0, %s66
    %s67 = sphi 0, %s64
    %s68 = sphi 0, %s67
    %s84 = sphi 0, %s68
    %s90 = sphi 0, %s92
    %s93 = sphi 0, %s90
    %s94 = sphi 0, %s93
    %s110 = sphi 0, %s94
    %s120 = sphi 0, %s122
    %s123 = sphi 0, %s120
    %s124 = sphi 0, %s123
    %s140 = sphi 0, %s124
  $region4: #{discriminator_forward.8} parent=0 // loop_header_branch
    %12 = sbr.rel (%p10) target = $region8
  $region5: #{discriminator_forward.8} parent=0 // loop_body
    %s14 = ssub.s32 %s9, 1
    %s15 = ssub.s32 %s9, 2
    %s25 = sadd.s32 1, %s18
    %p26 = scmp.ge.s32.totalorder %s25, 1
    %s27 = scalar_select %p26, 0, %s25
    %s28 = sadd.s32 1, %s17
    %s29 = scalar_select %p26, %s28, %s17
    %p30 = scmp.ge.s32.totalorder %s29, 1
    %s31 = scalar_select %p30, 0, %s29
    %s32 = sadd.s32 1, %s16
    %s33 = scalar_select %p30, %s32, %s16
    %p34 = scmp.ge.s32.totalorder %s33, 2
    %s35 = scalar_select %p34, 0, %s33
    %s36 = ssub.s32 %s16, %s35
    %p37 = scmp.eq.s32.totalorder %s36, 0
    %s39 = sadd.s32 %s38, 1
    %s40 = scalar_select %p37, %s38, %s39
    %p43 = pneg %p37
    %p44 = scmp.eq.s32.totalorder %s9, 1
    %p45 = por %p43, %p44
    %p46 = scmp.ne.s32.totalorder %s38, %s41
    %p47 = scmp.eq.s32.totalorder %s9, 0
    %p48 = por %p46, %p47
    %p49 = scmp.ne.s32.totalorder %s38, %s41
    %p50 = scmp.eq.s32.totalorder %s14, 1
    %p51 = por %p49, %p50
    %p52 = scmp.ne.s32.totalorder %s41, %s42
    %p53 = scmp.eq.s32.totalorder %s14, 0
    %p54 = por %p52, %p53
    %p55 = scmp.ne.s32.totalorder %s41, %s42
    %p56 = scmp.eq.s32.totalorder %s15, 1
    %p57 = por %p55, %p56
    %p59 = scmp.ne.s32.totalorder %s42, %s58
    %p60 = scmp.eq.s32.totalorder %s15, 0
    %p61 = por %p59, %p60
    %s62 = ssub.s32 %s18, %s27
    %p63 = scmp.eq.s32.totalorder %s62, 0
    %s65 = sadd.s32 %s64, 1
    %s66 = scalar_select %p63, %s64, %s65
    %p69 = pneg %p63
    %p70 = scmp.eq.s32.totalorder %s9, 1
    %p71 = por %p69, %p70
    %p72 = scmp.ne.s32.totalorder %s64, %s67
    %p73 = scmp.eq.s32.totalorder %s9, 0
    %p74 = por %p72, %p73
    %p75 = scmp.ne.s32.totalorder %s64, %s67
    %p76 = scmp.eq.s32.totalorder %s14, 1
    %p77 = por %p75, %p76
    %p78 = scmp.ne.s32.totalorder %s67, %s68
    %p79 = scmp.eq.s32.totalorder %s14, 0
    %p80 = por %p78, %p79
    %p81 = scmp.ne.s32.totalorder %s67, %s68
    %p82 = scmp.eq.s32.totalorder %s15, 1
    %p83 = por %p81, %p82
    %p85 = scmp.ne.s32.totalorder %s68, %s84
    %p86 = scmp.eq.s32.totalorder %s15, 0
    %p87 = por %p85, %p86
    %s88 = ssub.s32 %s18, %s27
    %p89 = scmp.eq.s32.totalorder %s88, 0
    %s91 = sadd.s32 %s90, 1
    %s92 = scalar_select %p89, %s90, %s91
    %p95 = pneg %p89
    %p96 = scmp.eq.s32.totalorder %s9, 1
    %p97 = por %p95, %p96
    %p98 = scmp.ne.s32.totalorder %s90, %s93
    %p99 = scmp.eq.s32.totalorder %s9, 0
    %p100 = por %p98, %p99
    %p101 = scmp.ne.s32.totalorder %s90, %s93
    %p102 = scmp.eq.s32.totalorder %s14, 1
    %p103 = por %p101, %p102
    %p104 = scmp.ne.s32.totalorder %s93, %s94
    %p105 = scmp.eq.s32.totalorder %s14, 0
    %p106 = por %p104, %p105
    %p107 = scmp.ne.s32.totalorder %s93, %s94
    %p108 = scmp.eq.s32.totalorder %s15, 1
    %p109 = por %p107, %p108
    %p111 = scmp.ne.s32.totalorder %s94, %s110
    %p112 = scmp.eq.s32.totalorder %s15, 0
    %p113 = por %p111, %p112
    %s114 = ssub.s32 %s16, %s35
    %s115 = ssub.s32 %s17, %s31
    %s116 = sor.u32 %s114, %s115
    %s117 = ssub.s32 %s18, %s27
    %s118 = sor.u32 %s116, %s117
    %p119 = scmp.eq.s32.totalorder %s118, 0
    %s121 = sadd.s32 %s120, 1
    %s122 = scalar_select %p119, %s120, %s121
    %p125 = pneg %p119
    %p126 = scmp.eq.s32.totalorder %s9, 1
    %p127 = por %p125, %p126
    %p128 = scmp.ne.s32.totalorder %s120, %s123
    %p129 = scmp.eq.s32.totalorder %s9, 0
    %p130 = por %p128, %p129
    %p131 = scmp.ne.s32.totalorder %s120, %s123
    %p132 = scmp.eq.s32.totalorder %s14, 1
    %p133 = por %p131, %p132
    %p134 = scmp.ne.s32.totalorder %s123, %s124
    %p135 = scmp.eq.s32.totalorder %s14, 0
    %p136 = por %p134, %p135
    %p137 = scmp.ne.s32.totalorder %s123, %s124
    %p138 = scmp.eq.s32.totalorder %s15, 1
    %p139 = por %p137, %p138
    %p141 = scmp.ne.s32.totalorder %s124, %s140
    %p142 = scmp.eq.s32.totalorder %s15, 0
    %p143 = por %p141, %p142
    %p144 = scmp.le.s32.totalorder 1, %s9
    %p145 = scmp.lt.s32.totalorder %s9, 3
    %p146 = pnand %p144, %p145
    %p147 = pneg %p146
    // Predicated region
    $region9: #{discriminator_forward.8} parent=5 // pred_check
      _
    $region10: #{discriminator_forward.8} parent=5 // pred_check_branch
      %149 = sbr.rel (%p146) target = $region12
    $region11: #{discriminator_forward.8} parent=5 // pred_region
      %s150 = ssub.s32 %s9, 1
      // Predicated region
      $region13: #{discriminator_forward.8} parent=11 // pred_check
        %p151 = pneg %p80
      $region14: #{discriminator_forward.8} parent=11 // pred_check_branch
        %153 = sbr.rel (%p151) target = $region16
      $region15: #{discriminator_forward.8} parent=11 // pred_region
        %p154 = scmp.lt.s32.totalorder %s21, 0
        %s155 = scalar_select %p154, %s21, 0
        %s156 = smul.addr %s155, 8
        %s157 = scalar_lea.vmem %s1, %s156
      $region16: #{discriminator_forward.8} parent=11 // pred_fallthru
        _
      // Predicated region
      $region17: #{discriminator_forward.8} parent=11 // pred_check
        %p158 = pneg %p106
      $region18: #{discriminator_forward.8} parent=11 // pred_check_branch
        %160 = sbr.rel (%p158) target = $region20
      $region19: #{discriminator_forward.8} parent=11 // pred_region
        %p161 = scmp.lt.s32.totalorder %s21, 0
        %s162 = scalar_select %p161, %s21, 0
        %s163 = scalar_lea.vmem %s2, %s162
      $region20: #{discriminator_forward.8} parent=11 // pred_fallthru
        _
    $region12: #{discriminator_forward.8} parent=5 // pred_fallthru
      _
    %p164 = scmp.lt.s32.totalorder %s9, 2
    // Predicated region
    $region21: #{discriminator_forward.8} parent=5 // pred_check
      %p165 = pneg %p164
    $region22: #{discriminator_forward.8} parent=5 // pred_check_branch
      %167 = sbr.rel (%p165) target = $region24
    $region23: #{discriminator_forward.8} parent=5 // pred_region
      // Predicated region
      $region25: #{discriminator_forward.8} parent=23 // pred_check
        %p168 = pneg %p48
      $region26: #{discriminator_forward.8} parent=23 // pred_check_branch
        %170 = sbr.rel (%p168) target = $region28
      $region27: #{discriminator_forward.8} parent=23 // pred_region
        %p171 = scmp.lt.s32.totalorder %s16, 1
        %s172 = scalar_select %p171, %s16, 1
        %s173 = smul.addr %s172, 20
        %s174 = smul.addr %s173, 4
        %s175 = scalar_lea.vmem %s0, %s174
      $region28: #{discriminator_forward.8} parent=23 // pred_fallthru
        _
    $region24: #{discriminator_forward.8} parent=5 // pred_fallthru
      _
    %p176 = scmp.le.s32.totalorder 1, %s9
    %p177 = scmp.lt.s32.totalorder %s9, 3
    %p178 = pnand %p176, %p177
    %p179 = pneg %p178
    // Predicated region
    $region29: #{discriminator_forward.8} parent=5 // pred_check
      _
    $region30: #{discriminator_forward.8} parent=5 // pred_check_branch
      %181 = sbr.rel (%p178) target = $region32
    $region31: #{discriminator_forward.8} parent=5 // pred_region
      %s182 = ssub.s32 %s9, 1
      %p183 = scmp.lt.s32.totalorder %s19, 1
      %s184 = scalar_select %p183, %s19, 1
      %s185 = smul.addr %s184, 20
      %s186 = smul.addr %s185, 4
      %s187 = scalar_lea.vmem %s0, %s186
      %p188 = pneg %p54
      %p189 = pneg %p51
      %p190 = scmp.lt.s32.totalorder %s21, 0
      %s191 = scalar_select %p190, %s21, 0
      %s192 = smul.addr %s191, 8
      %s193 = scalar_lea.vmem %s1, %s192
      %p194 = pneg %p80
      %p195 = pneg %p77
      %p196 = scmp.lt.s32.totalorder %s21, 0
      %s197 = scalar_select %p196, %s21, 0
      %s198 = scalar_lea.vmem %s2, %s197
      %p199 = pneg %p106
      %p200 = pneg %p103
      %p201 = pneg %p136
      %p202 = pneg %p133
      %s203 = smul.u32 4, %s20
      %p204 = scmp.lt.s32.totalorder %s19, 1
      %s205 = scalar_select %p204, %s19, 1
      %p206 = scmp.lt.s32.totalorder %s203, 3
      %s207 = scalar_select %p206, %s203, 3
      %p208 = scmp.lt.s32.totalorder %s21, 0
      %s209 = scalar_select %p208, %s21, 0
      %s210 = sadd.s32 %s209, %s207
      %s211 = smul.addr %s205, 4
      %s212 = sadd.s32 %s210, %s211
      %s213 = smul.addr %s212, 4
      %s214 = scalar_lea.vmem %s3, %s213
      %p215 = scmp.lt.s32.totalorder %s19, 1
      %s216 = scalar_select %p215, %s19, 1
      %s217 = smul.addr %s216, 20
      %s218 = smul.addr %s217, 4
      %s219 = scalar_lea.vmem %s0, %s218
      %p220 = scmp.lt.s32.totalorder %s21, 0
      %s221 = scalar_select %p220, %s21, 0
      %s222 = smul.addr %s221, 8
      %s223 = scalar_lea.vmem %s1, %s222
      %p224 = scmp.lt.s32.totalorder %s21, 0
      %s225 = scalar_select %p224, %s21, 0
      %s226 = scalar_lea.vmem %s2, %s225
      %s227 = smul.u32 4, %s20
      %p228 = scmp.lt.s32.totalorder %s19, 1
      %s229 = scalar_select %p228, %s19, 1
      %p230 = scmp.lt.s32.totalorder %s227, 3
      %s231 = scalar_select %p230, %s227, 3
      %p232 = scmp.lt.s32.totalorder %s21, 0
      %s233 = scalar_select %p232, %s21, 0
      %s234 = sadd.s32 %s233, %s231
      %s235 = smul.addr %s229, 4
      %s236 = sadd.s32 %s234, %s235
      %s237 = smul.addr %s236, 4
      %s238 = scalar_lea.vmem %s3, %s237
      %s239 = smul.u32 4, %s20
      %s240 = smul.u32 %s20, 4
      %s241 = smul.u32 %s240, 4
      %s242 = smul.addr %s241, 4
      %s243 = scalar_lea.vmem %s219, %s242
      %v244 = vld [vmem:[%s243] sm:$0xff]
      %v245 = vld [vmem:[%s243 + $0x8] sm:$0xff]
      %v246 = vld [vmem:[%s243 + $0x10] sm:$0xff]
      %v247 = vld [vmem:[%s243 + $0x18] sm:$0xff]
      %v248 = vld [vmem:[%s243 + $0x20] sm:$0xff]
      %v249 = vld [vmem:[%s243 + $0x28] sm:$0xff]
      %v250 = vld [vmem:[%s243 + $0x30] sm:$0xff]
      %v251 = vld [vmem:[%s243 + $0x38] sm:$0xff]
      %s252 = sadd.s32 %s240, 1
      %s253 = smul.u32 %s252, 4
      %s254 = smul.addr %s253, 4
      %s255 = scalar_lea.vmem %s219, %s254
      %v256 = vld [vmem:[%s255] sm:$0xff]
      %v257 = vld [vmem:[%s255 + $0x8] sm:$0xff]
      %v258 = vld [vmem:[%s255 + $0x10] sm:$0xff]
      %v259 = vld [vmem:[%s255 + $0x18] sm:$0xff]
      %v260 = vld [vmem:[%s255 + $0x20] sm:$0xff]
      %v261 = vld [vmem:[%s255 + $0x28] sm:$0xff]
      %v262 = vld [vmem:[%s255 + $0x30] sm:$0xff]
      %v263 = vld [vmem:[%s255 + $0x38] sm:$0xff]
      %272 = vst [vmem:[#allocation1] ss:$2 sm:$0xff] %v244
      %s273 = scalar_lea.vmem [#allocation1], 1
      %274 = vst [vmem:[%s273] ss:$2 sm:$0xff] %v246
      %s275 = scalar_lea.vmem [#allocation1], 16
      %276 = vst [vmem:[%s275] ss:$2 sm:$0xff] %v245
      %s277 = scalar_lea.vmem [#allocation1], 17
      %278 = vst [vmem:[%s277] ss:$2 sm:$0xff] %v247
      %s279 = scalar_lea.vmem [#allocation1], 32
      %280 = vst [vmem:[%s279] ss:$2 sm:$0xff] %v248
      %s281 = scalar_lea.vmem [#allocation1], 33
      %282 = vst [vmem:[%s281] ss:$2 sm:$0xff] %v250
      %s283 = scalar_lea.vmem [#allocation1], 48
      %284 = vst [vmem:[%s283] ss:$2 sm:$0xff] %v249
      %s285 = scalar_lea.vmem [#allocation1], 49
      %286 = vst [vmem:[%s285] ss:$2 sm:$0xff] %v251
      %v287 = vld.sshfl [vmem:[#allocation1] sm:$0xff pattern:$0x75316420]
      %v288 = vld.sshfl [vmem:[#allocation1 + $0x8] sm:$0xff pattern:$0x75316420]
      %v289 = vld.sshfl [vmem:[#allocation1 + $0x10] sm:$0xff pattern:$0x75316420]
      %v290 = vld.sshfl [vmem:[#allocation1 + $0x18] sm:$0xff pattern:$0x75316420]
      %v291 = vld.sshfl [vmem:[#allocation1 + $0x20] sm:$0xff pattern:$0x75316420]
      %v292 = vld.sshfl [vmem:[#allocation1 + $0x28] sm:$0xff pattern:$0x75316420]
      %v293 = vld.sshfl [vmem:[#allocation1 + $0x30] sm:$0xff pattern:$0x75316420]
      %v294 = vld.sshfl [vmem:[#allocation1 + $0x38] sm:$0xff pattern:$0x75316420]
      %311 = vst [vmem:[#allocation1] ss:$2 sm:$0xff] %v256
      %s312 = scalar_lea.vmem [#allocation1], 1
      %313 = vst [vmem:[%s312] ss:$2 sm:$0xff] %v258
      %s314 = scalar_lea.vmem [#allocation1], 16
      %315 = vst [vmem:[%s314] ss:$2 sm:$0xff] %v257
      %s316 = scalar_lea.vmem [#allocation1], 17
      %317 = vst [vmem:[%s316] ss:$2 sm:$0xff] %v259
      %s318 = scalar_lea.vmem [#allocation1], 32
      %319 = vst [vmem:[%s318] ss:$2 sm:$0xff] %v260
      %s320 = scalar_lea.vmem [#allocation1], 33
      %321 = vst [vmem:[%s320] ss:$2 sm:$0xff] %v262
      %s322 = scalar_lea.vmem [#allocation1], 48
      %323 = vst [vmem:[%s322] ss:$2 sm:$0xff] %v261
      %s324 = scalar_lea.vmem [#allocation1], 49
      %325 = vst [vmem:[%s324] ss:$2 sm:$0xff] %v263
      %v326 = vld.sshfl [vmem:[#allocation1] sm:$0xff pattern:$0x75316420]
      %v327 = vld.sshfl [vmem:[#allocation1 + $0x8] sm:$0xff pattern:$0x75316420]
      %v328 = vld.sshfl [vmem:[#allocation1 + $0x10] sm:$0xff pattern:$0x75316420]
      %v329 = vld.sshfl [vmem:[#allocation1 + $0x18] sm:$0xff pattern:$0x75316420]
      %v330 = vld.sshfl [vmem:[#allocation1 + $0x20] sm:$0xff pattern:$0x75316420]
      %v331 = vld.sshfl [vmem:[#allocation1 + $0x28] sm:$0xff pattern:$0x75316420]
      %v332 = vld.sshfl [vmem:[#allocation1 + $0x30] sm:$0xff pattern:$0x75316420]
      %v333 = vld.sshfl [vmem:[#allocation1 + $0x38] sm:$0xff pattern:$0x75316420]
      %v342 = vld [vmem:[%s223] sm:$0xff]
      %v343 = vld [vmem:[%s223 + $0x8] sm:$0xff]
      %v344 = vld [vmem:[%s223 + $0x10] sm:$0xff]
      %v345 = vld [vmem:[%s223 + $0x18] sm:$0xff]
      %v346 = vld [vmem:[%s223 + $0x20] sm:$0xff]
      %v347 = vld [vmem:[%s223 + $0x28] sm:$0xff]
      %v348 = vld [vmem:[%s223 + $0x30] sm:$0xff]
      %v349 = vld [vmem:[%s223 + $0x38] sm:$0xff]
      %v350 = vld [vmem:[%s223 + $0x40] sm:$0xff]
      %v351 = vld [vmem:[%s223 + $0x48] sm:$0xff]
      %v352 = vld [vmem:[%s223 + $0x50] sm:$0xff]
      %v353 = vld [vmem:[%s223 + $0x58] sm:$0xff]
      %v354 = vld [vmem:[%s223 + $0x60] sm:$0xff]
      %v355 = vld [vmem:[%s223 + $0x68] sm:$0xff]
      %v356 = vld [vmem:[%s223 + $0x70] sm:$0xff]
      %v357 = vld [vmem:[%s223 + $0x78] sm:$0xff]
      %v358 = vld [vmem:[%s223 + $0x80] sm:$0xff]
      %v359 = vld [vmem:[%s223 + $0x88] sm:$0xff]
      %v360 = vld [vmem:[%s223 + $0x90] sm:$0xff]
      %v361 = vld [vmem:[%s223 + $0x98] sm:$0xff]
      %v362 = vld [vmem:[%s223 + $0xa0] sm:$0xff]
      %v363 = vld [vmem:[%s223 + $0xa8] sm:$0xff]
      %v364 = vld [vmem:[%s223 + $0xb0] sm:$0xff]
      %v365 = vld [vmem:[%s223 + $0xb8] sm:$0xff]
      %v366 = vld [vmem:[%s223 + $0xc0] sm:$0xff]
      %v367 = vld [vmem:[%s223 + $0xc8] sm:$0xff]
      %v368 = vld [vmem:[%s223 + $0xd0] sm:$0xff]
      %v369 = vld [vmem:[%s223 + $0xd8] sm:$0xff]
      %v370 = vld [vmem:[%s223 + $0xe0] sm:$0xff]
      %v371 = vld [vmem:[%s223 + $0xe8] sm:$0xff]
      %v372 = vld [vmem:[%s223 + $0xf0] sm:$0xff]
      %v373 = vld [vmem:[%s223 + $0xf8] sm:$0xff]
      %v374 = vld [vmem:[%s223 + $0x100] sm:$0xff]
      %v375 = vld [vmem:[%s223 + $0x108] sm:$0xff]
      %v376 = vld [vmem:[%s223 + $0x110] sm:$0xff]
      %v377 = vld [vmem:[%s223 + $0x118] sm:$0xff]
      %v378 = vld [vmem:[%s223 + $0x120] sm:$0xff]
      %v379 = vld [vmem:[%s223 + $0x128] sm:$0xff]
      %v380 = vld [vmem:[%s223 + $0x130] sm:$0xff]
      %v381 = vld [vmem:[%s223 + $0x138] sm:$0xff]
      %v382 = vld [vmem:[%s223 + $0x140] sm:$0xff]
      %v383 = vld [vmem:[%s223 + $0x148] sm:$0xff]
      %v384 = vld [vmem:[%s223 + $0x150] sm:$0xff]
      %v385 = vld [vmem:[%s223 + $0x158] sm:$0xff]
      %v386 = vld [vmem:[%s223 + $0x160] sm:$0xff]
      %v387 = vld [vmem:[%s223 + $0x168] sm:$0xff]
      %v388 = vld [vmem:[%s223 + $0x170] sm:$0xff]
      %v389 = vld [vmem:[%s223 + $0x178] sm:$0xff]
      %v390 = vld [vmem:[%s223 + $0x180] sm:$0xff]
      %v391 = vld [vmem:[%s223 + $0x188] sm:$0xff]
      %v392 = vld [vmem:[%s223 + $0x190] sm:$0xff]
      %v393 = vld [vmem:[%s223 + $0x198] sm:$0xff]
      %v394 = vld [vmem:[%s223 + $0x1a0] sm:$0xff]
      %v395 = vld [vmem:[%s223 + $0x1a8] sm:$0xff]
      %v396 = vld [vmem:[%s223 + $0x1b0] sm:$0xff]
      %v397 = vld [vmem:[%s223 + $0x1b8] sm:$0xff]
      %v398 = vld [vmem:[%s223 + $0x1c0] sm:$0xff]
      %v399 = vld [vmem:[%s223 + $0x1c8] sm:$0xff]
      %v400 = vld [vmem:[%s223 + $0x1d0] sm:$0xff]
      %v401 = vld [vmem:[%s223 + $0x1d8] sm:$0xff]
      %v402 = vld [vmem:[%s223 + $0x1e0] sm:$0xff]
      %v403 = vld [vmem:[%s223 + $0x1e8] sm:$0xff]
      %v404 = vld [vmem:[%s223 + $0x1f0] sm:$0xff]
      %v405 = vld [vmem:[%s223 + $0x1f8] sm:$0xff]
      %v406 = vld [vmem:[%s223 + $0x200] sm:$0xff]
      %v407 = vld [vmem:[%s223 + $0x208] sm:$0xff]
      %v408 = vld [vmem:[%s223 + $0x210] sm:$0xff]
      %v409 = vld [vmem:[%s223 + $0x218] sm:$0xff]
      %v410 = vld [vmem:[%s223 + $0x220] sm:$0xff]
      %v411 = vld [vmem:[%s223 + $0x228] sm:$0xff]
      %v412 = vld [vmem:[%s223 + $0x230] sm:$0xff]
      %v413 = vld [vmem:[%s223 + $0x238] sm:$0xff]
      %v414 = vld [vmem:[%s223 + $0x240] sm:$0xff]
      %v415 = vld [vmem:[%s223 + $0x248] sm:$0xff]
      %v416 = vld [vmem:[%s223 + $0x250] sm:$0xff]
      %v417 = vld [vmem:[%s223 + $0x258] sm:$0xff]
      %v418 = vld [vmem:[%s223 + $0x260] sm:$0xff]
      %v419 = vld [vmem:[%s223 + $0x268] sm:$0xff]
      %v420 = vld [vmem:[%s223 + $0x270] sm:$0xff]
      %v421 = vld [vmem:[%s223 + $0x278] sm:$0xff]
      %v422 = vld [vmem:[%s223 + $0x280] sm:$0xff]
      %v423 = vld [vmem:[%s223 + $0x288] sm:$0xff]
      %v424 = vld [vmem:[%s223 + $0x290] sm:$0xff]
      %v425 = vld [vmem:[%s223 + $0x298] sm:$0xff]
      %v426 = vld [vmem:[%s223 + $0x2a0] sm:$0xff]
      %v427 = vld [vmem:[%s223 + $0x2a8] sm:$0xff]
      %v428 = vld [vmem:[%s223 + $0x2b0] sm:$0xff]
      %v429 = vld [vmem:[%s223 + $0x2b8] sm:$0xff]
      %v430 = vld [vmem:[%s223 + $0x2c0] sm:$0xff]
      %v431 = vld [vmem:[%s223 + $0x2c8] sm:$0xff]
      %v432 = vld [vmem:[%s223 + $0x2d0] sm:$0xff]
      %v433 = vld [vmem:[%s223 + $0x2d8] sm:$0xff]
      %v434 = vld [vmem:[%s223 + $0x2e0] sm:$0xff]
      %v435 = vld [vmem:[%s223 + $0x2e8] sm:$0xff]
      %v436 = vld [vmem:[%s223 + $0x2f0] sm:$0xff]
      %v437 = vld [vmem:[%s223 + $0x2f8] sm:$0xff]
      %v438 = vld [vmem:[%s223 + $0x300] sm:$0xff]
      %v439 = vld [vmem:[%s223 + $0x308] sm:$0xff]
      %v440 = vld [vmem:[%s223 + $0x310] sm:$0xff]
      %v441 = vld [vmem:[%s223 + $0x318] sm:$0xff]
      %v442 = vld [vmem:[%s223 + $0x320] sm:$0xff]
      %v443 = vld [vmem:[%s223 + $0x328] sm:$0xff]
      %v444 = vld [vmem:[%s223 + $0x330] sm:$0xff]
      %v445 = vld [vmem:[%s223 + $0x338] sm:$0xff]
      %v446 = vld [vmem:[%s223 + $0x340] sm:$0xff]
      %v447 = vld [vmem:[%s223 + $0x348] sm:$0xff]
      %v448 = vld [vmem:[%s223 + $0x350] sm:$0xff]
      %v449 = vld [vmem:[%s223 + $0x358] sm:$0xff]
      %v450 = vld [vmem:[%s223 + $0x360] sm:$0xff]
      %v451 = vld [vmem:[%s223 + $0x368] sm:$0xff]
      %v452 = vld [vmem:[%s223 + $0x370] sm:$0xff]
      %v453 = vld [vmem:[%s223 + $0x378] sm:$0xff]
      %v454 = vld [vmem:[%s223 + $0x380] sm:$0xff]
      %v455 = vld [vmem:[%s223 + $0x388] sm:$0xff]
      %v456 = vld [vmem:[%s223 + $0x390] sm:$0xff]
      %v457 = vld [vmem:[%s223 + $0x398] sm:$0xff]
      %v458 = vld [vmem:[%s223 + $0x3a0] sm:$0xff]
      %v459 = vld [vmem:[%s223 + $0x3a8] sm:$0xff]
      %v460 = vld [vmem:[%s223 + $0x3b0] sm:$0xff]
      %v461 = vld [vmem:[%s223 + $0x3b8] sm:$0xff]
      %v462 = vld [vmem:[%s223 + $0x3c0] sm:$0xff]
      %v463 = vld [vmem:[%s223 + $0x3c8] sm:$0xff]
      %v464 = vld [vmem:[%s223 + $0x3d0] sm:$0xff]
      %v465 = vld [vmem:[%s223 + $0x3d8] sm:$0xff]
      %v466 = vld [vmem:[%s223 + $0x3e0] sm:$0xff]
      %v467 = vld [vmem:[%s223 + $0x3e8] sm:$0xff]
      %v468 = vld [vmem:[%s223 + $0x3f0] sm:$0xff]
      %v469 = vld [vmem:[%s223 + $0x3f8] sm:$0xff]
      %v470 = vld [vmem:[%s226] sm:$0x1]
      %v472 = vperm.slane %v470, 0
      %474 = vmatpush.msra.mxu0 %v357
      %475 = vmatpush.msra.mxu0 %v356
      %476 = vmatpush.msra.mxu0 %v355
      %477 = vmatpush.msra.mxu0 %v354
      %478 = vmatpush.msra.mxu0 %v353
      %479 = vmatpush.msra.mxu0 %v352
      %480 = vmatpush.msra.mxu0 %v351
      %481 = vmatpush.msra.mxu0 %v350
      %482 = vmatpush.msra.mxu0 %v349
      %483 = vmatpush.msra.mxu0 %v348
      %484 = vmatpush.msra.mxu0 %v347
      %485 = vmatpush.msra.mxu0 %v346
      %486 = vmatpush.msra.mxu0 %v345
      %487 = vmatpush.msra.mxu0 %v344
      %488 = vmatpush.msra.mxu0 %v343
      %489 = vmatpush.msra.mxu0 %v342
      %490 = vmatmul.f32.gmra.mxu0 %v287
      %v491 = vpop.f32.mrf.mxu0
      %v492 = vadd.f32 %v472, %v491
      %493 = vmatmul.f32.gmra.mxu0 %v291
      %v494 = vpop.f32.mrf.mxu0
      %v495 = vadd.f32 %v472, %v494
      %496 = vdwg.mxu0
      %497 = vmatpush.msra.mxu0 %v373
      %498 = vmatpush.msra.mxu0 %v372
      %499 = vmatpush.msra.mxu0 %v371
      %500 = vmatpush.msra.mxu0 %v370
      %501 = vmatpush.msra.mxu0 %v369
      %502 = vmatpush.msra.mxu0 %v368
      %503 = vmatpush.msra.mxu0 %v367
      %504 = vmatpush.msra.mxu0 %v366
      %505 = vmatpush.msra.mxu0 %v365
      %506 = vmatpush.msra.mxu0 %v364
      %507 = vmatpush.msra.mxu0 %v363
      %508 = vmatpush.msra.mxu0 %v362
      %509 = vmatpush.msra.mxu0 %v361
      %510 = vmatpush.msra.mxu0 %v360
      %511 = vmatpush.msra.mxu0 %v359
      %512 = vmatpush.msra.mxu0 %v358
      %513 = vmatmul.f32.gmra.mxu0 %v288
      %v514 = vpop.f32.mrf.mxu0
      %v515 = vadd.f32 %v492, %v514
      %516 = vmatmul.f32.gmra.mxu0 %v292
      %v517 = vpop.f32.mrf.mxu0
      %v518 = vadd.f32 %v495, %v517
      %519 = vdwg.mxu0
      %520 = vmatpush.msra.mxu0 %v389
      %521 = vmatpush.msra.mxu0 %v388
      %522 = vmatpush.msra.mxu0 %v387
      %523 = vmatpush.msra.mxu0 %v386
      %524 = vmatpush.msra.mxu0 %v385
      %525 = vmatpush.msra.mxu0 %v384
      %526 = vmatpush.msra.mxu0 %v383
      %527 = vmatpush.msra.mxu0 %v382
      %528 = vmatpush.msra.mxu0 %v381
      %529 = vmatpush.msra.mxu0 %v380
      %530 = vmatpush.msra.mxu0 %v379
      %531 = vmatpush.msra.mxu0 %v378
      %532 = vmatpush.msra.mxu0 %v377
      %533 = vmatpush.msra.mxu0 %v376
      %534 = vmatpush.msra.mxu0 %v375
      %535 = vmatpush.msra.mxu0 %v374
      %536 = vmatmul.f32.gmra.mxu0 %v289
      %v537 = vpop.f32.mrf.mxu0
      %v538 = vadd.f32 %v515, %v537
      %539 = vmatmul.f32.gmra.mxu0 %v293
      %v540 = vpop.f32.mrf.mxu0
      %v541 = vadd.f32 %v518, %v540
      %542 = vdwg.mxu0
      %543 = vmatpush.msra.mxu0 %v405
      %544 = vmatpush.msra.mxu0 %v404
      %545 = vmatpush.msra.mxu0 %v403
      %546 = vmatpush.msra.mxu0 %v402
      %547 = vmatpush.msra.mxu0 %v401
      %548 = vmatpush.msra.mxu0 %v400
      %549 = vmatpush.msra.mxu0 %v399
      %550 = vmatpush.msra.mxu0 %v398
      %551 = vmatpush.msra.mxu0 %v397
      %552 = vmatpush.msra.mxu0 %v396
      %553 = vmatpush.msra.mxu0 %v395
      %554 = vmatpush.msra.mxu0 %v394
      %555 = vmatpush.msra.mxu0 %v393
      %556 = vmatpush.msra.mxu0 %v392
      %557 = vmatpush.msra.mxu0 %v391
      %558 = vmatpush.msra.mxu0 %v390
      %559 = vmatmul.f32.gmra.mxu0 %v290
      %v560 = vpop.f32.mrf.mxu0
      %v561 = vadd.f32 %v538, %v560
      %562 = vmatmul.f32.gmra.mxu0 %v294
      %v563 = vpop.f32.mrf.mxu0
      %v564 = vadd.f32 %v541, %v563
      %565 = vdwg.mxu0
      %566 = vmatpush.msra.mxu0 %v421
      %567 = vmatpush.msra.mxu0 %v420
      %568 = vmatpush.msra.mxu0 %v419
      %569 = vmatpush.msra.mxu0 %v418
      %570 = vmatpush.msra.mxu0 %v417
      %571 = vmatpush.msra.mxu0 %v416
      %572 = vmatpush.msra.mxu0 %v415
      %573 = vmatpush.msra.mxu0 %v414
      %574 = vmatpush.msra.mxu0 %v413
      %575 = vmatpush.msra.mxu0 %v412
      %576 = vmatpush.msra.mxu0 %v411
      %577 = vmatpush.msra.mxu0 %v410
      %578 = vmatpush.msra.mxu0 %v409
      %579 = vmatpush.msra.mxu0 %v408
      %580 = vmatpush.msra.mxu0 %v407
      %581 = vmatpush.msra.mxu0 %v406
      %582 = vmatmul.f32.gmra.mxu0 %v326
      %v583 = vpop.f32.mrf.mxu0
      %v584 = vadd.f32 %v561, %v583
      %585 = vmatmul.f32.gmra.mxu0 %v330
      %v586 = vpop.f32.mrf.mxu0
      %v587 = vadd.f32 %v564, %v586
      %588 = vdwg.mxu0
      %589 = vmatpush.msra.mxu0 %v437
      %590 = vmatpush.msra.mxu0 %v436
      %591 = vmatpush.msra.mxu0 %v435
      %592 = vmatpush.msra.mxu0 %v434
      %593 = vmatpush.msra.mxu0 %v433
      %594 = vmatpush.msra.mxu0 %v432
      %595 = vmatpush.msra.mxu0 %v431
      %596 = vmatpush.msra.mxu0 %v430
      %597 = vmatpush.msra.mxu0 %v429
      %598 = vmatpush.msra.mxu0 %v428
      %599 = vmatpush.msra.mxu0 %v427
      %600 = vmatpush.msra.mxu0 %v426
      %601 = vmatpush.msra.mxu0 %v425
      %602 = vmatpush.msra.mxu0 %v424
      %603 = vmatpush.msra.mxu0 %v423
      %604 = vmatpush.msra.mxu0 %v422
      %605 = vmatmul.f32.gmra.mxu0 %v327
      %v606 = vpop.f32.mrf.mxu0
      %v607 = vadd.f32 %v584, %v606
      %608 = vmatmul.f32.gmra.mxu0 %v331
      %v609 = vpop.f32.mrf.mxu0
      %v610 = vadd.f32 %v587, %v609
      %611 = vdwg.mxu0
      %612 = vmatpush.msra.mxu0 %v453
      %613 = vmatpush.msra.mxu0 %v452
      %614 = vmatpush.msra.mxu0 %v451
      %615 = vmatpush.msra.mxu0 %v450
      %616 = vmatpush.msra.mxu0 %v449
      %617 = vmatpush.msra.mxu0 %v448
      %618 = vmatpush.msra.mxu0 %v447
      %619 = vmatpush.msra.mxu0 %v446
      %620 = vmatpush.msra.mxu0 %v445
      %621 = vmatpush.msra.mxu0 %v444
      %622 = vmatpush.msra.mxu0 %v443
      %623 = vmatpush.msra.mxu0 %v442
      %624 = vmatpush.msra.mxu0 %v441
      %625 = vmatpush.msra.mxu0 %v440
      %626 = vmatpush.msra.mxu0 %v439
      %627 = vmatpush.msra.mxu0 %v438
      %628 = vmatmul.f32.gmra.mxu0 %v328
      %v629 = vpop.f32.mrf.mxu0
      %v630 = vadd.f32 %v607, %v629
      %631 = vmatmul.f32.gmra.mxu0 %v332
      %v632 = vpop.f32.mrf.mxu0
      %v633 = vadd.f32 %v610, %v632
      %634 = vdwg.mxu0
      %635 = vmatpush.msra.mxu0 %v469
      %636 = vmatpush.msra.mxu0 %v468
      %637 = vmatpush.msra.mxu0 %v467
      %638 = vmatpush.msra.mxu0 %v466
      %639 = vmatpush.msra.mxu0 %v465
      %640 = vmatpush.msra.mxu0 %v464
      %641 = vmatpush.msra.mxu0 %v463
      %642 = vmatpush.msra.mxu0 %v462
      %643 = vmatpush.msra.mxu0 %v461
      %644 = vmatpush.msra.mxu0 %v460
      %645 = vmatpush.msra.mxu0 %v459
      %646 = vmatpush.msra.mxu0 %v458
      %647 = vmatpush.msra.mxu0 %v457
      %648 = vmatpush.msra.mxu0 %v456
      %649 = vmatpush.msra.mxu0 %v455
      %650 = vmatpush.msra.mxu0 %v454
      %651 = vmatmul.f32.gmra.mxu0 %v329
      %v652 = vpop.f32.mrf.mxu0
      %v653 = vadd.f32 %v630, %v652
      %654 = vmatmul.f32.gmra.mxu0 %v333
      %v655 = vpop.f32.mrf.mxu0
      %v656 = vadd.f32 %v633, %v655
      %657 = vdwg.mxu0
      %v658 = vrot.slane %v653, 4
      %v659 = vadd.f32 %v653, %v658
      %v660 = vrot.slane %v659, 2
      %v661 = vadd.f32 %v659, %v660
      %v662 = vrot.slane %v661, 1
      %v663 = vadd.f32 %v661, %v662
      %v664 = vadd.f32 %v663, 0.0
      %v665 = vmul.f32 %v653, %v653
      %v666 = vrot.slane %v665, 4
      %v667 = vadd.f32 %v665, %v666
      %v668 = vrot.slane %v667, 2
      %v669 = vadd.f32 %v667, %v668
      %v670 = vrot.slane %v669, 1
      %v671 = vadd.f32 %v669, %v670
      %v672 = vadd.f32 %v671, 0.0
      %v673 = vrot.slane %v656, 4
      %v674 = vadd.f32 %v656, %v673
      %v675 = vrot.slane %v674, 2
      %v676 = vadd.f32 %v674, %v675
      %v677 = vrot.slane %v676, 1
      %v678 = vadd.f32 %v676, %v677
      %v679 = vadd.f32 %v664, %v678
      %v680 = vmul.f32 %v656, %v656
      %v681 = vrot.slane %v680, 4
      %v682 = vadd.f32 %v680, %v681
      %v683 = vrot.slane %v682, 2
      %v684 = vadd.f32 %v682, %v683
      %v685 = vrot.slane %v684, 1
      %v686 = vadd.f32 %v684, %v685
      %v687 = vadd.f32 %v672, %v686
      %v688 = vmul.f32 %v679, 0.0625
      %v689 = vmul.f32 %v687, 0.0625
      %v690 = vmul.f32 %v688, %v688
      %v691 = vsub.f32 %v689, %v690
      %v692 = vmax.f32 %v691, 0.0
      %v693 = vsub.f32 %v653, %v688
      %v694 = vsub.f32 %v656, %v688
      %v695 = vadd.f32 %v692, 1e-05
      %v696 = vrsqrt.pop %v695
      %v697 = vmul.f32 %v696, %v695
      %v698 = vmul.f32 %v697, %v696
      %v699 = vmul.f32 0.5, %v698
      %v700 = vsub.f32 1.5, %v699
      %v701 = vmul.f32 %v696, %v700
      %vm702 = vweird.f32 %v695
      %vm703 = vweird.f32 %v696
      %vm704 = vmor %vm702, %vm703
      %v705 = vsel %vm704, %v696, %v701
      %v706 = vmul.f32 %v693, %v705
      %v707 = vmul.f32 %v694, %v705
      %v708 = vmul.f32 %v706, 0.2
      %v709 = vmul.f32 %v707, 0.2
      %v710 = vmax.f32 %v706, %v708
      %v711 = vmax.f32 %v707, %v709
      %v714 = vrot.slane %v710, 4
      %v715 = vrot.slane %v711, 4
      %718 = vst [vmem:[%s238] sm:$0xf] %v710
      %719 = vst [vmem:[%s238 + $0x4] sm:$0xf] %v714
      %720 = vst [vmem:[%s238 + $0x8] sm:$0xf] %v711
      %721 = vst [vmem:[%s238 + $0xc] sm:$0xf] %v715
      %s722 = smul.u32 4, %s20
      %p723 = scmp.lt.s32.totalorder %s19, 1
      %s724 = scalar_select %p723, %s19, 1
      %p725 = scmp.lt.s32.totalorder %s722, 3
      %s726 = scalar_select %p725, %s722, 3
      %p727 = scmp.lt.s32.totalorder %s21, 0
      %s728 = scalar_select %p727, %s21, 0
      %s729 = sadd.s32 %s728, %s726
      %s730 = smul.addr %s724, 4
      %s731 = sadd.s32 %s729, %s730
      %s732 = smul.addr %s731, 4
      %s733 = scalar_lea.vmem %s3, %s732
      // Predicated region
      $region33: #{discriminator_forward.8} parent=31 // pred_check
        %p734 = pneg %p133
      $region34: #{discriminator_forward.8} parent=31 // pred_check_branch
        %736 = sbr.rel (%p734) target = $region36
      $region35: #{discriminator_forward.8} parent=31 // pred_region
        %s737 = smul.u32 4, %s20
      $region36: #{discriminator_forward.8} parent=31 // pred_fallthru
        _
    $region32: #{discriminator_forward.8} parent=5 // pred_fallthru
      _
    %p738 = scmp.le.s32.totalorder 2, %s9
    // Predicated region
    $region37: #{discriminator_forward.8} parent=5 // pred_check
      %p739 = pneg %p738
    $region38: #{discriminator_forward.8} parent=5 // pred_check_branch
      %741 = sbr.rel (%p739) target = $region40
    $region39: #{discriminator_forward.8} parent=5 // pred_region
      %s742 = ssub.s32 %s9, 2
      // Predicated region
      $region41: #{discriminator_forward.8} parent=39 // pred_check
        %p743 = pneg %p139
      $region42: #{discriminator_forward.8} parent=39 // pred_check_branch
        %745 = sbr.rel (%p743) target = $region44
      $region43: #{discriminator_forward.8} parent=39 // pred_region
        %s746 = smul.u32 4, %s23
        %p747 = scmp.lt.s32.totalorder %s22, 1
        %s748 = scalar_select %p747, %s22, 1
        %p749 = scmp.lt.s32.totalorder %s746, 3
        %s750 = scalar_select %p749, %s746, 3
        %p751 = scmp.lt.s32.totalorder %s24, 0
        %s752 = scalar_select %p751, %s24, 0
        %s753 = sadd.s32 %s752, %s750
        %s754 = smul.addr %s748, 4
        %s755 = sadd.s32 %s753, %s754
        %s756 = smul.addr %s755, 4
        %s757 = scalar_lea.vmem %s3, %s756
      $region44: #{discriminator_forward.8} parent=39 // pred_fallthru
        _
    $region40: #{discriminator_forward.8} parent=5 // pred_fallthru
      _
  $region6: #{discriminator_forward.8} parent=0 // loop_footer
    %s13 = sadd.s32 1, %s9
  $region7: #{discriminator_forward.8} parent=0 // loop_footer_branch
    %8 = sbr.rel target = $region3
  $region8: #{discriminator_forward.8} parent=0 // loop_exit
    _

// kernel: discriminator_forward.9
$region0: #{discriminator_forward.9}
  #allocation0 [shape = 'u32[]', space=smem, size = 0x4, offset = 0x4, fixed_abs, tag = 'smem constant byte address 0x4 - core index']
  #allocation1 [shape = 'u32[72,128]{1,0:T(1,128)}', space=vmem, size = 0x9000, scoped, tag = 'internal scratch']
  %s0 = inlined_call_operand.vmem [shape: f32[2,2,1,1024], index: 0, kind: input, shape index: {}]
  %s1 = inlined_call_operand.vmem [shape: f32[2048,128], index: 1, kind: input, shape index: {}]
  %s2 = inlined_call_operand.vmem [shape: f32[1,128], index: 2, kind: input, shape index: {}]
  %s3 = inlined_call_operand.vmem [shape: f32[2,1,1,128], index: 3, kind: output, shape index: {}]
  %s4 = sld [smem:[#allocation0]]
  $region45: #{discriminator_forward.9} parent=0
    _
  %s6 = ssub.s32 1, %s4
  %s7 = scalar_select 0, %s6, %s4
  loop: start=0, step=1, limit=4
  $region2: #{discriminator_forward.9} parent=0 // loop_pre_header
    _
  $region3: #{discriminator_forward.9} parent=0 // loop_header
    %s9 = sphi 0, %s13
    %p10 = scmp.ge.s32.totalorder %s9, 4
    %s16 = sphi 0, %s35
    %s17 = sphi 0, %s31
    %s18 = sphi 0, %s27
    %s19 = sphi 0, %s16
    %s20 = sphi 0, %s17
    %s21 = sphi 0, %s18
    %s22 = sphi 0, %s19
    %s23 = sphi 0, %s20
    %s24 = sphi 0, %s21
    %s38 = sphi 0, %s40
    %s41 = sphi 0, %s38
    %s42 = sphi 0, %s41
    %s58 = sphi 0, %s42
    %s64 = sphi 0, %s66
    %s67 = sphi 0, %s64
    %s68 = sphi 0, %s67
    %s84 = sphi 0, %s68
    %s90 = sphi 0, %s92
    %s93 = sphi 0, %s90
    %s94 = sphi 0, %s93
    %s110 = sphi 0, %s94
    %s120 = sphi 0, %s122
    %s123 = sphi 0, %s120
    %s124 = sphi 0, %s123
    %s140 = sphi 0, %s124
  $region4: #{discriminator_forward.9} parent=0 // loop_header_branch
    %12 = sbr.rel (%p10) target = $region8
  $region5: #{discriminator_forward.9} parent=0 // loop_body
    %s14 = ssub.s32 %s9, 1
    %s15 = ssub.s32 %s9, 2
    %s25 = sadd.s32 1, %s18
    %p26 = scmp.ge.s32.totalorder %s25, 1
    %s27 = scalar_select %p26, 0, %s25
    %s28 = sadd.s32 1, %s17
    %s29 = scalar_select %p26, %s28, %s17
    %p30 = scmp.ge.s32.totalorder %s29, 1
    %s31 = scalar_select %p30, 0, %s29
    %s32 = sadd.s32 1, %s16
    %s33 = scalar_select %p30, %s32, %s16
    %p34 = scmp.ge.s32.totalorder %s33, 2
    %s35 = scalar_select %p34, 0, %s33
    %s36 = ssub.s32 %s16, %s35
    %p37 = scmp.eq.s32.totalorder %s36, 0
    %s39 = sadd.s32 %s38, 1
    %s40 = scalar_select %p37, %s38, %s39
    %p43 = pneg %p37
    %p44 = scmp.eq.s32.totalorder %s9, 1
    %p45 = por %p43, %p44
    %p46 = scmp.ne.s32.totalorder %s38, %s41
    %p47 = scmp.eq.s32.totalorder %s9, 0
    %p48 = por %p46, %p47
    %p49 = scmp.ne.s32.totalorder %s38, %s41
    %p50 = scmp.eq.s32.totalorder %s14, 1
    %p51 = por %p49, %p50
    %p52 = scmp.ne.s32.totalorder %s41, %s42
    %p53 = scmp.eq.s32.totalorder %s14, 0
    %p54 = por %p52, %p53
    %p55 = scmp.ne.s32.totalorder %s41, %s42
    %p56 = scmp.eq.s32.totalorder %s15, 1
    %p57 = por %p55, %p56
    %p59 = scmp.ne.s32.totalorder %s42, %s58
    %p60 = scmp.eq.s32.totalorder %s15, 0
    %p61 = por %p59, %p60
    %s62 = ssub.s32 %s18, %s27
    %p63 = scmp.eq.s32.totalorder %s62, 0
    %s65 = sadd.s32 %s64, 1
    %s66 = scalar_select %p63, %s64, %s65
    %p69 = pneg %p63
    %p70 = scmp.eq.s32.totalorder %s9, 1
    %p71 = por %p69, %p70
    %p72 = scmp.ne.s32.totalorder %s64, %s67
    %p73 = scmp.eq.s32.totalorder %s9, 0
    %p74 = por %p72, %p73
    %p75 = scmp.ne.s32.totalorder %s64, %s67
    %p76 = scmp.eq.s32.totalorder %s14, 1
    %p77 = por %p75, %p76
    %p78 = scmp.ne.s32.totalorder %s67, %s68
    %p79 = scmp.eq.s32.totalorder %s14, 0
    %p80 = por %p78, %p79
    %p81 = scmp.ne.s32.totalorder %s67, %s68
    %p82 = scmp.eq.s32.totalorder %s15, 1
    %p83 = por %p81, %p82
    %p85 = scmp.ne.s32.totalorder %s68, %s84
    %p86 = scmp.eq.s32.totalorder %s15, 0
    %p87 = por %p85, %p86
    %s88 = ssub.s32 %s18, %s27
    %p89 = scmp.eq.s32.totalorder %s88, 0
    %s91 = sadd.s32 %s90, 1
    %s92 = scalar_select %p89, %s90, %s91
    %p95 = pneg %p89
    %p96 = scmp.eq.s32.totalorder %s9, 1
    %p97 = por %p95, %p96
    %p98 = scmp.ne.s32.totalorder %s90, %s93
    %p99 = scmp.eq.s32.totalorder %s9, 0
    %p100 = por %p98, %p99
    %p101 = scmp.ne.s32.totalorder %s90, %s93
    %p102 = scmp.eq.s32.totalorder %s14, 1
    %p103 = por %p101, %p102
    %p104 = scmp.ne.s32.totalorder %s93, %s94
    %p105 = scmp.eq.s32.totalorder %s14, 0
    %p106 = por %p104, %p105
    %p107 = scmp.ne.s32.totalorder %s93, %s94
    %p108 = scmp.eq.s32.totalorder %s15, 1
    %p109 = por %p107, %p108
    %p111 = scmp.ne.s32.totalorder %s94, %s110
    %p112 = scmp.eq.s32.totalorder %s15, 0
    %p113 = por %p111, %p112
    %s114 = ssub.s32 %s16, %s35
    %s115 = ssub.s32 %s17, %s31
    %s116 = sor.u32 %s114, %s115
    %s117 = ssub.s32 %s18, %s27
    %s118 = sor.u32 %s116, %s117
    %p119 = scmp.eq.s32.totalorder %s118, 0
    %s121 = sadd.s32 %s120, 1
    %s122 = scalar_select %p119, %s120, %s121
    %p125 = pneg %p119
    %p126 = scmp.eq.s32.totalorder %s9, 1
    %p127 = por %p125, %p126
    %p128 = scmp.ne.s32.totalorder %s120, %s123
    %p129 = scmp.eq.s32.totalorder %s9, 0
    %p130 = por %p128, %p129
    %p131 = scmp.ne.s32.totalorder %s120, %s123
    %p132 = scmp.eq.s32.totalorder %s14, 1
    %p133 = por %p131, %p132
    %p134 = scmp.ne.s32.totalorder %s123, %s124
    %p135 = scmp.eq.s32.totalorder %s14, 0
    %p136 = por %p134, %p135
    %p137 = scmp.ne.s32.totalorder %s123, %s124
    %p138 = scmp.eq.s32.totalorder %s15, 1
    %p139 = por %p137, %p138
    %p141 = scmp.ne.s32.totalorder %s124, %s140
    %p142 = scmp.eq.s32.totalorder %s15, 0
    %p143 = por %p141, %p142
    %p144 = scmp.le.s32.totalorder 1, %s9
    %p145 = scmp.lt.s32.totalorder %s9, 3
    %p146 = pnand %p144, %p145
    %p147 = pneg %p146
    // Predicated region
    $region9: #{discriminator_forward.9} parent=5 // pred_check
      _
    $region10: #{discriminator_forward.9} parent=5 // pred_check_branch
      %149 = sbr.rel (%p146) target = $region12
    $region11: #{discriminator_forward.9} parent=5 // pred_region
      %s150 = ssub.s32 %s9, 1
      // Predicated region
      $region13: #{discriminator_forward.9} parent=11 // pred_check
        %p151 = pneg %p80
      $region14: #{discriminator_forward.9} parent=11 // pred_check_branch
        %153 = sbr.rel (%p151) target = $region16
      $region15: #{discriminator_forward.9} parent=11 // pred_region
        %p154 = scmp.lt.s32.totalorder %s21, 0
        %s155 = scalar_select %p154, %s21, 0
        %s156 = smul.addr %s155, 8
        %s157 = scalar_lea.vmem %s1, %s156
      $region16: #{discriminator_forward.9} parent=11 // pred_fallthru
        _
      // Predicated region
      $region17: #{discriminator_forward.9} parent=11 // pred_check
        %p158 = pneg %p106
      $region18: #{discriminator_forward.9} parent=11 // pred_check_branch
        %160 = sbr.rel (%p158) target = $region20
      $region19: #{discriminator_forward.9} parent=11 // pred_region
        %p161 = scmp.lt.s32.totalorder %s21, 0
        %s162 = scalar_select %p161, %s21, 0
        %s163 = scalar_lea.vmem %s2, %s162
      $region20: #{discriminator_forward.9} parent=11 // pred_fallthru
        _
    $region12: #{discriminator_forward.9} parent=5 // pred_fallthru
      _
    %p164 = scmp.lt.s32.totalorder %s9, 2
    // Predicated region
    $region21: #{discriminator_forward.9} parent=5 // pred_check
      %p165 = pneg %p164
    $region22: #{discriminator_forward.9} parent=5 // pred_check_branch
      %167 = sbr.rel (%p165) target = $region24
    $region23: #{discriminator_forward.9} parent=5 // pred_region
      // Predicated region
      $region25: #{discriminator_forward.9} parent=23 // pred_check
        %p168 = pneg %p48
      $region26: #{discriminator_forward.9} parent=23 // pred_check_branch
        %170 = sbr.rel (%p168) target = $region28
      $region27: #{discriminator_forward.9} parent=23 // pred_region
        %p171 = scmp.lt.s32.totalorder %s16, 1
        %s172 = scalar_select %p171, %s16, 1
        %s173 = smul.addr %s172, 16
        %s174 = scalar_lea.vmem %s0, %s173
      $region28: #{discriminator_forward.9} parent=23 // pred_fallthru
        _
    $region24: #{discriminator_forward.9} parent=5 // pred_fallthru
      _
    %p175 = scmp.le.s32.totalorder 1, %s9
    %p176 = scmp.lt.s32.totalorder %s9, 3
    %p177 = pnand %p175, %p176
    %p178 = pneg %p177
    // Predicated region
    $region29: #{discriminator_forward.9} parent=5 // pred_check
      _
    $region30: #{discriminator_forward.9} parent=5 // pred_check_branch
      %180 = sbr.rel (%p177) target = $region32
    $region31: #{discriminator_forward.9} parent=5 // pred_region
      %s181 = ssub.s32 %s9, 1
      %p182 = scmp.lt.s32.totalorder %s19, 1
      %s183 = scalar_select %p182, %s19, 1
      %s184 = smul.addr %s183, 16
      %s185 = scalar_lea.vmem %s0, %s184
      %p186 = pneg %p54
      %p187 = pneg %p51
      %p188 = scmp.lt.s32.totalorder %s21, 0
      %s189 = scalar_select %p188, %s21, 0
      %s190 = smul.addr %s189, 8
      %s191 = scalar_lea.vmem %s1, %s190
      %p192 = pneg %p80
      %p193 = pneg %p77
      %p194 = scmp.lt.s32.totalorder %s21, 0
      %s195 = scalar_select %p194, %s21, 0
      %s196 = scalar_lea.vmem %s2, %s195
      %p197 = pneg %p106
      %p198 = pneg %p103
      %p199 = pneg %p136
      %p200 = pneg %p133
      %p201 = scmp.lt.s32.totalorder %s19, 1
      %s202 = scalar_select %p201, %s19, 1
      %p203 = scmp.lt.s32.totalorder %s20, 0
      %s204 = scalar_select %p203, %s20, 0
      %p205 = scmp.lt.s32.totalorder %s21, 0
      %s206 = scalar_select %p205, %s21, 0
      %s207 = sadd.s32 %s206, %s204
      %s208 = sadd.s32 %s207, %s202
      %s209 = scalar_lea.vmem %s3, %s208
      %p210 = scmp.lt.s32.totalorder %s19, 1
      %s211 = scalar_select %p210, %s19, 1
      %s212 = smul.addr %s211, 16
      %s213 = scalar_lea.vmem %s0, %s212
      %p214 = scmp.lt.s32.totalorder %s21, 0
      %s215 = scalar_select %p214, %s21, 0
      %s216 = smul.addr %s215, 8
      %s217 = scalar_lea.vmem %s1, %s216
      %p218 = scmp.lt.s32.totalorder %s21, 0
      %s219 = scalar_select %p218, %s21, 0
      %s220 = scalar_lea.vmem %s2, %s219
      %p221 = scmp.lt.s32.totalorder %s19, 1
      %s222 = scalar_select %p221, %s19, 1
      %p223 = scmp.lt.s32.totalorder %s20, 0
      %s224 = scalar_select %p223, %s20, 0
      %p225 = scmp.lt.s32.totalorder %s21, 0
      %s226 = scalar_select %p225, %s21, 0
      %s227 = sadd.s32 %s226, %s224
      %s228 = sadd.s32 %s227, %s222
      %s229 = scalar_lea.vmem %s3, %s228
      %s230 = smul.u32 %s20, 8
      %s231 = scalar_lea.vmem %s213, %s230
      %v232 = vld [vmem:[%s231] sm:$0xff]
      %s233 = sadd.s32 %s20, 1
      %s234 = smul.u32 %s233, 8
      %s235 = scalar_lea.vmem %s213, %s234
      %v236 = vld [vmem:[%s235] sm:$0xff]
      %v238 = vperm.slane %v232, 0
      %v239 = vperm.slane %v232, 1
      %v240 = vperm.slane %v232, 2
      %v241 = vperm.slane %v232, 3
      %v242 = vperm.slane %v232, 4
      %v243 = vperm.slane %v232, 5
      %v244 = vperm.slane %v232, 6
      %v245 = vperm.slane %v232, 7
      %v255 = vperm.slane %v236, 0
      %v256 = vperm.slane %v236, 1
      %v257 = vperm.slane %v236, 2
      %v258 = vperm.slane %v236, 3
      %v259 = vperm.slane %v236, 4
      %v260 = vperm.slane %v236, 5
      %v261 = vperm.slane %v236, 6
      %v262 = vperm.slane %v236, 7
      %v271 = vld [vmem:[%s217] sm:$0xff]
      %v272 = vld [vmem:[%s217 + $0x8] sm:$0xff]
      %v273 = vld [vmem:[%s217 + $0x10] sm:$0xff]
      %v274 = vld [vmem:[%s217 + $0x18] sm:$0xff]
      %v275 = vld [vmem:[%s217 + $0x20] sm:$0xff]
      %v276 = vld [vmem:[%s217 + $0x28] sm:$0xff]
      %v277 = vld [vmem:[%s217 + $0x30] sm:$0xff]
      %v278 = vld [vmem:[%s217 + $0x38] sm:$0xff]
      %v279 = vld [vmem:[%s217 + $0x40] sm:$0xff]
      %v280 = vld [vmem:[%s217 + $0x48] sm:$0xff]
      %v281 = vld [vmem:[%s217 + $0x50] sm:$0xff]
      %v282 = vld [vmem:[%s217 + $0x58] sm:$0xff]
      %v283 = vld [vmem:[%s217 + $0x60] sm:$0xff]
      %v284 = vld [vmem:[%s217 + $0x68] sm:$0xff]
      %v285 = vld [vmem:[%s217 + $0x70] sm:$0xff]
      %v286 = vld [vmem:[%s217 + $0x78] sm:$0xff]
      %v287 = vld [vmem:[%s217 + $0x80] sm:$0xff]
      %v288 = vld [vmem:[%s217 + $0x88] sm:$0xff]
      %v289 = vld [vmem:[%s217 + $0x90] sm:$0xff]
      %v290 = vld [vmem:[%s217 + $0x98] sm:$0xff]
      %v291 = vld [vmem:[%s217 + $0xa0] sm:$0xff]
      %v292 = vld [vmem:[%s217 + $0xa8] sm:$0xff]
      %v293 = vld [vmem:[%s217 + $0xb0] sm:$0xff]
      %v294 = vld [vmem:[%s217 + $0xb8] sm:$0xff]
      %v295 = vld [vmem:[%s217 + $0xc0] sm:$0xff]
      %v296 = vld [vmem:[%s217 + $0xc8] sm:$0xff]
      %v297 = vld [vmem:[%s217 + $0xd0] sm:$0xff]
      %v298 = vld [vmem:[%s217 + $0xd8] sm:$0xff]
      %v299 = vld [vmem:[%s217 + $0xe0] sm:$0xff]
      %v300 = vld [vmem:[%s217 + $0xe8] sm:$0xff]
      %v301 = vld [vmem:[%s217 + $0xf0] sm:$0xff]
      %v302 = vld [vmem:[%s217 + $0xf8] sm:$0xff]
      %v303 = vld [vmem:[%s217 + $0x100] sm:$0xff]
      %v304 = vld [vmem:[%s217 + $0x108] sm:$0xff]
      %v305 = vld [vmem:[%s217 + $0x110] sm:$0xff]
      %v306 = vld [vmem:[%s217 + $0x118] sm:$0xff]
      %v307 = vld [vmem:[%s217 + $0x120] sm:$0xff]
      %v308 = vld [vmem:[%s217 + $0x128] sm:$0xff]
      %v309 = vld [vmem:[%s217 + $0x130] sm:$0xff]
      %v310 = vld [vmem:[%s217 + $0x138] sm:$0xff]
      %v311 = vld [vmem:[%s217 + $0x140] sm:$0xff]
      %v312 = vld [vmem:[%s217 + $0x148] sm:$0xff]
      %v313 = vld [vmem:[%s217 + $0x150] sm:$0xff]
      %v314 = vld [vmem:[%s217 + $0x158] sm:$0xff]
      %v315 = vld [vmem:[%s217 + $0x160] sm:$0xff]
      %v316 = vld [vmem:[%s217 + $0x168] sm:$0xff]
      %v317 = vld [vmem:[%s217 + $0x170] sm:$0xff]
      %v318 = vld [vmem:[%s217 + $0x178] sm:$0xff]
      %v319 = vld [vmem:[%s217 + $0x180] sm:$0xff]
      %v320 = vld [vmem:[%s217 + $0x188] sm:$0xff]
      %v321 = vld [vmem:[%s217 + $0x190] sm:$0xff]
      %v322 = vld [vmem:[%s217 + $0x198] sm:$0xff]
      %v323 = vld [vmem:[%s217 + $0x1a0] sm:$0xff]
      %v324 = vld [vmem:[%s217 + $0x1a8] sm:$0xff]
      %v325 = vld [vmem:[%s217 + $0x1b0] sm:$0xff]
      %v326 = vld [vmem:[%s217 + $0x1b8] sm:$0xff]
      %v327 = vld [vmem:[%s217 + $0x1c0] sm:$0xff]
      %v328 = vld [vmem:[%s217 + $0x1c8] sm:$0xff]
      %v329 = vld [vmem:[%s217 + $0x1d0] sm:$0xff]
      %v330 = vld [vmem:[%s217 + $0x1d8] sm:$0xff]
      %v331 = vld [vmem:[%s217 + $0x1e0] sm:$0xff]
      %v332 = vld [vmem:[%s217 + $0x1e8] sm:$0xff]
      %v333 = vld [vmem:[%s217 + $0x1f0] sm:$0xff]
      %v334 = vld [vmem:[%s217 + $0x1f8] sm:$0xff]
      %v335 = vld [vmem:[%s217 + $0x200] sm:$0xff]
      %v336 = vld [vmem:[%s217 + $0x208] sm:$0xff]
      %v337 = vld [vmem:[%s217 + $0x210] sm:$0xff]
      %v338 = vld [vmem:[%s217 + $0x218] sm:$0xff]
      %v339 = vld [vmem:[%s217 + $0x220] sm:$0xff]
      %v340 = vld [vmem:[%s217 + $0x228] sm:$0xff]
      %v341 = vld [vmem:[%s217 + $0x230] sm:$0xff]
      %v342 = vld [vmem:[%s217 + $0x238] sm:$0xff]
      %v343 = vld [vmem:[%s217 + $0x240] sm:$0xff]
      %v344 = vld [vmem:[%s217 + $0x248] sm:$0xff]
      %v345 = vld [vmem:[%s217 + $0x250] sm:$0xff]
      %v346 = vld [vmem:[%s217 + $0x258] sm:$0xff]
      %v347 = vld [vmem:[%s217 + $0x260] sm:$0xff]
      %v348 = vld [vmem:[%s217 + $0x268] sm:$0xff]
      %v349 = vld [vmem:[%s217 + $0x270] sm:$0xff]
      %v350 = vld [vmem:[%s217 + $0x278] sm:$0xff]
      %v351 = vld [vmem:[%s217 + $0x280] sm:$0xff]
      %v352 = vld [vmem:[%s217 + $0x288] sm:$0xff]
      %v353 = vld [vmem:[%s217 + $0x290] sm:$0xff]
      %v354 = vld [vmem:[%s217 + $0x298] sm:$0xff]
      %v355 = vld [vmem:[%s217 + $0x2a0] sm:$0xff]
      %v356 = vld [vmem:[%s217 + $0x2a8] sm:$0xff]
      %v357 = vld [vmem:[%s217 + $0x2b0] sm:$0xff]
      %v358 = vld [vmem:[%s217 + $0x2b8] sm:$0xff]
      %v359 = vld [vmem:[%s217 + $0x2c0] sm:$0xff]
      %v360 = vld [vmem:[%s217 + $0x2c8] sm:$0xff]
      %v361 = vld [vmem:[%s217 + $0x2d0] sm:$0xff]
      %v362 = vld [vmem:[%s217 + $0x2d8] sm:$0xff]
      %v363 = vld [vmem:[%s217 + $0x2e0] sm:$0xff]
      %v364 = vld [vmem:[%s217 + $0x2e8] sm:$0xff]
      %v365 = vld [vmem:[%s217 + $0x2f0] sm:$0xff]
      %v366 = vld [vmem:[%s217 + $0x2f8] sm:$0xff]
      %v367 = vld [vmem:[%s217 + $0x300] sm:$0xff]
      %v368 = vld [vmem:[%s217 + $0x308] sm:$0xff]
      %v369 = vld [vmem:[%s217 + $0x310] sm:$0xff]
      %v370 = vld [vmem:[%s217 + $0x318] sm:$0xff]
      %v371 = vld [vmem:[%s217 + $0x320] sm:$0xff]
      %v372 = vld [vmem:[%s217 + $0x328] sm:$0xff]
      %v373 = vld [vmem:[%s217 + $0x330] sm:$0xff]
      %v374 = vld [vmem:[%s217 + $0x338] sm:$0xff]
      %v375 = vld [vmem:[%s217 + $0x340] sm:$0xff]
      %v376 = vld [vmem:[%s217 + $0x348] sm:$0xff]
      %v377 = vld [vmem:[%s217 + $0x350] sm:$0xff]
      %v378 = vld [vmem:[%s217 + $0x358] sm:$0xff]
      %v379 = vld [vmem:[%s217 + $0x360] sm:$0xff]
      %v380 = vld [vmem:[%s217 + $0x368] sm:$0xff]
      %v381 = vld [vmem:[%s217 + $0x370] sm:$0xff]
      %v382 = vld [vmem:[%s217 + $0x378] sm:$0xff]
      %v383 = vld [vmem:[%s217 + $0x380] sm:$0xff]
      %v384 = vld [vmem:[%s217 + $0x388] sm:$0xff]
      %v385 = vld [vmem:[%s217 + $0x390] sm:$0xff]
      %v386 = vld [vmem:[%s217 + $0x398] sm:$0xff]
      %v387 = vld [vmem:[%s217 + $0x3a0] sm:$0xff]
      %v388 = vld [vmem:[%s217 + $0x3a8] sm:$0xff]
      %v389 = vld [vmem:[%s217 + $0x3b0] sm:$0xff]
      %v390 = vld [vmem:[%s217 + $0x3b8] sm:$0xff]
      %v391 = vld [vmem:[%s217 + $0x3c0] sm:$0xff]
      %v392 = vld [vmem:[%s217 + $0x3c8] sm:$0xff]
      %v393 = vld [vmem:[%s217 + $0x3d0] sm:$0xff]
      %v394 = vld [vmem:[%s217 + $0x3d8] sm:$0xff]
      %v395 = vld [vmem:[%s217 + $0x3e0] sm:$0xff]
      %v396 = vld [vmem:[%s217 + $0x3e8] sm:$0xff]
      %v397 = vld [vmem:[%s217 + $0x3f0] sm:$0xff]
      %v398 = vld [vmem:[%s217 + $0x3f8] sm:$0xff]
      %v399 = vld [vmem:[%s217 + $0x400] sm:$0xff]
      %v400 = vld [vmem:[%s217 + $0x408] sm:$0xff]
      %v401 = vld [vmem:[%s217 + $0x410] sm:$0xff]
      %v402 = vld [vmem:[%s217 + $0x418] sm:$0xff]
      %v403 = vld [vmem:[%s217 + $0x420] sm:$0xff]
      %v404 = vld [vmem:[%s217 + $0x428] sm:$0xff]
      %v405 = vld [vmem:[%s217 + $0x430] sm:$0xff]
      %v406 = vld [vmem:[%s217 + $0x438] sm:$0xff]
      %v407 = vld [vmem:[%s217 + $0x440] sm:$0xff]
      %v408 = vld [vmem:[%s217 + $0x448] sm:$0xff]
      %v409 = vld [vmem:[%s217 + $0x450] sm:$0xff]
      %v410 = vld [vmem:[%s217 + $0x458] sm:$0xff]
      %v411 = vld [vmem:[%s217 + $0x460] sm:$0xff]
      %v412 = vld [vmem:[%s217 + $0x468] sm:$0xff]
      %v413 = vld [vmem:[%s217 + $0x470] sm:$0xff]
      %v414 = vld [vmem:[%s217 + $0x478] sm:$0xff]
      %v415 = vld [vmem:[%s217 + $0x480] sm:$0xff]
      %v416 = vld [vmem:[%s217 + $0x488] sm:$0xff]
      %v417 = vld [vmem:[%s217 + $0x490] sm:$0xff]
      %v418 = vld [vmem:[%s217 + $0x498] sm:$0xff]
      %v419 = vld [vmem:[%s217 + $0x4a0] sm:$0xff]
      %v420 = vld [vmem:[%s217 + $0x4a8] sm:$0xff]
      %v421 = vld [vmem:[%s217 + $0x4b0] sm:$0xff]
      %v422 = vld [vmem:[%s217 + $0x4b8] sm:$0xff]
      %v423 = vld [vmem:[%s217 + $0x4c0] sm:$0xff]
      %v424 = vld [vmem:[%s217 + $0x4c8] sm:$0xff]
      %v425 = vld [vmem:[%s217 + $0x4d0] sm:$0xff]
      %v426 = vld [vmem:[%s217 + $0x4d8] sm:$0xff]
      %v427 = vld [vmem:[%s217 + $0x4e0] sm:$0xff]
      %v428 = vld [vmem:[%s217 + $0x4e8] sm:$0xff]
      %v429 = vld [vmem:[%s217 + $0x4f0] sm:$0xff]
      %v430 = vld [vmem:[%s217 + $0x4f8] sm:$0xff]
      %v431 = vld [vmem:[%s217 + $0x500] sm:$0xff]
      %v432 = vld [vmem:[%s217 + $0x508] sm:$0xff]
      %v433 = vld [vmem:[%s217 + $0x510] sm:$0xff]
      %v434 = vld [vmem:[%s217 + $0x518] sm:$0xff]
      %v435 = vld [vmem:[%s217 + $0x520] sm:$0xff]
      %v436 = vld [vmem:[%s217 + $0x528] sm:$0xff]
      %v437 = vld [vmem:[%s217 + $0x530] sm:$0xff]
      %v438 = vld [vmem:[%s217 + $0x538] sm:$0xff]
      %v439 = vld [vmem:[%s217 + $0x540] sm:$0xff]
      %v440 = vld [vmem:[%s217 + $0x548] sm:$0xff]
      %v441 = vld [vmem:[%s217 + $0x550] sm:$0xff]
      %v442 = vld [vmem:[%s217 + $0x558] sm:$0xff]
      %v443 = vld [vmem:[%s217 + $0x560] sm:$0xff]
      %v444 = vld [vmem:[%s217 + $0x568] sm:$0xff]
      %v445 = vld [vmem:[%s217 + $0x570] sm:$0xff]
      %v446 = vld [vmem:[%s217 + $0x578] sm:$0xff]
      %v447 = vld [vmem:[%s217 + $0x580] sm:$0xff]
      %v448 = vld [vmem:[%s217 + $0x588] sm:$0xff]
      %v449 = vld [vmem:[%s217 + $0x590] sm:$0xff]
      %v450 = vld [vmem:[%s217 + $0x598] sm:$0xff]
      %v451 = vld [vmem:[%s217 + $0x5a0] sm:$0xff]
      %v452 = vld [vmem:[%s217 + $0x5a8] sm:$0xff]
      %v453 = vld [vmem:[%s217 + $0x5b0] sm:$0xff]
      %v454 = vld [vmem:[%s217 + $0x5b8] sm:$0xff]
      %v455 = vld [vmem:[%s217 + $0x5c0] sm:$0xff]
      %v456 = vld [vmem:[%s217 + $0x5c8] sm:$0xff]
      %v457 = vld [vmem:[%s217 + $0x5d0] sm:$0xff]
      %v458 = vld [vmem:[%s217 + $0x5d8] sm:$0xff]
      %v459 = vld [vmem:[%s217 + $0x5e0] sm:$0xff]
      %v460 = vld [vmem:[%s217 + $0x5e8] sm:$0xff]
      %v461 = vld [vmem:[%s217 + $0x5f0] sm:$0xff]
      %v462 = vld [vmem:[%s217 + $0x5f8] sm:$0xff]
      %v463 = vld [vmem:[%s217 + $0x600] sm:$0xff]
      %v464 = vld [vmem:[%s217 + $0x608] sm:$0xff]
      %v465 = vld [vmem:[%s217 + $0x610] sm:$0xff]
      %v466 = vld [vmem:[%s217 + $0x618] sm:$0xff]
      %v467 = vld [vmem:[%s217 + $0x620] sm:$0xff]
      %v468 = vld [vmem:[%s217 + $0x628] sm:$0xff]
      %v469 = vld [vmem:[%s217 + $0x630] sm:$0xff]
      %v470 = vld [vmem:[%s217 + $0x638] sm:$0xff]
      %v471 = vld [vmem:[%s217 + $0x640] sm:$0xff]
      %v472 = vld [vmem:[%s217 + $0x648] sm:$0xff]
      %v473 = vld [vmem:[%s217 + $0x650] sm:$0xff]
      %v474 = vld [vmem:[%s217 + $0x658] sm:$0xff]
      %v475 = vld [vmem:[%s217 + $0x660] sm:$0xff]
      %v476 = vld [vmem:[%s217 + $0x668] sm:$0xff]
      %v477 = vld [vmem:[%s217 + $0x670] sm:$0xff]
      %v478 = vld [vmem:[%s217 + $0x678] sm:$0xff]
      %v479 = vld [vmem:[%s217 + $0x680] sm:$0xff]
      %v480 = vld [vmem:[%s217 + $0x688] sm:$0xff]
      %v481 = vld [vmem:[%s217 + $0x690] sm:$0xff]
      %v482 = vld [vmem:[%s217 + $0x698] sm:$0xff]
      %v483 = vld [vmem:[%s217 + $0x6a0] sm:$0xff]
      %v484 = vld [vmem:[%s217 + $0x6a8] sm:$0xff]
      %v485 = vld [vmem:[%s217 + $0x6b0] sm:$0xff]
      %v486 = vld [vmem:[%s217 + $0x6b8] sm:$0xff]
      %v487 = vld [vmem:[%s217 + $0x6c0] sm:$0xff]
      %v488 = vld [vmem:[%s217 + $0x6c8] sm:$0xff]
      %v489 = vld [vmem:[%s217 + $0x6d0] sm:$0xff]
      %v490 = vld [vmem:[%s217 + $0x6d8] sm:$0xff]
      %v491 = vld [vmem:[%s217 + $0x6e0] sm:$0xff]
      %v492 = vld [vmem:[%s217 + $0x6e8] sm:$0xff]
      %v493 = vld [vmem:[%s217 + $0x6f0] sm:$0xff]
      %v494 = vld [vmem:[%s217 + $0x6f8] sm:$0xff]
      %v495 = vld [vmem:[%s217 + $0x700] sm:$0xff]
      %v496 = vld [vmem:[%s217 + $0x708] sm:$0xff]
      %v497 = vld [vmem:[%s217 + $0x710] sm:$0xff]
      %v498 = vld [vmem:[%s217 + $0x718] sm:$0xff]
      %v499 = vld [vmem:[%s217 + $0x720] sm:$0xff]
      %v500 = vld [vmem:[%s217 + $0x728] sm:$0xff]
      %v501 = vld [vmem:[%s217 + $0x730] sm:$0xff]
      %v502 = vld [vmem:[%s217 + $0x738] sm:$0xff]
      %v503 = vld [vmem:[%s217 + $0x740] sm:$0xff]
      %v504 = vld [vmem:[%s217 + $0x748] sm:$0xff]
      %v505 = vld [vmem:[%s217 + $0x750] sm:$0xff]
      %v506 = vld [vmem:[%s217 + $0x758] sm:$0xff]
      %v507 = vld [vmem:[%s217 + $0x760] sm:$0xff]
      %v508 = vld [vmem:[%s217 + $0x768] sm:$0xff]
      %v509 = vld [vmem:[%s217 + $0x770] sm:$0xff]
      %v510 = vld [vmem:[%s217 + $0x778] sm:$0xff]
      %v511 = vld [vmem:[%s217 + $0x780] sm:$0xff]
      %v512 = vld [vmem:[%s217 + $0x788] sm:$0xff]
      %v513 = vld [vmem:[%s217 + $0x790] sm:$0xff]
      %v514 = vld [vmem:[%s217 + $0x798] sm:$0xff]
      %v515 = vld [vmem:[%s217 + $0x7a0] sm:$0xff]
      %v516 = vld [vmem:[%s217 + $0x7a8] sm:$0xff]
      %v517 = vld [vmem:[%s217 + $0x7b0] sm:$0xff]
      %v518 = vld [vmem:[%s217 + $0x7b8] sm:$0xff]
      %v519 = vld [vmem:[%s217 + $0x7c0] sm:$0xff]
      %v520 = vld [vmem:[%s217 + $0x7c8] sm:$0xff]
      %v521 = vld [vmem:[%s217 + $0x7d0] sm:$0xff]
      %v522 = vld [vmem:[%s217 + $0x7d8] sm:$0xff]
      %v523 = vld [vmem:[%s217 + $0x7e0] sm:$0xff]
      %v524 = vld [vmem:[%s217 + $0x7e8] sm:$0xff]
      %v525 = vld [vmem:[%s217 + $0x7f0] sm:$0xff]
      %v526 = vld [vmem:[%s217 + $0x7f8] sm:$0xff]
      %v527 = vld [vmem:[%s220] sm:$0x1]
      %528 = vmatpush.msra.mxu0 %v286
      %529 = vmatpush.msra.mxu0 %v285
      %530 = vmatpush.msra.mxu0 %v284
      %531 = vmatpush.msra.mxu0 %v283
      %532 = vmatpush.msra.mxu0 %v282
      %533 = vmatpush.msra.mxu0 %v281
      %534 = vmatpush.msra.mxu0 %v280
      %535 = vmatpush.msra.mxu0 %v279
      %536 = vmatpush.msra.mxu0 %v278
      %537 = vmatpush.msra.mxu0 %v277
      %538 = vmatpush.msra.mxu0 %v276
      %539 = vmatpush.msra.mxu0 %v275
      %540 = vmatpush.msra.mxu0 %v274
      %541 = vmatpush.msra.mxu0 %v273
      %542 = vmatpush.msra.mxu0 %v272
      %543 = vmatpush.msra.mxu0 %v271
      %544 = vmatmul.f32.gmra.mxu0 %v238
      %v545 = vpop.f32.mrf.mxu0
      %v546 = vadd.f32 %v527, %v545
      %547 = vdwg.mxu0
      %548 = vmatpush.msra.mxu0 %v302
      %549 = vmatpush.msra.mxu0 %v301
      %550 = vmatpush.msra.mxu0 %v300
      %551 = vmatpush.msra.mxu0 %v299
      %552 = vmatpush.msra.mxu0 %v298
      %553 = vmatpush.msra.mxu0 %v297
      %554 = vmatpush.msra.mxu0 %v296
      %555 = vmatpush.msra.mxu0 %v295
      %556 = vmatpush.msra.mxu0 %v294
      %557 = vmatpush.msra.mxu0 %v293
      %558 = vmatpush.msra.mxu0 %v292
      %559 = vmatpush.msra.mxu0 %v291
      %560 = vmatpush.msra.mxu0 %v290
      %561 = vmatpush.msra.mxu0 %v289
      %562 = vmatpush.msra.mxu0 %v288
      %563 = vmatpush.msra.mxu0 %v287
      %564 = vmatmul.f32.gmra.mxu0 %v239
      %v565 = vpop.f32.mrf.mxu0
      %v566 = vadd.f32 %v546, %v565
      %567 = vdwg.mxu0
      %568 = vmatpush.msra.mxu0 %v318
      %569 = vmatpush.msra.mxu0 %v317
      %570 = vmatpush.msra.mxu0 %v316
      %571 = vmatpush.msra.mxu0 %v315
      %572 = vmatpush.msra.mxu0 %v314
      %573 = vmatpush.msra.mxu0 %v313
      %574 = vmatpush.msra.mxu0 %v312
      %575 = vmatpush.msra.mxu0 %v311
      %576 = vmatpush.msra.mxu0 %v310
      %577 = vmatpush.msra.mxu0 %v309
      %578 = vmatpush.msra.mxu0 %v308
      %579 = vmatpush.msra.mxu0 %v307
      %580 = vmatpush.msra.mxu0 %v306
      %581 = vmatpush.msra.mxu0 %v305
      %582 = vmatpush.msra.mxu0 %v304
      %583 = vmatpush.msra.mxu0 %v303
      %584 = vmatmul.f32.gmra.mxu0 %v240
      %v585 = vpop.f32.mrf.mxu0
      %v586 = vadd.f32 %v566, %v585
      %587 = vdwg.mxu0
      %588 = vmatpush.msra.mxu0 %v334
      %589 = vmatpush.msra.mxu0 %v333
      %590 = vmatpush.msra.mxu0 %v332
      %591 = vmatpush.msra.mxu0 %v331
      %592 = vmatpush.msra.mxu0 %v330
      %593 = vmatpush.msra.mxu0 %v329
      %594 = vmatpush.msra.mxu0 %v328
      %595 = vmatpush.msra.mxu0 %v327
      %596 = vmatpush.msra.mxu0 %v326
      %597 = vmatpush.msra.mxu0 %v325
      %598 = vmatpush.msra.mxu0 %v324
      %599 = vmatpush.msra.mxu0 %v323
      %600 = vmatpush.msra.mxu0 %v322
      %601 = vmatpush.msra.mxu0 %v321
      %602 = vmatpush.msra.mxu0 %v320
      %603 = vmatpush.msra.mxu0 %v319
      %604 = vmatmul.f32.gmra.mxu0 %v241
      %v605 = vpop.f32.mrf.mxu0
      %v606 = vadd.f32 %v586, %v605
      %607 = vdwg.mxu0
      %608 = vmatpush.msra.mxu0 %v350
      %609 = vmatpush.msra.mxu0 %v349
      %610 = vmatpush.msra.mxu0 %v348
      %611 = vmatpush.msra.mxu0 %v347
      %612 = vmatpush.msra.mxu0 %v346
      %613 = vmatpush.msra.mxu0 %v345
      %614 = vmatpush.msra.mxu0 %v344
      %615 = vmatpush.msra.mxu0 %v343
      %616 = vmatpush.msra.mxu0 %v342
      %617 = vmatpush.msra.mxu0 %v341
      %618 = vmatpush.msra.mxu0 %v340
      %619 = vmatpush.msra.mxu0 %v339
      %620 = vmatpush.msra.mxu0 %v338
      %621 = vmatpush.msra.mxu0 %v337
      %622 = vmatpush.msra.mxu0 %v336
      %623 = vmatpush.msra.mxu0 %v335
      %624 = vmatmul.f32.gmra.mxu0 %v242
      %v625 = vpop.f32.mrf.mxu0
      %v626 = vadd.f32 %v606, %v625
      %627 = vdwg.mxu0
      %628 = vmatpush.msra.mxu0 %v366
      %629 = vmatpush.msra.mxu0 %v365
      %630 = vmatpush.msra.mxu0 %v364
      %631 = vmatpush.msra.mxu0 %v363
      %632 = vmatpush.msra.mxu0 %v362
      %633 = vmatpush.msra.mxu0 %v361
      %634 = vmatpush.msra.mxu0 %v360
      %635 = vmatpush.msra.mxu0 %v359
      %636 = vmatpush.msra.mxu0 %v358
      %637 = vmatpush.msra.mxu0 %v357
      %638 = vmatpush.msra.mxu0 %v356
      %639 = vmatpush.msra.mxu0 %v355
      %640 = vmatpush.msra.mxu0 %v354
      %641 = vmatpush.msra.mxu0 %v353
      %642 = vmatpush.msra.mxu0 %v352
      %643 = vmatpush.msra.mxu0 %v351
      %644 = vmatmul.f32.gmra.mxu0 %v243
      %v645 = vpop.f32.mrf.mxu0
      %v646 = vadd.f32 %v626, %v645
      %647 = vdwg.mxu0
      %648 = vmatpush.msra.mxu0 %v382
      %649 = vmatpush.msra.mxu0 %v381
      %650 = vmatpush.msra.mxu0 %v380
      %651 = vmatpush.msra.mxu0 %v379
      %652 = vmatpush.msra.mxu0 %v378
      %653 = vmatpush.msra.mxu0 %v377
      %654 = vmatpush.msra.mxu0 %v376
      %655 = vmatpush.msra.mxu0 %v375
      %656 = vmatpush.msra.mxu0 %v374
      %657 = vmatpush.msra.mxu0 %v373
      %658 = vmatpush.msra.mxu0 %v372
      %659 = vmatpush.msra.mxu0 %v371
      %660 = vmatpush.msra.mxu0 %v370
      %661 = vmatpush.msra.mxu0 %v369
      %662 = vmatpush.msra.mxu0 %v368
      %663 = vmatpush.msra.mxu0 %v367
      %664 = vmatmul.f32.gmra.mxu0 %v244
      %v665 = vpop.f32.mrf.mxu0
      %v666 = vadd.f32 %v646, %v665
      %667 = vdwg.mxu0
      %668 = vmatpush.msra.mxu0 %v398
      %669 = vmatpush.msra.mxu0 %v397
      %670 = vmatpush.msra.mxu0 %v396
      %671 = vmatpush.msra.mxu0 %v395
      %672 = vmatpush.msra.mxu0 %v394
      %673 = vmatpush.msra.mxu0 %v393
      %674 = vmatpush.msra.mxu0 %v392
      %675 = vmatpush.msra.mxu0 %v391
      %676 = vmatpush.msra.mxu0 %v390
      %677 = vmatpush.msra.mxu0 %v389
      %678 = vmatpush.msra.mxu0 %v388
      %679 = vmatpush.msra.mxu0 %v387
      %680 = vmatpush.msra.mxu0 %v386
      %681 = vmatpush.msra.mxu0 %v385
      %682 = vmatpush.msra.mxu0 %v384
      %683 = vmatpush.msra.mxu0 %v383
      %684 = vmatmul.f32.gmra.mxu0 %v245
      %v685 = vpop.f32.mrf.mxu0
      %v686 = vadd.f32 %v666, %v685
      %687 = vdwg.mxu0
      %688 = vmatpush.msra.mxu0 %v414
      %689 = vmatpush.msra.mxu0 %v413
      %690 = vmatpush.msra.mxu0 %v412
      %691 = vmatpush.msra.mxu0 %v411
      %692 = vmatpush.msra.mxu0 %v410
      %693 = vmatpush.msra.mxu0 %v409
      %694 = vmatpush.msra.mxu0 %v408
      %695 = vmatpush.msra.mxu0 %v407
      %696 = vmatpush.msra.mxu0 %v406
      %697 = vmatpush.msra.mxu0 %v405
      %698 = vmatpush.msra.mxu0 %v404
      %699 = vmatpush.msra.mxu0 %v403
      %700 = vmatpush.msra.mxu0 %v402
      %701 = vmatpush.msra.mxu0 %v401
      %702 = vmatpush.msra.mxu0 %v400
      %703 = vmatpush.msra.mxu0 %v399
      %704 = vmatmul.f32.gmra.mxu0 %v255
      %v705 = vpop.f32.mrf.mxu0
      %v706 = vadd.f32 %v686, %v705
      %707 = vdwg.mxu0
      %708 = vmatpush.msra.mxu0 %v430
      %709 = vmatpush.msra.mxu0 %v429
      %710 = vmatpush.msra.mxu0 %v428
      %711 = vmatpush.msra.mxu0 %v427
      %712 = vmatpush.msra.mxu0 %v426
      %713 = vmatpush.msra.mxu0 %v425
      %714 = vmatpush.msra.mxu0 %v424
      %715 = vmatpush.msra.mxu0 %v423
      %716 = vmatpush.msra.mxu0 %v422
      %717 = vmatpush.msra.mxu0 %v421
      %718 = vmatpush.msra.mxu0 %v420
      %719 = vmatpush.msra.mxu0 %v419
      %720 = vmatpush.msra.mxu0 %v418
      %721 = vmatpush.msra.mxu0 %v417
      %722 = vmatpush.msra.mxu0 %v416
      %723 = vmatpush.msra.mxu0 %v415
      %724 = vmatmul.f32.gmra.mxu0 %v256
      %v725 = vpop.f32.mrf.mxu0
      %v726 = vadd.f32 %v706, %v725
      %727 = vdwg.mxu0
      %728 = vmatpush.msra.mxu0 %v446
      %729 = vmatpush.msra.mxu0 %v445
      %730 = vmatpush.msra.mxu0 %v444
      %731 = vmatpush.msra.mxu0 %v443
      %732 = vmatpush.msra.mxu0 %v442
      %733 = vmatpush.msra.mxu0 %v441
      %734 = vmatpush.msra.mxu0 %v440
      %735 = vmatpush.msra.mxu0 %v439
      %736 = vmatpush.msra.mxu0 %v438
      %737 = vmatpush.msra.mxu0 %v437
      %738 = vmatpush.msra.mxu0 %v436
      %739 = vmatpush.msra.mxu0 %v435
      %740 = vmatpush.msra.mxu0 %v434
      %741 = vmatpush.msra.mxu0 %v433
      %742 = vmatpush.msra.mxu0 %v432
      %743 = vmatpush.msra.mxu0 %v431
      %744 = vmatmul.f32.gmra.mxu0 %v257
      %v745 = vpop.f32.mrf.mxu0
      %v746 = vadd.f32 %v726, %v745
      %747 = vdwg.mxu0
      %748 = vmatpush.msra.mxu0 %v462
      %749 = vmatpush.msra.mxu0 %v461
      %750 = vmatpush.msra.mxu0 %v460
      %751 = vmatpush.msra.mxu0 %v459
      %752 = vmatpush.msra.mxu0 %v458
      %753 = vmatpush.msra.mxu0 %v457
      %754 = vmatpush.msra.mxu0 %v456
      %755 = vmatpush.msra.mxu0 %v455
      %756 = vmatpush.msra.mxu0 %v454
      %757 = vmatpush.msra.mxu0 %v453
      %758 = vmatpush.msra.mxu0 %v452
      %759 = vmatpush.msra.mxu0 %v451
      %760 = vmatpush.msra.mxu0 %v450
      %761 = vmatpush.msra.mxu0 %v449
      %762 = vmatpush.msra.mxu0 %v448
      %763 = vmatpush.msra.mxu0 %v447
      %764 = vmatmul.f32.gmra.mxu0 %v258
      %v765 = vpop.f32.mrf.mxu0
      %v766 = vadd.f32 %v746, %v765
      %767 = vdwg.mxu0
      %768 = vmatpush.msra.mxu0 %v478
      %769 = vmatpush.msra.mxu0 %v477
      %770 = vmatpush.msra.mxu0 %v476
      %771 = vmatpush.msra.mxu0 %v475
      %772 = vmatpush.msra.mxu0 %v474
      %773 = vmatpush.msra.mxu0 %v473
      %774 = vmatpush.msra.mxu0 %v472
      %775 = vmatpush.msra.mxu0 %v471
      %776 = vmatpush.msra.mxu0 %v470
      %777 = vmatpush.msra.mxu0 %v469
      %778 = vmatpush.msra.mxu0 %v468
      %779 = vmatpush.msra.mxu0 %v467
      %780 = vmatpush.msra.mxu0 %v466
      %781 = vmatpush.msra.mxu0 %v465
      %782 = vmatpush.msra.mxu0 %v464
      %783 = vmatpush.msra.mxu0 %v463
      %784 = vmatmul.f32.gmra.mxu0 %v259
      %v785 = vpop.f32.mrf.mxu0
      %v786 = vadd.f32 %v766, %v785
      %787 = vdwg.mxu0
      %788 = vmatpush.msra.mxu0 %v494
      %789 = vmatpush.msra.mxu0 %v493
      %790 = vmatpush.msra.mxu0 %v492
      %791 = vmatpush.msra.mxu0 %v491
      %792 = vmatpush.msra.mxu0 %v490
      %793 = vmatpush.msra.mxu0 %v489
      %794 = vmatpush.msra.mxu0 %v488
      %795 = vmatpush.msra.mxu0 %v487
      %796 = vmatpush.msra.mxu0 %v486
      %797 = vmatpush.msra.mxu0 %v485
      %798 = vmatpush.msra.mxu0 %v484
      %799 = vmatpush.msra.mxu0 %v483
      %800 = vmatpush.msra.mxu0 %v482
      %801 = vmatpush.msra.mxu0 %v481
      %802 = vmatpush.msra.mxu0 %v480
      %803 = vmatpush.msra.mxu0 %v479
      %804 = vmatmul.f32.gmra.mxu0 %v260
      %v805 = vpop.f32.mrf.mxu0
      %v806 = vadd.f32 %v786, %v805
      %807 = vdwg.mxu0
      %808 = vmatpush.msra.mxu0 %v510
      %809 = vmatpush.msra.mxu0 %v509
      %810 = vmatpush.msra.mxu0 %v508
      %811 = vmatpush.msra.mxu0 %v507
      %812 = vmatpush.msra.mxu0 %v506
      %813 = vmatpush.msra.mxu0 %v505
      %814 = vmatpush.msra.mxu0 %v504
      %815 = vmatpush.msra.mxu0 %v503
      %816 = vmatpush.msra.mxu0 %v502
      %817 = vmatpush.msra.mxu0 %v501
      %818 = vmatpush.msra.mxu0 %v500
      %819 = vmatpush.msra.mxu0 %v499
      %820 = vmatpush.msra.mxu0 %v498
      %821 = vmatpush.msra.mxu0 %v497
      %822 = vmatpush.msra.mxu0 %v496
      %823 = vmatpush.msra.mxu0 %v495
      %824 = vmatmul.f32.gmra.mxu0 %v261
      %v825 = vpop.f32.mrf.mxu0
      %v826 = vadd.f32 %v806, %v825
      %827 = vdwg.mxu0
      %828 = vmatpush.msra.mxu0 %v526
      %829 = vmatpush.msra.mxu0 %v525
      %830 = vmatpush.msra.mxu0 %v524
      %831 = vmatpush.msra.mxu0 %v523
      %832 = vmatpush.msra.mxu0 %v522
      %833 = vmatpush.msra.mxu0 %v521
      %834 = vmatpush.msra.mxu0 %v520
      %835 = vmatpush.msra.mxu0 %v519
      %836 = vmatpush.msra.mxu0 %v518
      %837 = vmatpush.msra.mxu0 %v517
      %838 = vmatpush.msra.mxu0 %v516
      %839 = vmatpush.msra.mxu0 %v515
      %840 = vmatpush.msra.mxu0 %v514
      %841 = vmatpush.msra.mxu0 %v513
      %842 = vmatpush.msra.mxu0 %v512
      %843 = vmatpush.msra.mxu0 %v511
      %844 = vmatmul.f32.gmra.mxu0 %v262
      %v845 = vpop.f32.mrf.mxu0
      %v846 = vadd.f32 %v826, %v845
      %847 = vdwg.mxu0
      %848 = vst [vmem:[%s229] sm:$0x1] %v846
      %p849 = scmp.lt.s32.totalorder %s19, 1
      %s850 = scalar_select %p849, %s19, 1
      %p851 = scmp.lt.s32.totalorder %s20, 0
      %s852 = scalar_select %p851, %s20, 0
      %p853 = scmp.lt.s32.totalorder %s21, 0
      %s854 = scalar_select %p853, %s21, 0
      %s855 = sadd.s32 %s854, %s852
      %s856 = sadd.s32 %s855, %s850
      %s857 = scalar_lea.vmem %s3, %s856
      // Predicated region
      $region33: #{discriminator_forward.9} parent=31 // pred_check
        %p858 = pneg %p133
      $region34: #{discriminator_forward.9} parent=31 // pred_check_branch
        %860 = sbr.rel (%p858) target = $region36
      $region35: #{discriminator_forward.9} parent=31 // pred_region
        _
      $region36: #{discriminator_forward.9} parent=31 // pred_fallthru
        _
    $region32: #{discriminator_forward.9} parent=5 // pred_fallthru
      _
    %p861 = scmp.le.s32.totalorder 2, %s9
    // Predicated region
    $region37: #{discriminator_forward.9} parent=5 // pred_check
      %p862 = pneg %p861
    $region38: #{discriminator_forward.9} parent=5 // pred_check_branch
      %864 = sbr.rel (%p862) target = $region40
    $region39: #{discriminator_forward.9} parent=5 // pred_region
      %s865 = ssub.s32 %s9, 2
      // Predicated region
      $region41: #{discriminator_forward.9} parent=39 // pred_check
        %p866 = pneg %p139
      $region42: #{discriminator_forward.9} parent=39 // pred_check_branch
        %868 = sbr.rel (%p866) target = $region44
      $region43: #{discriminator_forward.9} parent=39 // pred_region
        %p869 = scmp.lt.s32.totalorder %s22, 1
        %s870 = scalar_select %p869, %s22, 1
        %p871 = scmp.lt.s32.totalorder %s23, 0
        %s872 = scalar_select %p871, %s23, 0
        %p873 = scmp.lt.s32.totalorder %s24, 0
        %s874 = scalar_select %p873, %s24, 0
        %s875 = sadd.s32 %s874, %s872
        %s876 = sadd.s32 %s875, %s870
        %s877 = scalar_lea.vmem %s3, %s876
      $region44: #{discriminator_forward.9} parent=39 // pred_fallthru
        _
    $region40: #{discriminator_forward.9} parent=5 // pred_fallthru
      _
  $region6: #{discriminator_forward.9} parent=0 // loop_footer
    %s13 = sadd.s32 1, %s9
  $region7: #{discriminator_forward.9} parent=0 // loop_footer_branch
    %8 = sbr.rel target = $region3
  $region8: #{discriminator_forward.9} parent=0 // loop_exit
    _

</llo_original>
